<compile_context>
chip_gen: v7x
topology: tpu7x:2x2x1
jax: 0.10.0
libtpu: 0.0.40
codegen_flags: <defaults>
</compile_context>

<pallas_src>
import math
from functools import partial

import jax
import jax.numpy as jnp
from jax.experimental import pallas as pl
from jax.experimental.pallas import tpu as pltpu


def _layer_norm(x, gamma, beta, eps):
    # x: (rows, D) f32 ; gamma/beta: (1, D)
    mean = jnp.mean(x, axis=-1, keepdims=True)
    var = jnp.mean(jnp.square(x - mean), axis=-1, keepdims=True)
    return (x - mean) * jax.lax.rsqrt(var + eps) * gamma + beta


# ---------------------------------------------------------------------------
# Single fused kernel: all encoder layers + final LayerNorm, one batch element
# per grid step.  Weight refs carry a leading N_max axis (constant index_map).
# ---------------------------------------------------------------------------
def _encoder_kernel(x_ref,
                    wq_ref, wk_ref, wv_ref, wo_ref,
                    bq_ref, bk_ref, bv_ref, bo_ref,
                    w1_ref, b1_ref, w2_ref, b2_ref,
                    g1_ref, beta1_ref, g2_ref, beta2_ref,
                    gf_ref, bf_ref,
                    o_ref, *, n_layers, n_heads, eps):
    x = x_ref[...].astype(jnp.float32)                       # (L, D)
    L, D = x.shape
    dh = D // n_heads
    scale = 1.0 / math.sqrt(dh)

    for l in range(n_layers):                                # static unroll
        # ---- multi-head self-attention + residual + LayerNorm (post-norm) ---
        wq, wk, wv, wo = wq_ref[l], wk_ref[l], wv_ref[l], wo_ref[l]
        q = jnp.dot(x, wq, preferred_element_type=jnp.float32) + bq_ref[l]
        k = jnp.dot(x, wk, preferred_element_type=jnp.float32) + bk_ref[l]
        v = jnp.dot(x, wv, preferred_element_type=jnp.float32) + bv_ref[l]

        # concat(head_0..head_{H-1}) @ Wo == sum_h head_h @ Wo[h*dh:(h+1)*dh, :]
        # (avoids an in-kernel concatenate / relayout).
        attn = jnp.zeros((L, D), jnp.float32)
        for h in range(n_heads):                             # static unroll
            lo, hi = h * dh, (h + 1) * dh
            qh, kh, vh = q[:, lo:hi], k[:, lo:hi], v[:, lo:hi]
            s = jax.lax.dot_general(qh, kh, (((1,), (1,)), ((), ())),
                                    preferred_element_type=jnp.float32) * scale
            s = s - jnp.max(s, axis=-1, keepdims=True)
            p = jnp.exp(s)
            p = p / jnp.sum(p, axis=-1, keepdims=True)
            head = jnp.dot(p, vh, preferred_element_type=jnp.float32)   # (L, dh)
            attn = attn + jnp.dot(head, wo[lo:hi, :],
                                  preferred_element_type=jnp.float32)
        attn = attn + bo_ref[l]
        x = _layer_norm(x + attn, g1_ref[l], beta1_ref[l], eps)

        # ---- position-wise FFN + residual + LayerNorm ------------------------
        h1 = jnp.dot(x, w1_ref[l], preferred_element_type=jnp.float32) + b1_ref[l]
        h1 = jnp.maximum(h1, 0.0)
        y = jnp.dot(h1, w2_ref[l], preferred_element_type=jnp.float32) + b2_ref[l]
        x = _layer_norm(x + y, g2_ref[l], beta2_ref[l], eps)

    # ---- final encoder LayerNorm ---------------------------------------------
    o_ref[...] = _layer_norm(x, gf_ref[...], bf_ref[...], eps).astype(o_ref.dtype)


def encoder_forward(src, layer_params, final_gamma, final_beta, *,
                    n_heads, eps=1e-5, mask=None):
    # TODO(synk): attention `mask` not supported (forward is exercised with
    # mask=None); a non-None mask would be an additive bias on the per-head
    # score tiles inside _encoder_kernel.
    B, L, D = src.shape
    n_layers = len(layer_params)
    d_ff = layer_params[0]["w1"].shape[1]
    assert D % n_heads == 0

    stk = lambda name: jnp.stack([p[name] for p in layer_params])
    stkr = lambda name: jnp.stack([p[name].reshape(1, -1) for p in layer_params])

    const2 = lambda b: (0, 0)
    const3 = lambda b: (0, 0, 0)
    w_spec = lambda r, c: pl.BlockSpec((n_layers, r, c), const3)
    b_spec = lambda c: pl.BlockSpec((n_layers, 1, c), const3)

    return pl.pallas_call(
        partial(_encoder_kernel, n_layers=n_layers, n_heads=n_heads, eps=eps),
        out_shape=jax.ShapeDtypeStruct((B, L, D), jnp.float32),
        grid_spec=pltpu.PrefetchScalarGridSpec(
            num_scalar_prefetch=0,
            grid=(B,),
            in_specs=[
                pl.BlockSpec((None, L, D), lambda b: (b, 0, 0)),   # x (per batch)
                w_spec(D, D), w_spec(D, D), w_spec(D, D), w_spec(D, D),  # Wq Wk Wv Wo
                b_spec(D), b_spec(D), b_spec(D), b_spec(D),              # bq bk bv bo
                w_spec(D, d_ff), b_spec(d_ff),                           # W1 b1
                w_spec(d_ff, D), b_spec(D),                              # W2 b2
                b_spec(D), b_spec(D),                                    # norm1 gamma/beta
                b_spec(D), b_spec(D),                                    # norm2 gamma/beta
                pl.BlockSpec((1, D), const2),                            # final gamma
                pl.BlockSpec((1, D), const2),                            # final beta
            ],
            out_specs=pl.BlockSpec((None, L, D), lambda b: (b, 0, 0)),
        ),
        compiler_params=pltpu.CompilerParams(
            dimension_semantics=("parallel",)),
    )(src,
      stk("wq"), stk("wk"), stk("wv"), stk("wo"),
      stkr("bq"), stkr("bk"), stkr("bv"), stkr("bo"),
      stk("w1"), stkr("b1"), stk("w2"), stkr("b2"),
      stkr("g1"), stkr("beta1"), stkr("g2"), stkr("beta2"),
      final_gamma.reshape(1, -1), final_beta.reshape(1, -1))


# ---------------------------------------------------------------------------
# Pure-JAX reference (same assumed layer semantics) and parameter init
# ---------------------------------------------------------------------------
def _layer_norm_ref(x, g, b, eps):
    m = jnp.mean(x, axis=-1, keepdims=True)
    v = jnp.mean(jnp.square(x - m), axis=-1, keepdims=True)
    return (x - m) * jax.lax.rsqrt(v + eps) * g + b


def encoder_reference(src, layer_params, final_gamma, final_beta, *,
                      n_heads, eps=1e-5):
    B, L, D = src.shape
    dh = D // n_heads
    x = src
    for p in layer_params:
        q = x @ p["wq"] + p["bq"]
        k = x @ p["wk"] + p["bk"]
        v = x @ p["wv"] + p["bv"]
        split = lambda t: t.reshape(B, L, n_heads, dh).transpose(0, 2, 1, 3)
        qh, kh, vh = split(q), split(k), split(v)
        s = jnp.einsum("bhqd,bhkd->bhqk", qh, kh) / math.sqrt(dh)
        a = jax.nn.softmax(s, axis=-1)
        o = jnp.einsum("bhqk,bhkd->bhqd", a, vh)
        o = o.transpose(0, 2, 1, 3).reshape(B, L, D)
        o = o @ p["wo"] + p["bo"]
        x = _layer_norm_ref(x + o, p["g1"], p["beta1"], eps)
        f = jnp.maximum(x @ p["w1"] + p["b1"], 0.0) @ p["w2"] + p["b2"]
        x = _layer_norm_ref(x + f, p["g2"], p["beta2"], eps)
    return _layer_norm_ref(x, final_gamma, final_beta, eps)


def init_layer_params(key, d_model, d_ff):
    ks = jax.random.split(key, 12)

    def uni(k, fan_in, shape):
        bound = 1.0 / math.sqrt(fan_in)
        return jax.random.uniform(k, shape, minval=-bound, maxval=bound,
                                  dtype=jnp.float32)

    return {
        "wq": uni(ks[0], d_model, (d_model, d_model)),
        "bq": uni(ks[1], d_model, (d_model,)),
        "wk": uni(ks[2], d_model, (d_model, d_model)),
        "bk": uni(ks[3], d_model, (d_model,)),
        "wv": uni(ks[4], d_model, (d_model, d_model)),
        "bv": uni(ks[5], d_model, (d_model,)),
        "wo": uni(ks[6], d_model, (d_model, d_model)),
        "bo": uni(ks[7], d_model, (d_model,)),
        "w1": uni(ks[8], d_model, (d_model, d_ff)),
        "b1": uni(ks[9], d_model, (d_ff,)),
        "w2": uni(ks[10], d_ff, (d_ff, d_model)),
        "b2": uni(ks[11], d_ff, (d_model,)),
        # PyTorch LayerNorm default init
        "g1": jnp.ones((d_model,), jnp.float32),
        "beta1": jnp.zeros((d_model,), jnp.float32),
        "g2": jnp.ones((d_model,), jnp.float32),
        "beta2": jnp.zeros((d_model,), jnp.float32),
    }


if __name__ == "__main__":
    # Small shapes; d_model = 128 keeps every output tile lane-dense.
    B, L, d_model = 2, 8, 128
    n_heads, d_ff, N_max = 4, 256, 2
    eps = 1e-5

    key = jax.random.PRNGKey(0)
    keys = jax.random.split(key, 1 + N_max)
    kx, layer_keys = keys[0], keys[1:]

    src = jax.random.normal(kx, (B, L, d_model), dtype=jnp.float32)
    layer_params = [init_layer_params(k, d_model, d_ff) for k in layer_keys]
    final_gamma = jnp.ones((d_model,), jnp.float32)
    final_beta = jnp.zeros((d_model,), jnp.float32)

    # TODO(synk): dropout inside the assumed encoder layer is treated as
    # identity (eval-mode semantics).
    out = encoder_forward(src, layer_params, final_gamma, final_beta,
                          n_heads=n_heads, eps=eps)
    out = jax.block_until_ready(out)

    ref = encoder_reference(src, layer_params, final_gamma, final_beta,
                            n_heads=n_heads, eps=eps)
    ref = jax.block_until_ready(ref)

    assert out.shape == (B, L, d_model)
    max_err = float(jnp.max(jnp.abs(out - ref)))
    # MXU matmul precision can differ slightly between the Pallas and XLA
    # paths; outputs are LayerNorm'd (O(1)), so a 3e-2 bound is a meaningful check.
    assert max_err < 3e-2, f"max abs error {max_err}"

    print("KERNEL_OK")
</pallas_src>

<mosaic_0001>
module attributes {stable_mosaic.version = 11 : i64} {
  func.func @_encoder_kernel(%arg0: i32, %arg1: memref<1x8x128xf32, #tpu.memory_space<vmem>>, %arg2: memref<2x128x128xf32, #tpu.memory_space<vmem>>, %arg3: memref<2x128x128xf32, #tpu.memory_space<vmem>>, %arg4: memref<2x128x128xf32, #tpu.memory_space<vmem>>, %arg5: memref<2x128x128xf32, #tpu.memory_space<vmem>>, %arg6: memref<2x1x128xf32, #tpu.memory_space<vmem>>, %arg7: memref<2x1x128xf32, #tpu.memory_space<vmem>>, %arg8: memref<2x1x128xf32, #tpu.memory_space<vmem>>, %arg9: memref<2x1x128xf32, #tpu.memory_space<vmem>>, %arg10: memref<2x128x256xf32, #tpu.memory_space<vmem>>, %arg11: memref<2x1x256xf32, #tpu.memory_space<vmem>>, %arg12: memref<2x256x128xf32, #tpu.memory_space<vmem>>, %arg13: memref<2x1x128xf32, #tpu.memory_space<vmem>>, %arg14: memref<2x1x128xf32, #tpu.memory_space<vmem>>, %arg15: memref<2x1x128xf32, #tpu.memory_space<vmem>>, %arg16: memref<2x1x128xf32, #tpu.memory_space<vmem>>, %arg17: memref<2x1x128xf32, #tpu.memory_space<vmem>>, %arg18: memref<1x128xf32, #tpu.memory_space<vmem>>, %arg19: memref<1x128xf32, #tpu.memory_space<vmem>>, %arg20: memref<1x8x128xf32, #tpu.memory_space<vmem>>) attributes {dimension_semantics = [#tpu.dimension_semantics<parallel>], iteration_bounds = array<i64: 2>, scalar_prefetch = 0 : i64, scratch_operands = 0 : i64, tpu.core_type = #tpu.core_type<tc>, window_params = [{transform_indices = @transform_0, window_bounds = array<i64: 1, 8, 128>}, {pipeline_mode = #tpu.pipeline_mode<synchronous>, transform_indices = @transform_1, window_bounds = array<i64: 2, 128, 128>}, {pipeline_mode = #tpu.pipeline_mode<synchronous>, transform_indices = @transform_2, window_bounds = array<i64: 2, 128, 128>}, {pipeline_mode = #tpu.pipeline_mode<synchronous>, transform_indices = @transform_3, window_bounds = array<i64: 2, 128, 128>}, {pipeline_mode = #tpu.pipeline_mode<synchronous>, transform_indices = @transform_4, window_bounds = array<i64: 2, 128, 128>}, {pipeline_mode = #tpu.pipeline_mode<synchronous>, transform_indices = @transform_5, window_bounds = array<i64: 2, 1, 128>}, {pipeline_mode = #tpu.pipeline_mode<synchronous>, transform_indices = @transform_6, window_bounds = array<i64: 2, 1, 128>}, {pipeline_mode = #tpu.pipeline_mode<synchronous>, transform_indices = @transform_7, window_bounds = array<i64: 2, 1, 128>}, {pipeline_mode = #tpu.pipeline_mode<synchronous>, transform_indices = @transform_8, window_bounds = array<i64: 2, 1, 128>}, {pipeline_mode = #tpu.pipeline_mode<synchronous>, transform_indices = @transform_9, window_bounds = array<i64: 2, 128, 256>}, {pipeline_mode = #tpu.pipeline_mode<synchronous>, transform_indices = @transform_10, window_bounds = array<i64: 2, 1, 256>}, {pipeline_mode = #tpu.pipeline_mode<synchronous>, transform_indices = @transform_11, window_bounds = array<i64: 2, 256, 128>}, {pipeline_mode = #tpu.pipeline_mode<synchronous>, transform_indices = @transform_12, window_bounds = array<i64: 2, 1, 128>}, {pipeline_mode = #tpu.pipeline_mode<synchronous>, transform_indices = @transform_13, window_bounds = array<i64: 2, 1, 128>}, {pipeline_mode = #tpu.pipeline_mode<synchronous>, transform_indices = @transform_14, window_bounds = array<i64: 2, 1, 128>}, {pipeline_mode = #tpu.pipeline_mode<synchronous>, transform_indices = @transform_15, window_bounds = array<i64: 2, 1, 128>}, {pipeline_mode = #tpu.pipeline_mode<synchronous>, transform_indices = @transform_16, window_bounds = array<i64: 2, 1, 128>}, {pipeline_mode = #tpu.pipeline_mode<synchronous>, transform_indices = @transform_17, window_bounds = array<i64: 1, 128>}, {pipeline_mode = #tpu.pipeline_mode<synchronous>, transform_indices = @transform_18, window_bounds = array<i64: 1, 128>}, {transform_indices = @transform_19, window_bounds = array<i64: 1, 8, 128>}]} {
    %c0 = arith.constant 0 : index
    %c0_0 = arith.constant 0 : index
    %c0_1 = arith.constant 0 : index
    %0 = vector.load %arg1[%c0, %c0_0, %c0_1] : memref<1x8x128xf32, #tpu.memory_space<vmem>>, vector<1x8x128xf32>
    %1 = vector.shape_cast %0 : vector<1x8x128xf32> to vector<8x128xf32>
    %c0_2 = arith.constant 0 : index
    %c0_3 = arith.constant 0 : index
    %c0_4 = arith.constant 0 : index
    %2 = vector.load %arg2[%c0_2, %c0_3, %c0_4] : memref<2x128x128xf32, #tpu.memory_space<vmem>>, vector<1x128x128xf32>
    %3 = vector.shape_cast %2 : vector<1x128x128xf32> to vector<128x128xf32>
    %c0_5 = arith.constant 0 : index
    %c0_6 = arith.constant 0 : index
    %c0_7 = arith.constant 0 : index
    %4 = vector.load %arg3[%c0_5, %c0_6, %c0_7] : memref<2x128x128xf32, #tpu.memory_space<vmem>>, vector<1x128x128xf32>
    %5 = vector.shape_cast %4 : vector<1x128x128xf32> to vector<128x128xf32>
    %c0_8 = arith.constant 0 : index
    %c0_9 = arith.constant 0 : index
    %c0_10 = arith.constant 0 : index
    %6 = vector.load %arg4[%c0_8, %c0_9, %c0_10] : memref<2x128x128xf32, #tpu.memory_space<vmem>>, vector<1x128x128xf32>
    %7 = vector.shape_cast %6 : vector<1x128x128xf32> to vector<128x128xf32>
    %c0_11 = arith.constant 0 : index
    %c0_12 = arith.constant 0 : index
    %c0_13 = arith.constant 0 : index
    %8 = vector.load %arg5[%c0_11, %c0_12, %c0_13] : memref<2x128x128xf32, #tpu.memory_space<vmem>>, vector<1x128x128xf32>
    %9 = vector.shape_cast %8 : vector<1x128x128xf32> to vector<128x128xf32>
    %cst = arith.constant dense<0.000000e+00> : vector<8x128xf32>
    %10 = tpu.matmul %1, %3, %cst {dimension_numbers = #tpu.dot_dimension_numbers<[1], [0], [0], [1], [0, 0, 1, 1], [], []>} : vector<8x128xf32>, vector<128x128xf32>, vector<8x128xf32> -> vector<8x128xf32>
    %c0_14 = arith.constant 0 : index
    %c0_15 = arith.constant 0 : index
    %c0_16 = arith.constant 0 : index
    %11 = vector.load %arg6[%c0_14, %c0_15, %c0_16] : memref<2x1x128xf32, #tpu.memory_space<vmem>>, vector<1x1x128xf32>
    %12 = vector.shape_cast %11 : vector<1x1x128xf32> to vector<1x128xf32>
    %13 = vector.broadcast %12 : vector<1x128xf32> to vector<8x128xf32>
    %14 = arith.addf %10, %13 : vector<8x128xf32>
    %cst_17 = arith.constant dense<0.000000e+00> : vector<8x128xf32>
    %15 = tpu.matmul %1, %5, %cst_17 {dimension_numbers = #tpu.dot_dimension_numbers<[1], [0], [0], [1], [0, 0, 1, 1], [], []>} : vector<8x128xf32>, vector<128x128xf32>, vector<8x128xf32> -> vector<8x128xf32>
    %c0_18 = arith.constant 0 : index
    %c0_19 = arith.constant 0 : index
    %c0_20 = arith.constant 0 : index
    %16 = vector.load %arg7[%c0_18, %c0_19, %c0_20] : memref<2x1x128xf32, #tpu.memory_space<vmem>>, vector<1x1x128xf32>
    %17 = vector.shape_cast %16 : vector<1x1x128xf32> to vector<1x128xf32>
    %18 = vector.broadcast %17 : vector<1x128xf32> to vector<8x128xf32>
    %19 = arith.addf %15, %18 : vector<8x128xf32>
    %cst_21 = arith.constant dense<0.000000e+00> : vector<8x128xf32>
    %20 = tpu.matmul %1, %7, %cst_21 {dimension_numbers = #tpu.dot_dimension_numbers<[1], [0], [0], [1], [0, 0, 1, 1], [], []>} : vector<8x128xf32>, vector<128x128xf32>, vector<8x128xf32> -> vector<8x128xf32>
    %c0_22 = arith.constant 0 : index
    %c0_23 = arith.constant 0 : index
    %c0_24 = arith.constant 0 : index
    %21 = vector.load %arg8[%c0_22, %c0_23, %c0_24] : memref<2x1x128xf32, #tpu.memory_space<vmem>>, vector<1x1x128xf32>
    %22 = vector.shape_cast %21 : vector<1x1x128xf32> to vector<1x128xf32>
    %23 = vector.broadcast %22 : vector<1x128xf32> to vector<8x128xf32>
    %24 = arith.addf %20, %23 : vector<8x128xf32>
    %cst_25 = arith.constant 0.000000e+00 : f32
    %25 = vector.broadcast %cst_25 : f32 to vector<8x128xf32>
    %26 = vector.extract_strided_slice %14 {offsets = [0, 0], sizes = [8, 32], strides = [1, 1]} : vector<8x128xf32> to vector<8x32xf32>
    %27 = vector.extract_strided_slice %19 {offsets = [0, 0], sizes = [8, 32], strides = [1, 1]} : vector<8x128xf32> to vector<8x32xf32>
    %28 = vector.extract_strided_slice %24 {offsets = [0, 0], sizes = [8, 32], strides = [1, 1]} : vector<8x128xf32> to vector<8x32xf32>
    %cst_26 = arith.constant dense<0.000000e+00> : vector<8x8xf32>
    %29 = tpu.matmul %26, %27, %cst_26 {dimension_numbers = #tpu.dot_dimension_numbers<[1], [1], [0], [0], [0, 0, 1, 0], [], []>} : vector<8x32xf32>, vector<8x32xf32>, vector<8x8xf32> -> vector<8x8xf32>
    %cst_27 = arith.constant 0.176776692 : f32
    %30 = vector.broadcast %cst_27 : f32 to vector<8x8xf32>
    %31 = arith.mulf %29, %30 : vector<8x8xf32>
    %cst_28 = arith.constant dense<0xFF800000> : vector<8xf32>
    %32 = vector.multi_reduction <maximumf>, %31, %cst_28 [1] : vector<8x8xf32> to vector<8xf32>
    %33 = vector.shape_cast %32 : vector<8xf32> to vector<8x1xf32>
    %34 = vector.broadcast %33 : vector<8x1xf32> to vector<8x8xf32>
    %35 = arith.subf %31, %34 : vector<8x8xf32>
    %36 = math.exp %35 : vector<8x8xf32>
    %cst_29 = arith.constant dense<0.000000e+00> : vector<8xf32>
    %37 = vector.multi_reduction <add>, %36, %cst_29 [1] : vector<8x8xf32> to vector<8xf32>
    %38 = vector.shape_cast %37 : vector<8xf32> to vector<8x1xf32>
    %39 = vector.broadcast %38 : vector<8x1xf32> to vector<8x8xf32>
    %40 = arith.divf %36, %39 : vector<8x8xf32>
    %cst_30 = arith.constant dense<0.000000e+00> : vector<8x32xf32>
    %41 = tpu.matmul %40, %28, %cst_30 {dimension_numbers = #tpu.dot_dimension_numbers<[1], [0], [0], [1], [0, 0, 1, 1], [], []>} : vector<8x8xf32>, vector<8x32xf32>, vector<8x32xf32> -> vector<8x32xf32>
    %42 = vector.extract_strided_slice %9 {offsets = [0, 0], sizes = [32, 128], strides = [1, 1]} : vector<128x128xf32> to vector<32x128xf32>
    %cst_31 = arith.constant dense<0.000000e+00> : vector<8x128xf32>
    %43 = tpu.matmul %41, %42, %cst_31 {dimension_numbers = #tpu.dot_dimension_numbers<[1], [0], [0], [1], [0, 0, 1, 1], [], []>} : vector<8x32xf32>, vector<32x128xf32>, vector<8x128xf32> -> vector<8x128xf32>
    %44 = arith.addf %25, %43 : vector<8x128xf32>
    %45 = vector.extract_strided_slice %14 {offsets = [0, 32], sizes = [8, 32], strides = [1, 1]} : vector<8x128xf32> to vector<8x32xf32>
    %46 = vector.extract_strided_slice %19 {offsets = [0, 32], sizes = [8, 32], strides = [1, 1]} : vector<8x128xf32> to vector<8x32xf32>
    %47 = vector.extract_strided_slice %24 {offsets = [0, 32], sizes = [8, 32], strides = [1, 1]} : vector<8x128xf32> to vector<8x32xf32>
    %cst_32 = arith.constant dense<0.000000e+00> : vector<8x8xf32>
    %48 = tpu.matmul %45, %46, %cst_32 {dimension_numbers = #tpu.dot_dimension_numbers<[1], [1], [0], [0], [0, 0, 1, 0], [], []>} : vector<8x32xf32>, vector<8x32xf32>, vector<8x8xf32> -> vector<8x8xf32>
    %cst_33 = arith.constant 0.176776692 : f32
    %49 = vector.broadcast %cst_33 : f32 to vector<8x8xf32>
    %50 = arith.mulf %48, %49 : vector<8x8xf32>
    %cst_34 = arith.constant dense<0xFF800000> : vector<8xf32>
    %51 = vector.multi_reduction <maximumf>, %50, %cst_34 [1] : vector<8x8xf32> to vector<8xf32>
    %52 = vector.shape_cast %51 : vector<8xf32> to vector<8x1xf32>
    %53 = vector.broadcast %52 : vector<8x1xf32> to vector<8x8xf32>
    %54 = arith.subf %50, %53 : vector<8x8xf32>
    %55 = math.exp %54 : vector<8x8xf32>
    %cst_35 = arith.constant dense<0.000000e+00> : vector<8xf32>
    %56 = vector.multi_reduction <add>, %55, %cst_35 [1] : vector<8x8xf32> to vector<8xf32>
    %57 = vector.shape_cast %56 : vector<8xf32> to vector<8x1xf32>
    %58 = vector.broadcast %57 : vector<8x1xf32> to vector<8x8xf32>
    %59 = arith.divf %55, %58 : vector<8x8xf32>
    %cst_36 = arith.constant dense<0.000000e+00> : vector<8x32xf32>
    %60 = tpu.matmul %59, %47, %cst_36 {dimension_numbers = #tpu.dot_dimension_numbers<[1], [0], [0], [1], [0, 0, 1, 1], [], []>} : vector<8x8xf32>, vector<8x32xf32>, vector<8x32xf32> -> vector<8x32xf32>
    %61 = vector.extract_strided_slice %9 {offsets = [32, 0], sizes = [32, 128], strides = [1, 1]} : vector<128x128xf32> to vector<32x128xf32>
    %cst_37 = arith.constant dense<0.000000e+00> : vector<8x128xf32>
    %62 = tpu.matmul %60, %61, %cst_37 {dimension_numbers = #tpu.dot_dimension_numbers<[1], [0], [0], [1], [0, 0, 1, 1], [], []>} : vector<8x32xf32>, vector<32x128xf32>, vector<8x128xf32> -> vector<8x128xf32>
    %63 = arith.addf %44, %62 : vector<8x128xf32>
    %64 = vector.extract_strided_slice %14 {offsets = [0, 64], sizes = [8, 32], strides = [1, 1]} : vector<8x128xf32> to vector<8x32xf32>
    %65 = vector.extract_strided_slice %19 {offsets = [0, 64], sizes = [8, 32], strides = [1, 1]} : vector<8x128xf32> to vector<8x32xf32>
    %66 = vector.extract_strided_slice %24 {offsets = [0, 64], sizes = [8, 32], strides = [1, 1]} : vector<8x128xf32> to vector<8x32xf32>
    %cst_38 = arith.constant dense<0.000000e+00> : vector<8x8xf32>
    %67 = tpu.matmul %64, %65, %cst_38 {dimension_numbers = #tpu.dot_dimension_numbers<[1], [1], [0], [0], [0, 0, 1, 0], [], []>} : vector<8x32xf32>, vector<8x32xf32>, vector<8x8xf32> -> vector<8x8xf32>
    %cst_39 = arith.constant 0.176776692 : f32
    %68 = vector.broadcast %cst_39 : f32 to vector<8x8xf32>
    %69 = arith.mulf %67, %68 : vector<8x8xf32>
    %cst_40 = arith.constant dense<0xFF800000> : vector<8xf32>
    %70 = vector.multi_reduction <maximumf>, %69, %cst_40 [1] : vector<8x8xf32> to vector<8xf32>
    %71 = vector.shape_cast %70 : vector<8xf32> to vector<8x1xf32>
    %72 = vector.broadcast %71 : vector<8x1xf32> to vector<8x8xf32>
    %73 = arith.subf %69, %72 : vector<8x8xf32>
    %74 = math.exp %73 : vector<8x8xf32>
    %cst_41 = arith.constant dense<0.000000e+00> : vector<8xf32>
    %75 = vector.multi_reduction <add>, %74, %cst_41 [1] : vector<8x8xf32> to vector<8xf32>
    %76 = vector.shape_cast %75 : vector<8xf32> to vector<8x1xf32>
    %77 = vector.broadcast %76 : vector<8x1xf32> to vector<8x8xf32>
    %78 = arith.divf %74, %77 : vector<8x8xf32>
    %cst_42 = arith.constant dense<0.000000e+00> : vector<8x32xf32>
    %79 = tpu.matmul %78, %66, %cst_42 {dimension_numbers = #tpu.dot_dimension_numbers<[1], [0], [0], [1], [0, 0, 1, 1], [], []>} : vector<8x8xf32>, vector<8x32xf32>, vector<8x32xf32> -> vector<8x32xf32>
    %80 = vector.extract_strided_slice %9 {offsets = [64, 0], sizes = [32, 128], strides = [1, 1]} : vector<128x128xf32> to vector<32x128xf32>
    %cst_43 = arith.constant dense<0.000000e+00> : vector<8x128xf32>
    %81 = tpu.matmul %79, %80, %cst_43 {dimension_numbers = #tpu.dot_dimension_numbers<[1], [0], [0], [1], [0, 0, 1, 1], [], []>} : vector<8x32xf32>, vector<32x128xf32>, vector<8x128xf32> -> vector<8x128xf32>
    %82 = arith.addf %63, %81 : vector<8x128xf32>
    %83 = vector.extract_strided_slice %14 {offsets = [0, 96], sizes = [8, 32], strides = [1, 1]} : vector<8x128xf32> to vector<8x32xf32>
    %84 = vector.extract_strided_slice %19 {offsets = [0, 96], sizes = [8, 32], strides = [1, 1]} : vector<8x128xf32> to vector<8x32xf32>
    %85 = vector.extract_strided_slice %24 {offsets = [0, 96], sizes = [8, 32], strides = [1, 1]} : vector<8x128xf32> to vector<8x32xf32>
    %cst_44 = arith.constant dense<0.000000e+00> : vector<8x8xf32>
    %86 = tpu.matmul %83, %84, %cst_44 {dimension_numbers = #tpu.dot_dimension_numbers<[1], [1], [0], [0], [0, 0, 1, 0], [], []>} : vector<8x32xf32>, vector<8x32xf32>, vector<8x8xf32> -> vector<8x8xf32>
    %cst_45 = arith.constant 0.176776692 : f32
    %87 = vector.broadcast %cst_45 : f32 to vector<8x8xf32>
    %88 = arith.mulf %86, %87 : vector<8x8xf32>
    %cst_46 = arith.constant dense<0xFF800000> : vector<8xf32>
    %89 = vector.multi_reduction <maximumf>, %88, %cst_46 [1] : vector<8x8xf32> to vector<8xf32>
    %90 = vector.shape_cast %89 : vector<8xf32> to vector<8x1xf32>
    %91 = vector.broadcast %90 : vector<8x1xf32> to vector<8x8xf32>
    %92 = arith.subf %88, %91 : vector<8x8xf32>
    %93 = math.exp %92 : vector<8x8xf32>
    %cst_47 = arith.constant dense<0.000000e+00> : vector<8xf32>
    %94 = vector.multi_reduction <add>, %93, %cst_47 [1] : vector<8x8xf32> to vector<8xf32>
    %95 = vector.shape_cast %94 : vector<8xf32> to vector<8x1xf32>
    %96 = vector.broadcast %95 : vector<8x1xf32> to vector<8x8xf32>
    %97 = arith.divf %93, %96 : vector<8x8xf32>
    %cst_48 = arith.constant dense<0.000000e+00> : vector<8x32xf32>
    %98 = tpu.matmul %97, %85, %cst_48 {dimension_numbers = #tpu.dot_dimension_numbers<[1], [0], [0], [1], [0, 0, 1, 1], [], []>} : vector<8x8xf32>, vector<8x32xf32>, vector<8x32xf32> -> vector<8x32xf32>
    %99 = vector.extract_strided_slice %9 {offsets = [96, 0], sizes = [32, 128], strides = [1, 1]} : vector<128x128xf32> to vector<32x128xf32>
    %cst_49 = arith.constant dense<0.000000e+00> : vector<8x128xf32>
    %100 = tpu.matmul %98, %99, %cst_49 {dimension_numbers = #tpu.dot_dimension_numbers<[1], [0], [0], [1], [0, 0, 1, 1], [], []>} : vector<8x32xf32>, vector<32x128xf32>, vector<8x128xf32> -> vector<8x128xf32>
    %101 = arith.addf %82, %100 : vector<8x128xf32>
    %c0_50 = arith.constant 0 : index
    %c0_51 = arith.constant 0 : index
    %c0_52 = arith.constant 0 : index
    %102 = vector.load %arg9[%c0_50, %c0_51, %c0_52] : memref<2x1x128xf32, #tpu.memory_space<vmem>>, vector<1x1x128xf32>
    %103 = vector.shape_cast %102 : vector<1x1x128xf32> to vector<1x128xf32>
    %104 = vector.broadcast %103 : vector<1x128xf32> to vector<8x128xf32>
    %105 = arith.addf %101, %104 : vector<8x128xf32>
    %106 = arith.addf %1, %105 : vector<8x128xf32>
    %c0_53 = arith.constant 0 : index
    %c0_54 = arith.constant 0 : index
    %c0_55 = arith.constant 0 : index
    %107 = vector.load %arg14[%c0_53, %c0_54, %c0_55] : memref<2x1x128xf32, #tpu.memory_space<vmem>>, vector<1x1x128xf32>
    %108 = vector.shape_cast %107 : vector<1x1x128xf32> to vector<1x128xf32>
    %c0_56 = arith.constant 0 : index
    %c0_57 = arith.constant 0 : index
    %c0_58 = arith.constant 0 : index
    %109 = vector.load %arg15[%c0_56, %c0_57, %c0_58] : memref<2x1x128xf32, #tpu.memory_space<vmem>>, vector<1x1x128xf32>
    %110 = vector.shape_cast %109 : vector<1x1x128xf32> to vector<1x128xf32>
    %cst_59 = arith.constant dense<0.000000e+00> : vector<8xf32>
    %111 = vector.multi_reduction <add>, %106, %cst_59 [1] : vector<8x128xf32> to vector<8xf32>
    %112 = vector.shape_cast %111 : vector<8xf32> to vector<8x1xf32>
    %cst_60 = arith.constant 1.280000e+02 : f32
    %113 = vector.broadcast %cst_60 : f32 to vector<8x1xf32>
    %114 = arith.divf %112, %113 : vector<8x1xf32>
    %115 = vector.broadcast %114 : vector<8x1xf32> to vector<8x128xf32>
    %116 = arith.subf %106, %115 : vector<8x128xf32>
    %117 = arith.mulf %116, %116 : vector<8x128xf32>
    %cst_61 = arith.constant dense<0.000000e+00> : vector<8xf32>
    %118 = vector.multi_reduction <add>, %117, %cst_61 [1] : vector<8x128xf32> to vector<8xf32>
    %119 = vector.shape_cast %118 : vector<8xf32> to vector<8x1xf32>
    %cst_62 = arith.constant 1.280000e+02 : f32
    %120 = vector.broadcast %cst_62 : f32 to vector<8x1xf32>
    %121 = arith.divf %119, %120 : vector<8x1xf32>
    %122 = vector.broadcast %114 : vector<8x1xf32> to vector<8x128xf32>
    %123 = arith.subf %106, %122 : vector<8x128xf32>
    %cst_63 = arith.constant 9.99999974E-6 : f32
    %124 = vector.broadcast %cst_63 : f32 to vector<8x1xf32>
    %125 = arith.addf %121, %124 : vector<8x1xf32>
    %126 = math.rsqrt %125 : vector<8x1xf32>
    %127 = vector.broadcast %126 : vector<8x1xf32> to vector<8x128xf32>
    %128 = arith.mulf %123, %127 : vector<8x128xf32>
    %129 = vector.broadcast %108 : vector<1x128xf32> to vector<8x128xf32>
    %130 = arith.mulf %128, %129 : vector<8x128xf32>
    %131 = vector.broadcast %110 : vector<1x128xf32> to vector<8x128xf32>
    %132 = arith.addf %130, %131 : vector<8x128xf32>
    %c0_64 = arith.constant 0 : index
    %c0_65 = arith.constant 0 : index
    %c0_66 = arith.constant 0 : index
    %133 = vector.load %arg10[%c0_64, %c0_65, %c0_66] : memref<2x128x256xf32, #tpu.memory_space<vmem>>, vector<1x128x256xf32>
    %134 = vector.shape_cast %133 : vector<1x128x256xf32> to vector<128x256xf32>
    %cst_67 = arith.constant dense<0.000000e+00> : vector<8x256xf32>
    %135 = tpu.matmul %132, %134, %cst_67 {dimension_numbers = #tpu.dot_dimension_numbers<[1], [0], [0], [1], [0, 0, 1, 1], [], []>} : vector<8x128xf32>, vector<128x256xf32>, vector<8x256xf32> -> vector<8x256xf32>
    %c0_68 = arith.constant 0 : index
    %c0_69 = arith.constant 0 : index
    %c0_70 = arith.constant 0 : index
    %136 = vector.load %arg11[%c0_68, %c0_69, %c0_70] : memref<2x1x256xf32, #tpu.memory_space<vmem>>, vector<1x1x256xf32>
    %137 = vector.shape_cast %136 : vector<1x1x256xf32> to vector<1x256xf32>
    %138 = vector.broadcast %137 : vector<1x256xf32> to vector<8x256xf32>
    %139 = arith.addf %135, %138 : vector<8x256xf32>
    %cst_71 = arith.constant 0.000000e+00 : f32
    %140 = vector.broadcast %cst_71 : f32 to vector<8x256xf32>
    %141 = arith.maximumf %139, %140 : vector<8x256xf32>
    %c0_72 = arith.constant 0 : index
    %c0_73 = arith.constant 0 : index
    %c0_74 = arith.constant 0 : index
    %142 = vector.load %arg12[%c0_72, %c0_73, %c0_74] : memref<2x256x128xf32, #tpu.memory_space<vmem>>, vector<1x256x128xf32>
    %143 = vector.shape_cast %142 : vector<1x256x128xf32> to vector<256x128xf32>
    %cst_75 = arith.constant dense<0.000000e+00> : vector<8x128xf32>
    %144 = tpu.matmul %141, %143, %cst_75 {dimension_numbers = #tpu.dot_dimension_numbers<[1], [0], [0], [1], [0, 0, 1, 1], [], []>} : vector<8x256xf32>, vector<256x128xf32>, vector<8x128xf32> -> vector<8x128xf32>
    %c0_76 = arith.constant 0 : index
    %c0_77 = arith.constant 0 : index
    %c0_78 = arith.constant 0 : index
    %145 = vector.load %arg13[%c0_76, %c0_77, %c0_78] : memref<2x1x128xf32, #tpu.memory_space<vmem>>, vector<1x1x128xf32>
    %146 = vector.shape_cast %145 : vector<1x1x128xf32> to vector<1x128xf32>
    %147 = vector.broadcast %146 : vector<1x128xf32> to vector<8x128xf32>
    %148 = arith.addf %144, %147 : vector<8x128xf32>
    %149 = arith.addf %132, %148 : vector<8x128xf32>
    %c0_79 = arith.constant 0 : index
    %c0_80 = arith.constant 0 : index
    %c0_81 = arith.constant 0 : index
    %150 = vector.load %arg16[%c0_79, %c0_80, %c0_81] : memref<2x1x128xf32, #tpu.memory_space<vmem>>, vector<1x1x128xf32>
    %151 = vector.shape_cast %150 : vector<1x1x128xf32> to vector<1x128xf32>
    %c0_82 = arith.constant 0 : index
    %c0_83 = arith.constant 0 : index
    %c0_84 = arith.constant 0 : index
    %152 = vector.load %arg17[%c0_82, %c0_83, %c0_84] : memref<2x1x128xf32, #tpu.memory_space<vmem>>, vector<1x1x128xf32>
    %153 = vector.shape_cast %152 : vector<1x1x128xf32> to vector<1x128xf32>
    %cst_85 = arith.constant dense<0.000000e+00> : vector<8xf32>
    %154 = vector.multi_reduction <add>, %149, %cst_85 [1] : vector<8x128xf32> to vector<8xf32>
    %155 = vector.shape_cast %154 : vector<8xf32> to vector<8x1xf32>
    %cst_86 = arith.constant 1.280000e+02 : f32
    %156 = vector.broadcast %cst_86 : f32 to vector<8x1xf32>
    %157 = arith.divf %155, %156 : vector<8x1xf32>
    %158 = vector.broadcast %157 : vector<8x1xf32> to vector<8x128xf32>
    %159 = arith.subf %149, %158 : vector<8x128xf32>
    %160 = arith.mulf %159, %159 : vector<8x128xf32>
    %cst_87 = arith.constant dense<0.000000e+00> : vector<8xf32>
    %161 = vector.multi_reduction <add>, %160, %cst_87 [1] : vector<8x128xf32> to vector<8xf32>
    %162 = vector.shape_cast %161 : vector<8xf32> to vector<8x1xf32>
    %cst_88 = arith.constant 1.280000e+02 : f32
    %163 = vector.broadcast %cst_88 : f32 to vector<8x1xf32>
    %164 = arith.divf %162, %163 : vector<8x1xf32>
    %165 = vector.broadcast %157 : vector<8x1xf32> to vector<8x128xf32>
    %166 = arith.subf %149, %165 : vector<8x128xf32>
    %cst_89 = arith.constant 9.99999974E-6 : f32
    %167 = vector.broadcast %cst_89 : f32 to vector<8x1xf32>
    %168 = arith.addf %164, %167 : vector<8x1xf32>
    %169 = math.rsqrt %168 : vector<8x1xf32>
    %170 = vector.broadcast %169 : vector<8x1xf32> to vector<8x128xf32>
    %171 = arith.mulf %166, %170 : vector<8x128xf32>
    %172 = vector.broadcast %151 : vector<1x128xf32> to vector<8x128xf32>
    %173 = arith.mulf %171, %172 : vector<8x128xf32>
    %174 = vector.broadcast %153 : vector<1x128xf32> to vector<8x128xf32>
    %175 = arith.addf %173, %174 : vector<8x128xf32>
    %c1 = arith.constant 1 : index
    %c0_90 = arith.constant 0 : index
    %c0_91 = arith.constant 0 : index
    %176 = vector.load %arg2[%c1, %c0_90, %c0_91] : memref<2x128x128xf32, #tpu.memory_space<vmem>>, vector<1x128x128xf32>
    %177 = vector.shape_cast %176 : vector<1x128x128xf32> to vector<128x128xf32>
    %c1_92 = arith.constant 1 : index
    %c0_93 = arith.constant 0 : index
    %c0_94 = arith.constant 0 : index
    %178 = vector.load %arg3[%c1_92, %c0_93, %c0_94] : memref<2x128x128xf32, #tpu.memory_space<vmem>>, vector<1x128x128xf32>
    %179 = vector.shape_cast %178 : vector<1x128x128xf32> to vector<128x128xf32>
    %c1_95 = arith.constant 1 : index
    %c0_96 = arith.constant 0 : index
    %c0_97 = arith.constant 0 : index
    %180 = vector.load %arg4[%c1_95, %c0_96, %c0_97] : memref<2x128x128xf32, #tpu.memory_space<vmem>>, vector<1x128x128xf32>
    %181 = vector.shape_cast %180 : vector<1x128x128xf32> to vector<128x128xf32>
    %c1_98 = arith.constant 1 : index
    %c0_99 = arith.constant 0 : index
    %c0_100 = arith.constant 0 : index
    %182 = vector.load %arg5[%c1_98, %c0_99, %c0_100] : memref<2x128x128xf32, #tpu.memory_space<vmem>>, vector<1x128x128xf32>
    %183 = vector.shape_cast %182 : vector<1x128x128xf32> to vector<128x128xf32>
    %cst_101 = arith.constant dense<0.000000e+00> : vector<8x128xf32>
    %184 = tpu.matmul %175, %177, %cst_101 {dimension_numbers = #tpu.dot_dimension_numbers<[1], [0], [0], [1], [0, 0, 1, 1], [], []>} : vector<8x128xf32>, vector<128x128xf32>, vector<8x128xf32> -> vector<8x128xf32>
    %c1_102 = arith.constant 1 : index
    %c0_103 = arith.constant 0 : index
    %c0_104 = arith.constant 0 : index
    %185 = vector.load %arg6[%c1_102, %c0_103, %c0_104] : memref<2x1x128xf32, #tpu.memory_space<vmem>>, vector<1x1x128xf32>
    %186 = vector.shape_cast %185 : vector<1x1x128xf32> to vector<1x128xf32>
    %187 = vector.broadcast %186 : vector<1x128xf32> to vector<8x128xf32>
    %188 = arith.addf %184, %187 : vector<8x128xf32>
    %cst_105 = arith.constant dense<0.000000e+00> : vector<8x128xf32>
    %189 = tpu.matmul %175, %179, %cst_105 {dimension_numbers = #tpu.dot_dimension_numbers<[1], [0], [0], [1], [0, 0, 1, 1], [], []>} : vector<8x128xf32>, vector<128x128xf32>, vector<8x128xf32> -> vector<8x128xf32>
    %c1_106 = arith.constant 1 : index
    %c0_107 = arith.constant 0 : index
    %c0_108 = arith.constant 0 : index
    %190 = vector.load %arg7[%c1_106, %c0_107, %c0_108] : memref<2x1x128xf32, #tpu.memory_space<vmem>>, vector<1x1x128xf32>
    %191 = vector.shape_cast %190 : vector<1x1x128xf32> to vector<1x128xf32>
    %192 = vector.broadcast %191 : vector<1x128xf32> to vector<8x128xf32>
    %193 = arith.addf %189, %192 : vector<8x128xf32>
    %cst_109 = arith.constant dense<0.000000e+00> : vector<8x128xf32>
    %194 = tpu.matmul %175, %181, %cst_109 {dimension_numbers = #tpu.dot_dimension_numbers<[1], [0], [0], [1], [0, 0, 1, 1], [], []>} : vector<8x128xf32>, vector<128x128xf32>, vector<8x128xf32> -> vector<8x128xf32>
    %c1_110 = arith.constant 1 : index
    %c0_111 = arith.constant 0 : index
    %c0_112 = arith.constant 0 : index
    %195 = vector.load %arg8[%c1_110, %c0_111, %c0_112] : memref<2x1x128xf32, #tpu.memory_space<vmem>>, vector<1x1x128xf32>
    %196 = vector.shape_cast %195 : vector<1x1x128xf32> to vector<1x128xf32>
    %197 = vector.broadcast %196 : vector<1x128xf32> to vector<8x128xf32>
    %198 = arith.addf %194, %197 : vector<8x128xf32>
    %cst_113 = arith.constant 0.000000e+00 : f32
    %199 = vector.broadcast %cst_113 : f32 to vector<8x128xf32>
    %200 = vector.extract_strided_slice %188 {offsets = [0, 0], sizes = [8, 32], strides = [1, 1]} : vector<8x128xf32> to vector<8x32xf32>
    %201 = vector.extract_strided_slice %193 {offsets = [0, 0], sizes = [8, 32], strides = [1, 1]} : vector<8x128xf32> to vector<8x32xf32>
    %202 = vector.extract_strided_slice %198 {offsets = [0, 0], sizes = [8, 32], strides = [1, 1]} : vector<8x128xf32> to vector<8x32xf32>
    %cst_114 = arith.constant dense<0.000000e+00> : vector<8x8xf32>
    %203 = tpu.matmul %200, %201, %cst_114 {dimension_numbers = #tpu.dot_dimension_numbers<[1], [1], [0], [0], [0, 0, 1, 0], [], []>} : vector<8x32xf32>, vector<8x32xf32>, vector<8x8xf32> -> vector<8x8xf32>
    %cst_115 = arith.constant 0.176776692 : f32
    %204 = vector.broadcast %cst_115 : f32 to vector<8x8xf32>
    %205 = arith.mulf %203, %204 : vector<8x8xf32>
    %cst_116 = arith.constant dense<0xFF800000> : vector<8xf32>
    %206 = vector.multi_reduction <maximumf>, %205, %cst_116 [1] : vector<8x8xf32> to vector<8xf32>
    %207 = vector.shape_cast %206 : vector<8xf32> to vector<8x1xf32>
    %208 = vector.broadcast %207 : vector<8x1xf32> to vector<8x8xf32>
    %209 = arith.subf %205, %208 : vector<8x8xf32>
    %210 = math.exp %209 : vector<8x8xf32>
    %cst_117 = arith.constant dense<0.000000e+00> : vector<8xf32>
    %211 = vector.multi_reduction <add>, %210, %cst_117 [1] : vector<8x8xf32> to vector<8xf32>
    %212 = vector.shape_cast %211 : vector<8xf32> to vector<8x1xf32>
    %213 = vector.broadcast %212 : vector<8x1xf32> to vector<8x8xf32>
    %214 = arith.divf %210, %213 : vector<8x8xf32>
    %cst_118 = arith.constant dense<0.000000e+00> : vector<8x32xf32>
    %215 = tpu.matmul %214, %202, %cst_118 {dimension_numbers = #tpu.dot_dimension_numbers<[1], [0], [0], [1], [0, 0, 1, 1], [], []>} : vector<8x8xf32>, vector<8x32xf32>, vector<8x32xf32> -> vector<8x32xf32>
    %216 = vector.extract_strided_slice %183 {offsets = [0, 0], sizes = [32, 128], strides = [1, 1]} : vector<128x128xf32> to vector<32x128xf32>
    %cst_119 = arith.constant dense<0.000000e+00> : vector<8x128xf32>
    %217 = tpu.matmul %215, %216, %cst_119 {dimension_numbers = #tpu.dot_dimension_numbers<[1], [0], [0], [1], [0, 0, 1, 1], [], []>} : vector<8x32xf32>, vector<32x128xf32>, vector<8x128xf32> -> vector<8x128xf32>
    %218 = arith.addf %199, %217 : vector<8x128xf32>
    %219 = vector.extract_strided_slice %188 {offsets = [0, 32], sizes = [8, 32], strides = [1, 1]} : vector<8x128xf32> to vector<8x32xf32>
    %220 = vector.extract_strided_slice %193 {offsets = [0, 32], sizes = [8, 32], strides = [1, 1]} : vector<8x128xf32> to vector<8x32xf32>
    %221 = vector.extract_strided_slice %198 {offsets = [0, 32], sizes = [8, 32], strides = [1, 1]} : vector<8x128xf32> to vector<8x32xf32>
    %cst_120 = arith.constant dense<0.000000e+00> : vector<8x8xf32>
    %222 = tpu.matmul %219, %220, %cst_120 {dimension_numbers = #tpu.dot_dimension_numbers<[1], [1], [0], [0], [0, 0, 1, 0], [], []>} : vector<8x32xf32>, vector<8x32xf32>, vector<8x8xf32> -> vector<8x8xf32>
    %cst_121 = arith.constant 0.176776692 : f32
    %223 = vector.broadcast %cst_121 : f32 to vector<8x8xf32>
    %224 = arith.mulf %222, %223 : vector<8x8xf32>
    %cst_122 = arith.constant dense<0xFF800000> : vector<8xf32>
    %225 = vector.multi_reduction <maximumf>, %224, %cst_122 [1] : vector<8x8xf32> to vector<8xf32>
    %226 = vector.shape_cast %225 : vector<8xf32> to vector<8x1xf32>
    %227 = vector.broadcast %226 : vector<8x1xf32> to vector<8x8xf32>
    %228 = arith.subf %224, %227 : vector<8x8xf32>
    %229 = math.exp %228 : vector<8x8xf32>
    %cst_123 = arith.constant dense<0.000000e+00> : vector<8xf32>
    %230 = vector.multi_reduction <add>, %229, %cst_123 [1] : vector<8x8xf32> to vector<8xf32>
    %231 = vector.shape_cast %230 : vector<8xf32> to vector<8x1xf32>
    %232 = vector.broadcast %231 : vector<8x1xf32> to vector<8x8xf32>
    %233 = arith.divf %229, %232 : vector<8x8xf32>
    %cst_124 = arith.constant dense<0.000000e+00> : vector<8x32xf32>
    %234 = tpu.matmul %233, %221, %cst_124 {dimension_numbers = #tpu.dot_dimension_numbers<[1], [0], [0], [1], [0, 0, 1, 1], [], []>} : vector<8x8xf32>, vector<8x32xf32>, vector<8x32xf32> -> vector<8x32xf32>
    %235 = vector.extract_strided_slice %183 {offsets = [32, 0], sizes = [32, 128], strides = [1, 1]} : vector<128x128xf32> to vector<32x128xf32>
    %cst_125 = arith.constant dense<0.000000e+00> : vector<8x128xf32>
    %236 = tpu.matmul %234, %235, %cst_125 {dimension_numbers = #tpu.dot_dimension_numbers<[1], [0], [0], [1], [0, 0, 1, 1], [], []>} : vector<8x32xf32>, vector<32x128xf32>, vector<8x128xf32> -> vector<8x128xf32>
    %237 = arith.addf %218, %236 : vector<8x128xf32>
    %238 = vector.extract_strided_slice %188 {offsets = [0, 64], sizes = [8, 32], strides = [1, 1]} : vector<8x128xf32> to vector<8x32xf32>
    %239 = vector.extract_strided_slice %193 {offsets = [0, 64], sizes = [8, 32], strides = [1, 1]} : vector<8x128xf32> to vector<8x32xf32>
    %240 = vector.extract_strided_slice %198 {offsets = [0, 64], sizes = [8, 32], strides = [1, 1]} : vector<8x128xf32> to vector<8x32xf32>
    %cst_126 = arith.constant dense<0.000000e+00> : vector<8x8xf32>
    %241 = tpu.matmul %238, %239, %cst_126 {dimension_numbers = #tpu.dot_dimension_numbers<[1], [1], [0], [0], [0, 0, 1, 0], [], []>} : vector<8x32xf32>, vector<8x32xf32>, vector<8x8xf32> -> vector<8x8xf32>
    %cst_127 = arith.constant 0.176776692 : f32
    %242 = vector.broadcast %cst_127 : f32 to vector<8x8xf32>
    %243 = arith.mulf %241, %242 : vector<8x8xf32>
    %cst_128 = arith.constant dense<0xFF800000> : vector<8xf32>
    %244 = vector.multi_reduction <maximumf>, %243, %cst_128 [1] : vector<8x8xf32> to vector<8xf32>
    %245 = vector.shape_cast %244 : vector<8xf32> to vector<8x1xf32>
    %246 = vector.broadcast %245 : vector<8x1xf32> to vector<8x8xf32>
    %247 = arith.subf %243, %246 : vector<8x8xf32>
    %248 = math.exp %247 : vector<8x8xf32>
    %cst_129 = arith.constant dense<0.000000e+00> : vector<8xf32>
    %249 = vector.multi_reduction <add>, %248, %cst_129 [1] : vector<8x8xf32> to vector<8xf32>
    %250 = vector.shape_cast %249 : vector<8xf32> to vector<8x1xf32>
    %251 = vector.broadcast %250 : vector<8x1xf32> to vector<8x8xf32>
    %252 = arith.divf %248, %251 : vector<8x8xf32>
    %cst_130 = arith.constant dense<0.000000e+00> : vector<8x32xf32>
    %253 = tpu.matmul %252, %240, %cst_130 {dimension_numbers = #tpu.dot_dimension_numbers<[1], [0], [0], [1], [0, 0, 1, 1], [], []>} : vector<8x8xf32>, vector<8x32xf32>, vector<8x32xf32> -> vector<8x32xf32>
    %254 = vector.extract_strided_slice %183 {offsets = [64, 0], sizes = [32, 128], strides = [1, 1]} : vector<128x128xf32> to vector<32x128xf32>
    %cst_131 = arith.constant dense<0.000000e+00> : vector<8x128xf32>
    %255 = tpu.matmul %253, %254, %cst_131 {dimension_numbers = #tpu.dot_dimension_numbers<[1], [0], [0], [1], [0, 0, 1, 1], [], []>} : vector<8x32xf32>, vector<32x128xf32>, vector<8x128xf32> -> vector<8x128xf32>
    %256 = arith.addf %237, %255 : vector<8x128xf32>
    %257 = vector.extract_strided_slice %188 {offsets = [0, 96], sizes = [8, 32], strides = [1, 1]} : vector<8x128xf32> to vector<8x32xf32>
    %258 = vector.extract_strided_slice %193 {offsets = [0, 96], sizes = [8, 32], strides = [1, 1]} : vector<8x128xf32> to vector<8x32xf32>
    %259 = vector.extract_strided_slice %198 {offsets = [0, 96], sizes = [8, 32], strides = [1, 1]} : vector<8x128xf32> to vector<8x32xf32>
    %cst_132 = arith.constant dense<0.000000e+00> : vector<8x8xf32>
    %260 = tpu.matmul %257, %258, %cst_132 {dimension_numbers = #tpu.dot_dimension_numbers<[1], [1], [0], [0], [0, 0, 1, 0], [], []>} : vector<8x32xf32>, vector<8x32xf32>, vector<8x8xf32> -> vector<8x8xf32>
    %cst_133 = arith.constant 0.176776692 : f32
    %261 = vector.broadcast %cst_133 : f32 to vector<8x8xf32>
    %262 = arith.mulf %260, %261 : vector<8x8xf32>
    %cst_134 = arith.constant dense<0xFF800000> : vector<8xf32>
    %263 = vector.multi_reduction <maximumf>, %262, %cst_134 [1] : vector<8x8xf32> to vector<8xf32>
    %264 = vector.shape_cast %263 : vector<8xf32> to vector<8x1xf32>
    %265 = vector.broadcast %264 : vector<8x1xf32> to vector<8x8xf32>
    %266 = arith.subf %262, %265 : vector<8x8xf32>
    %267 = math.exp %266 : vector<8x8xf32>
    %cst_135 = arith.constant dense<0.000000e+00> : vector<8xf32>
    %268 = vector.multi_reduction <add>, %267, %cst_135 [1] : vector<8x8xf32> to vector<8xf32>
    %269 = vector.shape_cast %268 : vector<8xf32> to vector<8x1xf32>
    %270 = vector.broadcast %269 : vector<8x1xf32> to vector<8x8xf32>
    %271 = arith.divf %267, %270 : vector<8x8xf32>
    %cst_136 = arith.constant dense<0.000000e+00> : vector<8x32xf32>
    %272 = tpu.matmul %271, %259, %cst_136 {dimension_numbers = #tpu.dot_dimension_numbers<[1], [0], [0], [1], [0, 0, 1, 1], [], []>} : vector<8x8xf32>, vector<8x32xf32>, vector<8x32xf32> -> vector<8x32xf32>
    %273 = vector.extract_strided_slice %183 {offsets = [96, 0], sizes = [32, 128], strides = [1, 1]} : vector<128x128xf32> to vector<32x128xf32>
    %cst_137 = arith.constant dense<0.000000e+00> : vector<8x128xf32>
    %274 = tpu.matmul %272, %273, %cst_137 {dimension_numbers = #tpu.dot_dimension_numbers<[1], [0], [0], [1], [0, 0, 1, 1], [], []>} : vector<8x32xf32>, vector<32x128xf32>, vector<8x128xf32> -> vector<8x128xf32>
    %275 = arith.addf %256, %274 : vector<8x128xf32>
    %c1_138 = arith.constant 1 : index
    %c0_139 = arith.constant 0 : index
    %c0_140 = arith.constant 0 : index
    %276 = vector.load %arg9[%c1_138, %c0_139, %c0_140] : memref<2x1x128xf32, #tpu.memory_space<vmem>>, vector<1x1x128xf32>
    %277 = vector.shape_cast %276 : vector<1x1x128xf32> to vector<1x128xf32>
    %278 = vector.broadcast %277 : vector<1x128xf32> to vector<8x128xf32>
    %279 = arith.addf %275, %278 : vector<8x128xf32>
    %280 = arith.addf %175, %279 : vector<8x128xf32>
    %c1_141 = arith.constant 1 : index
    %c0_142 = arith.constant 0 : index
    %c0_143 = arith.constant 0 : index
    %281 = vector.load %arg14[%c1_141, %c0_142, %c0_143] : memref<2x1x128xf32, #tpu.memory_space<vmem>>, vector<1x1x128xf32>
    %282 = vector.shape_cast %281 : vector<1x1x128xf32> to vector<1x128xf32>
    %c1_144 = arith.constant 1 : index
    %c0_145 = arith.constant 0 : index
    %c0_146 = arith.constant 0 : index
    %283 = vector.load %arg15[%c1_144, %c0_145, %c0_146] : memref<2x1x128xf32, #tpu.memory_space<vmem>>, vector<1x1x128xf32>
    %284 = vector.shape_cast %283 : vector<1x1x128xf32> to vector<1x128xf32>
    %cst_147 = arith.constant dense<0.000000e+00> : vector<8xf32>
    %285 = vector.multi_reduction <add>, %280, %cst_147 [1] : vector<8x128xf32> to vector<8xf32>
    %286 = vector.shape_cast %285 : vector<8xf32> to vector<8x1xf32>
    %cst_148 = arith.constant 1.280000e+02 : f32
    %287 = vector.broadcast %cst_148 : f32 to vector<8x1xf32>
    %288 = arith.divf %286, %287 : vector<8x1xf32>
    %289 = vector.broadcast %288 : vector<8x1xf32> to vector<8x128xf32>
    %290 = arith.subf %280, %289 : vector<8x128xf32>
    %291 = arith.mulf %290, %290 : vector<8x128xf32>
    %cst_149 = arith.constant dense<0.000000e+00> : vector<8xf32>
    %292 = vector.multi_reduction <add>, %291, %cst_149 [1] : vector<8x128xf32> to vector<8xf32>
    %293 = vector.shape_cast %292 : vector<8xf32> to vector<8x1xf32>
    %cst_150 = arith.constant 1.280000e+02 : f32
    %294 = vector.broadcast %cst_150 : f32 to vector<8x1xf32>
    %295 = arith.divf %293, %294 : vector<8x1xf32>
    %296 = vector.broadcast %288 : vector<8x1xf32> to vector<8x128xf32>
    %297 = arith.subf %280, %296 : vector<8x128xf32>
    %cst_151 = arith.constant 9.99999974E-6 : f32
    %298 = vector.broadcast %cst_151 : f32 to vector<8x1xf32>
    %299 = arith.addf %295, %298 : vector<8x1xf32>
    %300 = math.rsqrt %299 : vector<8x1xf32>
    %301 = vector.broadcast %300 : vector<8x1xf32> to vector<8x128xf32>
    %302 = arith.mulf %297, %301 : vector<8x128xf32>
    %303 = vector.broadcast %282 : vector<1x128xf32> to vector<8x128xf32>
    %304 = arith.mulf %302, %303 : vector<8x128xf32>
    %305 = vector.broadcast %284 : vector<1x128xf32> to vector<8x128xf32>
    %306 = arith.addf %304, %305 : vector<8x128xf32>
    %c1_152 = arith.constant 1 : index
    %c0_153 = arith.constant 0 : index
    %c0_154 = arith.constant 0 : index
    %307 = vector.load %arg10[%c1_152, %c0_153, %c0_154] : memref<2x128x256xf32, #tpu.memory_space<vmem>>, vector<1x128x256xf32>
    %308 = vector.shape_cast %307 : vector<1x128x256xf32> to vector<128x256xf32>
    %cst_155 = arith.constant dense<0.000000e+00> : vector<8x256xf32>
    %309 = tpu.matmul %306, %308, %cst_155 {dimension_numbers = #tpu.dot_dimension_numbers<[1], [0], [0], [1], [0, 0, 1, 1], [], []>} : vector<8x128xf32>, vector<128x256xf32>, vector<8x256xf32> -> vector<8x256xf32>
    %c1_156 = arith.constant 1 : index
    %c0_157 = arith.constant 0 : index
    %c0_158 = arith.constant 0 : index
    %310 = vector.load %arg11[%c1_156, %c0_157, %c0_158] : memref<2x1x256xf32, #tpu.memory_space<vmem>>, vector<1x1x256xf32>
    %311 = vector.shape_cast %310 : vector<1x1x256xf32> to vector<1x256xf32>
    %312 = vector.broadcast %311 : vector<1x256xf32> to vector<8x256xf32>
    %313 = arith.addf %309, %312 : vector<8x256xf32>
    %cst_159 = arith.constant 0.000000e+00 : f32
    %314 = vector.broadcast %cst_159 : f32 to vector<8x256xf32>
    %315 = arith.maximumf %313, %314 : vector<8x256xf32>
    %c1_160 = arith.constant 1 : index
    %c0_161 = arith.constant 0 : index
    %c0_162 = arith.constant 0 : index
    %316 = vector.load %arg12[%c1_160, %c0_161, %c0_162] : memref<2x256x128xf32, #tpu.memory_space<vmem>>, vector<1x256x128xf32>
    %317 = vector.shape_cast %316 : vector<1x256x128xf32> to vector<256x128xf32>
    %cst_163 = arith.constant dense<0.000000e+00> : vector<8x128xf32>
    %318 = tpu.matmul %315, %317, %cst_163 {dimension_numbers = #tpu.dot_dimension_numbers<[1], [0], [0], [1], [0, 0, 1, 1], [], []>} : vector<8x256xf32>, vector<256x128xf32>, vector<8x128xf32> -> vector<8x128xf32>
    %c1_164 = arith.constant 1 : index
    %c0_165 = arith.constant 0 : index
    %c0_166 = arith.constant 0 : index
    %319 = vector.load %arg13[%c1_164, %c0_165, %c0_166] : memref<2x1x128xf32, #tpu.memory_space<vmem>>, vector<1x1x128xf32>
    %320 = vector.shape_cast %319 : vector<1x1x128xf32> to vector<1x128xf32>
    %321 = vector.broadcast %320 : vector<1x128xf32> to vector<8x128xf32>
    %322 = arith.addf %318, %321 : vector<8x128xf32>
    %323 = arith.addf %306, %322 : vector<8x128xf32>
    %c1_167 = arith.constant 1 : index
    %c0_168 = arith.constant 0 : index
    %c0_169 = arith.constant 0 : index
    %324 = vector.load %arg16[%c1_167, %c0_168, %c0_169] : memref<2x1x128xf32, #tpu.memory_space<vmem>>, vector<1x1x128xf32>
    %325 = vector.shape_cast %324 : vector<1x1x128xf32> to vector<1x128xf32>
    %c1_170 = arith.constant 1 : index
    %c0_171 = arith.constant 0 : index
    %c0_172 = arith.constant 0 : index
    %326 = vector.load %arg17[%c1_170, %c0_171, %c0_172] : memref<2x1x128xf32, #tpu.memory_space<vmem>>, vector<1x1x128xf32>
    %327 = vector.shape_cast %326 : vector<1x1x128xf32> to vector<1x128xf32>
    %cst_173 = arith.constant dense<0.000000e+00> : vector<8xf32>
    %328 = vector.multi_reduction <add>, %323, %cst_173 [1] : vector<8x128xf32> to vector<8xf32>
    %329 = vector.shape_cast %328 : vector<8xf32> to vector<8x1xf32>
    %cst_174 = arith.constant 1.280000e+02 : f32
    %330 = vector.broadcast %cst_174 : f32 to vector<8x1xf32>
    %331 = arith.divf %329, %330 : vector<8x1xf32>
    %332 = vector.broadcast %331 : vector<8x1xf32> to vector<8x128xf32>
    %333 = arith.subf %323, %332 : vector<8x128xf32>
    %334 = arith.mulf %333, %333 : vector<8x128xf32>
    %cst_175 = arith.constant dense<0.000000e+00> : vector<8xf32>
    %335 = vector.multi_reduction <add>, %334, %cst_175 [1] : vector<8x128xf32> to vector<8xf32>
    %336 = vector.shape_cast %335 : vector<8xf32> to vector<8x1xf32>
    %cst_176 = arith.constant 1.280000e+02 : f32
    %337 = vector.broadcast %cst_176 : f32 to vector<8x1xf32>
    %338 = arith.divf %336, %337 : vector<8x1xf32>
    %339 = vector.broadcast %331 : vector<8x1xf32> to vector<8x128xf32>
    %340 = arith.subf %323, %339 : vector<8x128xf32>
    %cst_177 = arith.constant 9.99999974E-6 : f32
    %341 = vector.broadcast %cst_177 : f32 to vector<8x1xf32>
    %342 = arith.addf %338, %341 : vector<8x1xf32>
    %343 = math.rsqrt %342 : vector<8x1xf32>
    %344 = vector.broadcast %343 : vector<8x1xf32> to vector<8x128xf32>
    %345 = arith.mulf %340, %344 : vector<8x128xf32>
    %346 = vector.broadcast %325 : vector<1x128xf32> to vector<8x128xf32>
    %347 = arith.mulf %345, %346 : vector<8x128xf32>
    %348 = vector.broadcast %327 : vector<1x128xf32> to vector<8x128xf32>
    %349 = arith.addf %347, %348 : vector<8x128xf32>
    %c0_178 = arith.constant 0 : index
    %c0_179 = arith.constant 0 : index
    %350 = vector.load %arg18[%c0_178, %c0_179] : memref<1x128xf32, #tpu.memory_space<vmem>>, vector<1x128xf32>
    %c0_180 = arith.constant 0 : index
    %c0_181 = arith.constant 0 : index
    %351 = vector.load %arg19[%c0_180, %c0_181] : memref<1x128xf32, #tpu.memory_space<vmem>>, vector<1x128xf32>
    %cst_182 = arith.constant dense<0.000000e+00> : vector<8xf32>
    %352 = vector.multi_reduction <add>, %349, %cst_182 [1] : vector<8x128xf32> to vector<8xf32>
    %353 = vector.shape_cast %352 : vector<8xf32> to vector<8x1xf32>
    %cst_183 = arith.constant 1.280000e+02 : f32
    %354 = vector.broadcast %cst_183 : f32 to vector<8x1xf32>
    %355 = arith.divf %353, %354 : vector<8x1xf32>
    %356 = vector.broadcast %355 : vector<8x1xf32> to vector<8x128xf32>
    %357 = arith.subf %349, %356 : vector<8x128xf32>
    %358 = arith.mulf %357, %357 : vector<8x128xf32>
    %cst_184 = arith.constant dense<0.000000e+00> : vector<8xf32>
    %359 = vector.multi_reduction <add>, %358, %cst_184 [1] : vector<8x128xf32> to vector<8xf32>
    %360 = vector.shape_cast %359 : vector<8xf32> to vector<8x1xf32>
    %cst_185 = arith.constant 1.280000e+02 : f32
    %361 = vector.broadcast %cst_185 : f32 to vector<8x1xf32>
    %362 = arith.divf %360, %361 : vector<8x1xf32>
    %363 = vector.broadcast %355 : vector<8x1xf32> to vector<8x128xf32>
    %364 = arith.subf %349, %363 : vector<8x128xf32>
    %cst_186 = arith.constant 9.99999974E-6 : f32
    %365 = vector.broadcast %cst_186 : f32 to vector<8x1xf32>
    %366 = arith.addf %362, %365 : vector<8x1xf32>
    %367 = math.rsqrt %366 : vector<8x1xf32>
    %368 = vector.broadcast %367 : vector<8x1xf32> to vector<8x128xf32>
    %369 = arith.mulf %364, %368 : vector<8x128xf32>
    %370 = vector.broadcast %350 : vector<1x128xf32> to vector<8x128xf32>
    %371 = arith.mulf %369, %370 : vector<8x128xf32>
    %372 = vector.broadcast %351 : vector<1x128xf32> to vector<8x128xf32>
    %373 = arith.addf %371, %372 : vector<8x128xf32>
    %c0_187 = arith.constant 0 : index
    %c0_188 = arith.constant 0 : index
    %c0_189 = arith.constant 0 : index
    %374 = vector.load %arg20[%c0_187, %c0_188, %c0_189] : memref<1x8x128xf32, #tpu.memory_space<vmem>>, vector<1x8x128xf32>
    %375 = vector.shape_cast %374 : vector<1x8x128xf32> to vector<8x128xf32>
    %376 = vector.shape_cast %373 : vector<8x128xf32> to vector<1x8x128xf32>
    tpu.vector_store %arg20[%c0_187, %c0_188, %c0_189], %376 {strides = array<i32>} : memref<1x8x128xf32, #tpu.memory_space<vmem>>, vector<1x8x128xf32>,
    return
  }
  func.func @transform_0(%arg0: i32) -> (i32, i32, i32) {
    %c0_i32 = arith.constant 0 : i32
    %c0_i32_0 = arith.constant 0 : i32
    %c0_i32_1 = arith.constant 0 : i32
    return %arg0, %c0_i32, %c0_i32_0 : i32, i32, i32
  }
  func.func @transform_1(%arg0: i32) -> (i32, i32, i32) {
    %c0_i32 = arith.constant 0 : i32
    %c0_i32_0 = arith.constant 0 : i32
    %c0_i32_1 = arith.constant 0 : i32
    %c0_i32_2 = arith.constant 0 : i32
    return %c0_i32, %c0_i32_0, %c0_i32_1 : i32, i32, i32
  }
  func.func @transform_2(%arg0: i32) -> (i32, i32, i32) {
    %c0_i32 = arith.constant 0 : i32
    %c0_i32_0 = arith.constant 0 : i32
    %c0_i32_1 = arith.constant 0 : i32
    %c0_i32_2 = arith.constant 0 : i32
    return %c0_i32, %c0_i32_0, %c0_i32_1 : i32, i32, i32
  }
  func.func @transform_3(%arg0: i32) -> (i32, i32, i32) {
    %c0_i32 = arith.constant 0 : i32
    %c0_i32_0 = arith.constant 0 : i32
    %c0_i32_1 = arith.constant 0 : i32
    %c0_i32_2 = arith.constant 0 : i32
    return %c0_i32, %c0_i32_0, %c0_i32_1 : i32, i32, i32
  }
  func.func @transform_4(%arg0: i32) -> (i32, i32, i32) {
    %c0_i32 = arith.constant 0 : i32
    %c0_i32_0 = arith.constant 0 : i32
    %c0_i32_1 = arith.constant 0 : i32
    %c0_i32_2 = arith.constant 0 : i32
    return %c0_i32, %c0_i32_0, %c0_i32_1 : i32, i32, i32
  }
  func.func @transform_5(%arg0: i32) -> (i32, i32, i32) {
    %c0_i32 = arith.constant 0 : i32
    %c0_i32_0 = arith.constant 0 : i32
    %c0_i32_1 = arith.constant 0 : i32
    %c0_i32_2 = arith.constant 0 : i32
    return %c0_i32, %c0_i32_0, %c0_i32_1 : i32, i32, i32
  }
  func.func @transform_6(%arg0: i32) -> (i32, i32, i32) {
    %c0_i32 = arith.constant 0 : i32
    %c0_i32_0 = arith.constant 0 : i32
    %c0_i32_1 = arith.constant 0 : i32
    %c0_i32_2 = arith.constant 0 : i32
    return %c0_i32, %c0_i32_0, %c0_i32_1 : i32, i32, i32
  }
  func.func @transform_7(%arg0: i32) -> (i32, i32, i32) {
    %c0_i32 = arith.constant 0 : i32
    %c0_i32_0 = arith.constant 0 : i32
    %c0_i32_1 = arith.constant 0 : i32
    %c0_i32_2 = arith.constant 0 : i32
    return %c0_i32, %c0_i32_0, %c0_i32_1 : i32, i32, i32
  }
  func.func @transform_8(%arg0: i32) -> (i32, i32, i32) {
    %c0_i32 = arith.constant 0 : i32
    %c0_i32_0 = arith.constant 0 : i32
    %c0_i32_1 = arith.constant 0 : i32
    %c0_i32_2 = arith.constant 0 : i32
    return %c0_i32, %c0_i32_0, %c0_i32_1 : i32, i32, i32
  }
  func.func @transform_9(%arg0: i32) -> (i32, i32, i32) {
    %c0_i32 = arith.constant 0 : i32
    %c0_i32_0 = arith.constant 0 : i32
    %c0_i32_1 = arith.constant 0 : i32
    %c0_i32_2 = arith.constant 0 : i32
    return %c0_i32, %c0_i32_0, %c0_i32_1 : i32, i32, i32
  }
  func.func @transform_10(%arg0: i32) -> (i32, i32, i32) {
    %c0_i32 = arith.constant 0 : i32
    %c0_i32_0 = arith.constant 0 : i32
    %c0_i32_1 = arith.constant 0 : i32
    %c0_i32_2 = arith.constant 0 : i32
    return %c0_i32, %c0_i32_0, %c0_i32_1 : i32, i32, i32
  }
  func.func @transform_11(%arg0: i32) -> (i32, i32, i32) {
    %c0_i32 = arith.constant 0 : i32
    %c0_i32_0 = arith.constant 0 : i32
    %c0_i32_1 = arith.constant 0 : i32
    %c0_i32_2 = arith.constant 0 : i32
    return %c0_i32, %c0_i32_0, %c0_i32_1 : i32, i32, i32
  }
  func.func @transform_12(%arg0: i32) -> (i32, i32, i32) {
    %c0_i32 = arith.constant 0 : i32
    %c0_i32_0 = arith.constant 0 : i32
    %c0_i32_1 = arith.constant 0 : i32
    %c0_i32_2 = arith.constant 0 : i32
    return %c0_i32, %c0_i32_0, %c0_i32_1 : i32, i32, i32
  }
  func.func @transform_13(%arg0: i32) -> (i32, i32, i32) {
    %c0_i32 = arith.constant 0 : i32
    %c0_i32_0 = arith.constant 0 : i32
    %c0_i32_1 = arith.constant 0 : i32
    %c0_i32_2 = arith.constant 0 : i32
    return %c0_i32, %c0_i32_0, %c0_i32_1 : i32, i32, i32
  }
  func.func @transform_14(%arg0: i32) -> (i32, i32, i32) {
    %c0_i32 = arith.constant 0 : i32
    %c0_i32_0 = arith.constant 0 : i32
    %c0_i32_1 = arith.constant 0 : i32
    %c0_i32_2 = arith.constant 0 : i32
    return %c0_i32, %c0_i32_0, %c0_i32_1 : i32, i32, i32
  }
  func.func @transform_15(%arg0: i32) -> (i32, i32, i32) {
    %c0_i32 = arith.constant 0 : i32
    %c0_i32_0 = arith.constant 0 : i32
    %c0_i32_1 = arith.constant 0 : i32
    %c0_i32_2 = arith.constant 0 : i32
    return %c0_i32, %c0_i32_0, %c0_i32_1 : i32, i32, i32
  }
  func.func @transform_16(%arg0: i32) -> (i32, i32, i32) {
    %c0_i32 = arith.constant 0 : i32
    %c0_i32_0 = arith.constant 0 : i32
    %c0_i32_1 = arith.constant 0 : i32
    %c0_i32_2 = arith.constant 0 : i32
    return %c0_i32, %c0_i32_0, %c0_i32_1 : i32, i32, i32
  }
  func.func @transform_17(%arg0: i32) -> (i32, i32) {
    %c0_i32 = arith.constant 0 : i32
    %c0_i32_0 = arith.constant 0 : i32
    %c0_i32_1 = arith.constant 0 : i32
    return %c0_i32, %c0_i32_0 : i32, i32
  }
  func.func @transform_18(%arg0: i32) -> (i32, i32) {
    %c0_i32 = arith.constant 0 : i32
    %c0_i32_0 = arith.constant 0 : i32
    %c0_i32_1 = arith.constant 0 : i32
    return %c0_i32, %c0_i32_0 : i32, i32
  }
  func.func @transform_19(%arg0: i32) -> (i32, i32, i32) {
    %c0_i32 = arith.constant 0 : i32
    %c0_i32_0 = arith.constant 0 : i32
    %c0_i32_1 = arith.constant 0 : i32
    return %arg0, %c0_i32, %c0_i32_0 : i32, i32, i32
  }
}

</mosaic_0001>

<llo_original>
// kernel: tpu_custom_call.1
$region0: #{tpu_custom_call.1}
  #allocation0 [shape = 'u32[]', space=smem, size = 0x4, offset = 0x4, fixed_abs, tag = 'smem constant byte address 0x4 - core index']
  #allocation1 [shape = 'u32[144,128]{1,0:T(1,128)}', space=vmem, size = 0x12000, scoped, tag = 'internal scratch']
  %s0 = inlined_call_operand.hbm [shape: f32[2,8,128], index: 0, kind: input, shape index: {}]
  %s1 = inlined_call_operand.hbm [shape: f32[2,128,128], index: 1, kind: input, shape index: {}]
  %s2 = inlined_call_operand.hbm [shape: f32[2,128,128], index: 2, kind: input, shape index: {}]
  %s3 = inlined_call_operand.hbm [shape: f32[2,128,128], index: 3, kind: input, shape index: {}]
  %s4 = inlined_call_operand.hbm [shape: f32[2,128,128], index: 4, kind: input, shape index: {}]
  %s5 = inlined_call_operand.vmem [shape: f32[2,1,128], index: 5, kind: input, shape index: {}]
  %s6 = inlined_call_operand.vmem [shape: f32[2,1,128], index: 6, kind: input, shape index: {}]
  %s7 = inlined_call_operand.vmem [shape: f32[2,1,128], index: 7, kind: input, shape index: {}]
  %s8 = inlined_call_operand.vmem [shape: f32[2,1,128], index: 8, kind: input, shape index: {}]
  %s9 = inlined_call_operand.hbm [shape: f32[2,128,256], index: 9, kind: input, shape index: {}]
  %s10 = inlined_call_operand.vmem [shape: f32[2,1,256], index: 10, kind: input, shape index: {}]
  %s11 = inlined_call_operand.hbm [shape: f32[2,256,128], index: 11, kind: input, shape index: {}]
  %s12 = inlined_call_operand.vmem [shape: f32[2,1,128], index: 12, kind: input, shape index: {}]
  %s13 = inlined_call_operand.vmem [shape: f32[2,1,128], index: 13, kind: input, shape index: {}]
  %s14 = inlined_call_operand.vmem [shape: f32[2,1,128], index: 14, kind: input, shape index: {}]
  %s15 = inlined_call_operand.vmem [shape: f32[2,1,128], index: 15, kind: input, shape index: {}]
  %s16 = inlined_call_operand.vmem [shape: f32[2,1,128], index: 16, kind: input, shape index: {}]
  %s17 = inlined_call_operand.vmem [shape: f32[1,128], index: 17, kind: input, shape index: {}]
  %s18 = inlined_call_operand.vmem [shape: f32[1,128], index: 18, kind: input, shape index: {}]
  %s19 = inlined_call_operand.hbm [shape: f32[2,8,128], index: 19, kind: output, shape index: {}]
  %s20 = sld [smem:[#allocation0]]
  $region137: #{tpu_custom_call.1} parent=0
    _
  %s22 = ssub.s32 1, %s20
  %s23 = scalar_select 0, %s22, %s20
  $region1: #{tpu_custom_call.1} parent=0
    #allocation2 [shape = 'u8[8192]{0}', space=vmem, size = 0x2000, scoped, tag = 'input window, operand 0']
    #allocation3 [shape = 's32[2]{0}', space=sflag, size = 0x8, scoped, tag = 'scoped memory for tpu_custom_call.1']
    #allocation4 [shape = 's32[2]{0}', space=sflag, size = 0x8, scoped, tag = 'scoped memory for tpu_custom_call.1']
    #allocation5 [shape = 'u8[131072]{0}', space=vmem, size = 0x20000, scoped, tag = 'input window, operand 1, single buffered']
    #allocation6 [shape = 's32[1]{0}', space=sflag, size = 0x4, scoped, tag = 'scoped memory for tpu_custom_call.1']
    #allocation7 [shape = 'u8[131072]{0}', space=vmem, size = 0x20000, scoped, tag = 'input window, operand 2, single buffered']
    #allocation8 [shape = 'u8[131072]{0}', space=vmem, size = 0x20000, scoped, tag = 'input window, operand 3, single buffered']
    #allocation9 [shape = 's32[1]{0}', space=sflag, size = 0x4, scoped, tag = 'scoped memory for tpu_custom_call.1']
    #allocation10 [shape = 'u8[131072]{0}', space=vmem, size = 0x20000, scoped, tag = 'input window, operand 4, single buffered']
    #allocation11 [shape = 'u8[262144]{0}', space=vmem, size = 0x40000, scoped, tag = 'input window, operand 9, single buffered']
    #allocation12 [shape = 's32[1]{0}', space=sflag, size = 0x4, scoped, tag = 'scoped memory for tpu_custom_call.1']
    #allocation13 [shape = 'u8[262144]{0}', space=vmem, size = 0x40000, scoped, tag = 'input window, operand 11, single buffered']
    #allocation14 [shape = 'u8[8192]{0}', space=vmem, size = 0x2000, scoped, tag = 'output window, operand 0']
    %24 = vsyncpa [#allocation3], 0
    %s25 = scalar_lea.sflag [#allocation3], 1
    %26 = vsyncpa %s25, 0
    %27 = vsyncpa [#allocation6], 0
    %28 = vsyncpa [#allocation9], 0
    %29 = vsyncpa [#allocation12], 0
    %30 = vsyncpa [#allocation4], 0
    %s31 = scalar_lea.sflag [#allocation4], 1
    %32 = vsyncpa %s31, 0
    loop: start=0, step=1, limit=4
    $region2: #{tpu_custom_call.1} parent=1 // loop_pre_header
      _
    $region3: #{tpu_custom_call.1} parent=1 // loop_header
      %s34 = sphi 0, %s38
      %p35 = scmp.ge.s32.totalorder %s34, 4
      %s44 = sphi 0, %s46
      %s47 = sphi 0, %s44
      %s48 = sphi 0, %s47
      %s64 = sphi 0, %s48
      %s68 = sphi 0, %s68
      %s70 = sphi 0, %s68
      %s71 = sphi 0, %s70
      %s85 = sphi 0, %s71
      %s89 = sphi 0, %s89
      %s91 = sphi 0, %s89
      %s92 = sphi 0, %s91
      %s106 = sphi 0, %s92
      %s110 = sphi 0, %s110
      %s112 = sphi 0, %s110
      %s113 = sphi 0, %s112
      %s127 = sphi 0, %s113
      %s131 = sphi 0, %s131
      %s133 = sphi 0, %s131
      %s134 = sphi 0, %s133
      %s148 = sphi 0, %s134
      %s152 = sphi 0, %s152
      %s154 = sphi 0, %s152
      %s155 = sphi 0, %s154
      %s169 = sphi 0, %s155
      %s173 = sphi 0, %s173
      %s175 = sphi 0, %s173
      %s176 = sphi 0, %s175
      %s190 = sphi 0, %s176
      %s194 = sphi 0, %s194
      %s196 = sphi 0, %s194
      %s197 = sphi 0, %s196
      %s211 = sphi 0, %s197
      %s215 = sphi 0, %s215
      %s217 = sphi 0, %s215
      %s218 = sphi 0, %s217
      %s232 = sphi 0, %s218
      %s236 = sphi 0, %s236
      %s238 = sphi 0, %s236
      %s239 = sphi 0, %s238
      %s253 = sphi 0, %s239
      %s257 = sphi 0, %s257
      %s259 = sphi 0, %s257
      %s260 = sphi 0, %s259
      %s274 = sphi 0, %s260
      %s278 = sphi 0, %s278
      %s280 = sphi 0, %s278
      %s281 = sphi 0, %s280
      %s295 = sphi 0, %s281
      %s299 = sphi 0, %s299
      %s301 = sphi 0, %s299
      %s302 = sphi 0, %s301
      %s316 = sphi 0, %s302
      %s320 = sphi 0, %s320
      %s322 = sphi 0, %s320
      %s323 = sphi 0, %s322
      %s337 = sphi 0, %s323
      %s341 = sphi 0, %s341
      %s343 = sphi 0, %s341
      %s344 = sphi 0, %s343
      %s358 = sphi 0, %s344
      %s362 = sphi 0, %s362
      %s364 = sphi 0, %s362
      %s365 = sphi 0, %s364
      %s379 = sphi 0, %s365
      %s383 = sphi 0, %s383
      %s385 = sphi 0, %s383
      %s386 = sphi 0, %s385
      %s400 = sphi 0, %s386
      %s404 = sphi 0, %s404
      %s406 = sphi 0, %s404
      %s407 = sphi 0, %s406
      %s421 = sphi 0, %s407
      %s425 = sphi 0, %s425
      %s427 = sphi 0, %s425
      %s428 = sphi 0, %s427
      %s442 = sphi 0, %s428
      %s448 = sphi 0, %s450
      %s451 = sphi 0, %s448
      %s452 = sphi 0, %s451
      %s468 = sphi 0, %s452
    $region4: #{tpu_custom_call.1} parent=1 // loop_header_branch
      %37 = sbr.rel (%p35) target = $region8
    $region5: #{tpu_custom_call.1} parent=1 // loop_body
      %s39 = ssub.s32 %s34, 1
      %s40 = ssub.s32 %s34, 2
      %s41 = sadd.s32 %s34, 1
      %s42 = ssub.s32 %s34, %s41
      %p43 = scmp.eq.s32.totalorder %s42, 0
      %s45 = sadd.s32 %s44, 1
      %s46 = scalar_select %p43, %s44, %s45
      %p49 = pneg %p43
      %p50 = scmp.eq.s32.totalorder %s34, 1
      %p51 = por %p49, %p50
      %p52 = scmp.ne.s32.totalorder %s44, %s47
      %p53 = scmp.eq.s32.totalorder %s34, 0
      %p54 = por %p52, %p53
      %p55 = scmp.ne.s32.totalorder %s44, %s47
      %p56 = scmp.eq.s32.totalorder %s39, 1
      %p57 = por %p55, %p56
      %p58 = scmp.ne.s32.totalorder %s47, %s48
      %p59 = scmp.eq.s32.totalorder %s39, 0
      %p60 = por %p58, %p59
      %p61 = scmp.ne.s32.totalorder %s47, %s48
      %p62 = scmp.eq.s32.totalorder %s40, 1
      %p63 = por %p61, %p62
      %p65 = scmp.ne.s32.totalorder %s48, %s64
      %p66 = scmp.eq.s32.totalorder %s40, 0
      %p67 = por %p65, %p66
      %s69 = sadd.s32 %s68, 1
      %p72 = scmp.eq.s32.totalorder %s34, 1
      %p73 = scmp.ne.s32.totalorder %s68, %s70
      %p74 = scmp.eq.s32.totalorder %s34, 0
      %p75 = por %p73, %p74
      %p76 = scmp.ne.s32.totalorder %s68, %s70
      %p77 = scmp.eq.s32.totalorder %s39, 1
      %p78 = por %p76, %p77
      %p79 = scmp.ne.s32.totalorder %s70, %s71
      %p80 = scmp.eq.s32.totalorder %s39, 0
      %p81 = por %p79, %p80
      %p82 = scmp.ne.s32.totalorder %s70, %s71
      %p83 = scmp.eq.s32.totalorder %s40, 1
      %p84 = por %p82, %p83
      %p86 = scmp.ne.s32.totalorder %s71, %s85
      %p87 = scmp.eq.s32.totalorder %s40, 0
      %p88 = por %p86, %p87
      %s90 = sadd.s32 %s89, 1
      %p93 = scmp.eq.s32.totalorder %s34, 1
      %p94 = scmp.ne.s32.totalorder %s89, %s91
      %p95 = scmp.eq.s32.totalorder %s34, 0
      %p96 = por %p94, %p95
      %p97 = scmp.ne.s32.totalorder %s89, %s91
      %p98 = scmp.eq.s32.totalorder %s39, 1
      %p99 = por %p97, %p98
      %p100 = scmp.ne.s32.totalorder %s91, %s92
      %p101 = scmp.eq.s32.totalorder %s39, 0
      %p102 = por %p100, %p101
      %p103 = scmp.ne.s32.totalorder %s91, %s92
      %p104 = scmp.eq.s32.totalorder %s40, 1
      %p105 = por %p103, %p104
      %p107 = scmp.ne.s32.totalorder %s92, %s106
      %p108 = scmp.eq.s32.totalorder %s40, 0
      %p109 = por %p107, %p108
      %s111 = sadd.s32 %s110, 1
      %p114 = scmp.eq.s32.totalorder %s34, 1
      %p115 = scmp.ne.s32.totalorder %s110, %s112
      %p116 = scmp.eq.s32.totalorder %s34, 0
      %p117 = por %p115, %p116
      %p118 = scmp.ne.s32.totalorder %s110, %s112
      %p119 = scmp.eq.s32.totalorder %s39, 1
      %p120 = por %p118, %p119
      %p121 = scmp.ne.s32.totalorder %s112, %s113
      %p122 = scmp.eq.s32.totalorder %s39, 0
      %p123 = por %p121, %p122
      %p124 = scmp.ne.s32.totalorder %s112, %s113
      %p125 = scmp.eq.s32.totalorder %s40, 1
      %p126 = por %p124, %p125
      %p128 = scmp.ne.s32.totalorder %s113, %s127
      %p129 = scmp.eq.s32.totalorder %s40, 0
      %p130 = por %p128, %p129
      %s132 = sadd.s32 %s131, 1
      %p135 = scmp.eq.s32.totalorder %s34, 1
      %p136 = scmp.ne.s32.totalorder %s131, %s133
      %p137 = scmp.eq.s32.totalorder %s34, 0
      %p138 = por %p136, %p137
      %p139 = scmp.ne.s32.totalorder %s131, %s133
      %p140 = scmp.eq.s32.totalorder %s39, 1
      %p141 = por %p139, %p140
      %p142 = scmp.ne.s32.totalorder %s133, %s134
      %p143 = scmp.eq.s32.totalorder %s39, 0
      %p144 = por %p142, %p143
      %p145 = scmp.ne.s32.totalorder %s133, %s134
      %p146 = scmp.eq.s32.totalorder %s40, 1
      %p147 = por %p145, %p146
      %p149 = scmp.ne.s32.totalorder %s134, %s148
      %p150 = scmp.eq.s32.totalorder %s40, 0
      %p151 = por %p149, %p150
      %s153 = sadd.s32 %s152, 1
      %p156 = scmp.eq.s32.totalorder %s34, 1
      %p157 = scmp.ne.s32.totalorder %s152, %s154
      %p158 = scmp.eq.s32.totalorder %s34, 0
      %p159 = por %p157, %p158
      %p160 = scmp.ne.s32.totalorder %s152, %s154
      %p161 = scmp.eq.s32.totalorder %s39, 1
      %p162 = por %p160, %p161
      %p163 = scmp.ne.s32.totalorder %s154, %s155
      %p164 = scmp.eq.s32.totalorder %s39, 0
      %p165 = por %p163, %p164
      %p166 = scmp.ne.s32.totalorder %s154, %s155
      %p167 = scmp.eq.s32.totalorder %s40, 1
      %p168 = por %p166, %p167
      %p170 = scmp.ne.s32.totalorder %s155, %s169
      %p171 = scmp.eq.s32.totalorder %s40, 0
      %p172 = por %p170, %p171
      %s174 = sadd.s32 %s173, 1
      %p177 = scmp.eq.s32.totalorder %s34, 1
      %p178 = scmp.ne.s32.totalorder %s173, %s175
      %p179 = scmp.eq.s32.totalorder %s34, 0
      %p180 = por %p178, %p179
      %p181 = scmp.ne.s32.totalorder %s173, %s175
      %p182 = scmp.eq.s32.totalorder %s39, 1
      %p183 = por %p181, %p182
      %p184 = scmp.ne.s32.totalorder %s175, %s176
      %p185 = scmp.eq.s32.totalorder %s39, 0
      %p186 = por %p184, %p185
      %p187 = scmp.ne.s32.totalorder %s175, %s176
      %p188 = scmp.eq.s32.totalorder %s40, 1
      %p189 = por %p187, %p188
      %p191 = scmp.ne.s32.totalorder %s176, %s190
      %p192 = scmp.eq.s32.totalorder %s40, 0
      %p193 = por %p191, %p192
      %s195 = sadd.s32 %s194, 1
      %p198 = scmp.eq.s32.totalorder %s34, 1
      %p199 = scmp.ne.s32.totalorder %s194, %s196
      %p200 = scmp.eq.s32.totalorder %s34, 0
      %p201 = por %p199, %p200
      %p202 = scmp.ne.s32.totalorder %s194, %s196
      %p203 = scmp.eq.s32.totalorder %s39, 1
      %p204 = por %p202, %p203
      %p205 = scmp.ne.s32.totalorder %s196, %s197
      %p206 = scmp.eq.s32.totalorder %s39, 0
      %p207 = por %p205, %p206
      %p208 = scmp.ne.s32.totalorder %s196, %s197
      %p209 = scmp.eq.s32.totalorder %s40, 1
      %p210 = por %p208, %p209
      %p212 = scmp.ne.s32.totalorder %s197, %s211
      %p213 = scmp.eq.s32.totalorder %s40, 0
      %p214 = por %p212, %p213
      %s216 = sadd.s32 %s215, 1
      %p219 = scmp.eq.s32.totalorder %s34, 1
      %p220 = scmp.ne.s32.totalorder %s215, %s217
      %p221 = scmp.eq.s32.totalorder %s34, 0
      %p222 = por %p220, %p221
      %p223 = scmp.ne.s32.totalorder %s215, %s217
      %p224 = scmp.eq.s32.totalorder %s39, 1
      %p225 = por %p223, %p224
      %p226 = scmp.ne.s32.totalorder %s217, %s218
      %p227 = scmp.eq.s32.totalorder %s39, 0
      %p228 = por %p226, %p227
      %p229 = scmp.ne.s32.totalorder %s217, %s218
      %p230 = scmp.eq.s32.totalorder %s40, 1
      %p231 = por %p229, %p230
      %p233 = scmp.ne.s32.totalorder %s218, %s232
      %p234 = scmp.eq.s32.totalorder %s40, 0
      %p235 = por %p233, %p234
      %s237 = sadd.s32 %s236, 1
      %p240 = scmp.eq.s32.totalorder %s34, 1
      %p241 = scmp.ne.s32.totalorder %s236, %s238
      %p242 = scmp.eq.s32.totalorder %s34, 0
      %p243 = por %p241, %p242
      %p244 = scmp.ne.s32.totalorder %s236, %s238
      %p245 = scmp.eq.s32.totalorder %s39, 1
      %p246 = por %p244, %p245
      %p247 = scmp.ne.s32.totalorder %s238, %s239
      %p248 = scmp.eq.s32.totalorder %s39, 0
      %p249 = por %p247, %p248
      %p250 = scmp.ne.s32.totalorder %s238, %s239
      %p251 = scmp.eq.s32.totalorder %s40, 1
      %p252 = por %p250, %p251
      %p254 = scmp.ne.s32.totalorder %s239, %s253
      %p255 = scmp.eq.s32.totalorder %s40, 0
      %p256 = por %p254, %p255
      %s258 = sadd.s32 %s257, 1
      %p261 = scmp.eq.s32.totalorder %s34, 1
      %p262 = scmp.ne.s32.totalorder %s257, %s259
      %p263 = scmp.eq.s32.totalorder %s34, 0
      %p264 = por %p262, %p263
      %p265 = scmp.ne.s32.totalorder %s257, %s259
      %p266 = scmp.eq.s32.totalorder %s39, 1
      %p267 = por %p265, %p266
      %p268 = scmp.ne.s32.totalorder %s259, %s260
      %p269 = scmp.eq.s32.totalorder %s39, 0
      %p270 = por %p268, %p269
      %p271 = scmp.ne.s32.totalorder %s259, %s260
      %p272 = scmp.eq.s32.totalorder %s40, 1
      %p273 = por %p271, %p272
      %p275 = scmp.ne.s32.totalorder %s260, %s274
      %p276 = scmp.eq.s32.totalorder %s40, 0
      %p277 = por %p275, %p276
      %s279 = sadd.s32 %s278, 1
      %p282 = scmp.eq.s32.totalorder %s34, 1
      %p283 = scmp.ne.s32.totalorder %s278, %s280
      %p284 = scmp.eq.s32.totalorder %s34, 0
      %p285 = por %p283, %p284
      %p286 = scmp.ne.s32.totalorder %s278, %s280
      %p287 = scmp.eq.s32.totalorder %s39, 1
      %p288 = por %p286, %p287
      %p289 = scmp.ne.s32.totalorder %s280, %s281
      %p290 = scmp.eq.s32.totalorder %s39, 0
      %p291 = por %p289, %p290
      %p292 = scmp.ne.s32.totalorder %s280, %s281
      %p293 = scmp.eq.s32.totalorder %s40, 1
      %p294 = por %p292, %p293
      %p296 = scmp.ne.s32.totalorder %s281, %s295
      %p297 = scmp.eq.s32.totalorder %s40, 0
      %p298 = por %p296, %p297
      %s300 = sadd.s32 %s299, 1
      %p303 = scmp.eq.s32.totalorder %s34, 1
      %p304 = scmp.ne.s32.totalorder %s299, %s301
      %p305 = scmp.eq.s32.totalorder %s34, 0
      %p306 = por %p304, %p305
      %p307 = scmp.ne.s32.totalorder %s299, %s301
      %p308 = scmp.eq.s32.totalorder %s39, 1
      %p309 = por %p307, %p308
      %p310 = scmp.ne.s32.totalorder %s301, %s302
      %p311 = scmp.eq.s32.totalorder %s39, 0
      %p312 = por %p310, %p311
      %p313 = scmp.ne.s32.totalorder %s301, %s302
      %p314 = scmp.eq.s32.totalorder %s40, 1
      %p315 = por %p313, %p314
      %p317 = scmp.ne.s32.totalorder %s302, %s316
      %p318 = scmp.eq.s32.totalorder %s40, 0
      %p319 = por %p317, %p318
      %s321 = sadd.s32 %s320, 1
      %p324 = scmp.eq.s32.totalorder %s34, 1
      %p325 = scmp.ne.s32.totalorder %s320, %s322
      %p326 = scmp.eq.s32.totalorder %s34, 0
      %p327 = por %p325, %p326
      %p328 = scmp.ne.s32.totalorder %s320, %s322
      %p329 = scmp.eq.s32.totalorder %s39, 1
      %p330 = por %p328, %p329
      %p331 = scmp.ne.s32.totalorder %s322, %s323
      %p332 = scmp.eq.s32.totalorder %s39, 0
      %p333 = por %p331, %p332
      %p334 = scmp.ne.s32.totalorder %s322, %s323
      %p335 = scmp.eq.s32.totalorder %s40, 1
      %p336 = por %p334, %p335
      %p338 = scmp.ne.s32.totalorder %s323, %s337
      %p339 = scmp.eq.s32.totalorder %s40, 0
      %p340 = por %p338, %p339
      %s342 = sadd.s32 %s341, 1
      %p345 = scmp.eq.s32.totalorder %s34, 1
      %p346 = scmp.ne.s32.totalorder %s341, %s343
      %p347 = scmp.eq.s32.totalorder %s34, 0
      %p348 = por %p346, %p347
      %p349 = scmp.ne.s32.totalorder %s341, %s343
      %p350 = scmp.eq.s32.totalorder %s39, 1
      %p351 = por %p349, %p350
      %p352 = scmp.ne.s32.totalorder %s343, %s344
      %p353 = scmp.eq.s32.totalorder %s39, 0
      %p354 = por %p352, %p353
      %p355 = scmp.ne.s32.totalorder %s343, %s344
      %p356 = scmp.eq.s32.totalorder %s40, 1
      %p357 = por %p355, %p356
      %p359 = scmp.ne.s32.totalorder %s344, %s358
      %p360 = scmp.eq.s32.totalorder %s40, 0
      %p361 = por %p359, %p360
      %s363 = sadd.s32 %s362, 1
      %p366 = scmp.eq.s32.totalorder %s34, 1
      %p367 = scmp.ne.s32.totalorder %s362, %s364
      %p368 = scmp.eq.s32.totalorder %s34, 0
      %p369 = por %p367, %p368
      %p370 = scmp.ne.s32.totalorder %s362, %s364
      %p371 = scmp.eq.s32.totalorder %s39, 1
      %p372 = por %p370, %p371
      %p373 = scmp.ne.s32.totalorder %s364, %s365
      %p374 = scmp.eq.s32.totalorder %s39, 0
      %p375 = por %p373, %p374
      %p376 = scmp.ne.s32.totalorder %s364, %s365
      %p377 = scmp.eq.s32.totalorder %s40, 1
      %p378 = por %p376, %p377
      %p380 = scmp.ne.s32.totalorder %s365, %s379
      %p381 = scmp.eq.s32.totalorder %s40, 0
      %p382 = por %p380, %p381
      %s384 = sadd.s32 %s383, 1
      %p387 = scmp.eq.s32.totalorder %s34, 1
      %p388 = scmp.ne.s32.totalorder %s383, %s385
      %p389 = scmp.eq.s32.totalorder %s34, 0
      %p390 = por %p388, %p389
      %p391 = scmp.ne.s32.totalorder %s383, %s385
      %p392 = scmp.eq.s32.totalorder %s39, 1
      %p393 = por %p391, %p392
      %p394 = scmp.ne.s32.totalorder %s385, %s386
      %p395 = scmp.eq.s32.totalorder %s39, 0
      %p396 = por %p394, %p395
      %p397 = scmp.ne.s32.totalorder %s385, %s386
      %p398 = scmp.eq.s32.totalorder %s40, 1
      %p399 = por %p397, %p398
      %p401 = scmp.ne.s32.totalorder %s386, %s400
      %p402 = scmp.eq.s32.totalorder %s40, 0
      %p403 = por %p401, %p402
      %s405 = sadd.s32 %s404, 1
      %p408 = scmp.eq.s32.totalorder %s34, 1
      %p409 = scmp.ne.s32.totalorder %s404, %s406
      %p410 = scmp.eq.s32.totalorder %s34, 0
      %p411 = por %p409, %p410
      %p412 = scmp.ne.s32.totalorder %s404, %s406
      %p413 = scmp.eq.s32.totalorder %s39, 1
      %p414 = por %p412, %p413
      %p415 = scmp.ne.s32.totalorder %s406, %s407
      %p416 = scmp.eq.s32.totalorder %s39, 0
      %p417 = por %p415, %p416
      %p418 = scmp.ne.s32.totalorder %s406, %s407
      %p419 = scmp.eq.s32.totalorder %s40, 1
      %p420 = por %p418, %p419
      %p422 = scmp.ne.s32.totalorder %s407, %s421
      %p423 = scmp.eq.s32.totalorder %s40, 0
      %p424 = por %p422, %p423
      %s426 = sadd.s32 %s425, 1
      %p429 = scmp.eq.s32.totalorder %s34, 1
      %p430 = scmp.ne.s32.totalorder %s425, %s427
      %p431 = scmp.eq.s32.totalorder %s34, 0
      %p432 = por %p430, %p431
      %p433 = scmp.ne.s32.totalorder %s425, %s427
      %p434 = scmp.eq.s32.totalorder %s39, 1
      %p435 = por %p433, %p434
      %p436 = scmp.ne.s32.totalorder %s427, %s428
      %p437 = scmp.eq.s32.totalorder %s39, 0
      %p438 = por %p436, %p437
      %p439 = scmp.ne.s32.totalorder %s427, %s428
      %p440 = scmp.eq.s32.totalorder %s40, 1
      %p441 = por %p439, %p440
      %p443 = scmp.ne.s32.totalorder %s428, %s442
      %p444 = scmp.eq.s32.totalorder %s40, 0
      %p445 = por %p443, %p444
      %s446 = ssub.s32 %s34, %s41
      %p447 = scmp.eq.s32.totalorder %s446, 0
      %s449 = sadd.s32 %s448, 1
      %s450 = scalar_select %p447, %s448, %s449
      %p453 = pneg %p447
      %p454 = scmp.eq.s32.totalorder %s34, 1
      %p455 = por %p453, %p454
      %p456 = scmp.ne.s32.totalorder %s448, %s451
      %p457 = scmp.eq.s32.totalorder %s34, 0
      %p458 = por %p456, %p457
      %p459 = scmp.ne.s32.totalorder %s448, %s451
      %p460 = scmp.eq.s32.totalorder %s39, 1
      %p461 = por %p459, %p460
      %p462 = scmp.ne.s32.totalorder %s451, %s452
      %p463 = scmp.eq.s32.totalorder %s39, 0
      %p464 = por %p462, %p463
      %p465 = scmp.ne.s32.totalorder %s451, %s452
      %p466 = scmp.eq.s32.totalorder %s40, 1
      %p467 = por %p465, %p466
      %p469 = scmp.ne.s32.totalorder %s452, %s468
      %p470 = scmp.eq.s32.totalorder %s40, 0
      %p471 = por %p469, %p470
      %p472 = scmp.le.s32.totalorder 1, %s34
      %p473 = scmp.lt.s32.totalorder %s34, 3
      %p474 = pnand %p472, %p473
      %p475 = pneg %p474
      // Predicated region
      $region9: #{tpu_custom_call.1} parent=5 // pred_check
        _
      $region10: #{tpu_custom_call.1} parent=5 // pred_check_branch
        %477 = sbr.rel (%p474) target = $region12
      $region11: #{tpu_custom_call.1} parent=5 // pred_region
        %s478 = ssub.s32 %s34, 1
        // Predicated region
        $region13: #{tpu_custom_call.1} parent=11 // pred_check
          %p479 = pneg %p81
        $region14: #{tpu_custom_call.1} parent=11 // pred_check_branch
          %481 = sbr.rel (%p479) target = $region16
        $region15: #{tpu_custom_call.1} parent=11 // pred_region
          %s483 = ssub.s32 4096, 4096
          %484 = vsyncadd [#allocation6], %s483
          %s485 = sshll.u32 [#allocation5], 4
          %s486 = int_to_ptr.vmem [resolvable:$true] %s485
          %491 = dma.hbm_to_vmem [thread:$0]  %s1, 4096, %s486, [#allocation6], 128, 128, 8
        $region16: #{tpu_custom_call.1} parent=11 // pred_fallthru
          _
        // Predicated region
        $region17: #{tpu_custom_call.1} parent=11 // pred_check
          %p492 = pneg %p102
        $region18: #{tpu_custom_call.1} parent=11 // pred_check_branch
          %494 = sbr.rel (%p492) target = $region20
        $region19: #{tpu_custom_call.1} parent=11 // pred_region
          %s496 = ssub.s32 4096, 4096
          %497 = vsyncadd [#allocation6], %s496
          %s498 = sshll.u32 [#allocation7], 4
          %s499 = int_to_ptr.vmem [resolvable:$true] %s498
          %504 = dma.hbm_to_vmem [thread:$0]  %s2, 4096, %s499, [#allocation6], 128, 128, 8
        $region20: #{tpu_custom_call.1} parent=11 // pred_fallthru
          _
        // Predicated region
        $region21: #{tpu_custom_call.1} parent=11 // pred_check
          %p505 = pneg %p123
        $region22: #{tpu_custom_call.1} parent=11 // pred_check_branch
          %507 = sbr.rel (%p505) target = $region24
        $region23: #{tpu_custom_call.1} parent=11 // pred_region
          %s509 = ssub.s32 4096, 4096
          %510 = vsyncadd [#allocation9], %s509
          %s511 = sshll.u32 [#allocation8], 4
          %s512 = int_to_ptr.vmem [resolvable:$true] %s511
          %517 = dma.hbm_to_vmem [thread:$0]  %s3, 4096, %s512, [#allocation9], 128, 128, 8
        $region24: #{tpu_custom_call.1} parent=11 // pred_fallthru
          _
        // Predicated region
        $region25: #{tpu_custom_call.1} parent=11 // pred_check
          %p518 = pneg %p144
        $region26: #{tpu_custom_call.1} parent=11 // pred_check_branch
          %520 = sbr.rel (%p518) target = $region28
        $region27: #{tpu_custom_call.1} parent=11 // pred_region
          %s522 = ssub.s32 4096, 4096
          %523 = vsyncadd [#allocation9], %s522
          %s524 = sshll.u32 [#allocation10], 4
          %s525 = int_to_ptr.vmem [resolvable:$true] %s524
          %530 = dma.hbm_to_vmem [thread:$0]  %s4, 4096, %s525, [#allocation9], 128, 128, 8
        $region28: #{tpu_custom_call.1} parent=11 // pred_fallthru
          _
        // Predicated region
        $region29: #{tpu_custom_call.1} parent=11 // pred_check
          %p531 = pneg %p165
        $region30: #{tpu_custom_call.1} parent=11 // pred_check_branch
          %533 = sbr.rel (%p531) target = $region32
        $region31: #{tpu_custom_call.1} parent=11 // pred_region
          _
        $region32: #{tpu_custom_call.1} parent=11 // pred_fallthru
          _
        // Predicated region
        $region33: #{tpu_custom_call.1} parent=11 // pred_check
          %p534 = pneg %p186
        $region34: #{tpu_custom_call.1} parent=11 // pred_check_branch
          %536 = sbr.rel (%p534) target = $region36
        $region35: #{tpu_custom_call.1} parent=11 // pred_region
          _
        $region36: #{tpu_custom_call.1} parent=11 // pred_fallthru
          _
        // Predicated region
        $region37: #{tpu_custom_call.1} parent=11 // pred_check
          %p537 = pneg %p207
        $region38: #{tpu_custom_call.1} parent=11 // pred_check_branch
          %539 = sbr.rel (%p537) target = $region40
        $region39: #{tpu_custom_call.1} parent=11 // pred_region
          _
        $region40: #{tpu_custom_call.1} parent=11 // pred_fallthru
          _
        // Predicated region
        $region41: #{tpu_custom_call.1} parent=11 // pred_check
          %p540 = pneg %p228
        $region42: #{tpu_custom_call.1} parent=11 // pred_check_branch
          %542 = sbr.rel (%p540) target = $region44
        $region43: #{tpu_custom_call.1} parent=11 // pred_region
          _
        $region44: #{tpu_custom_call.1} parent=11 // pred_fallthru
          _
        // Predicated region
        $region45: #{tpu_custom_call.1} parent=11 // pred_check
          %p543 = pneg %p249
        $region46: #{tpu_custom_call.1} parent=11 // pred_check_branch
          %545 = sbr.rel (%p543) target = $region48
        $region47: #{tpu_custom_call.1} parent=11 // pred_region
          %s547 = ssub.s32 8192, 8192
          %548 = vsyncadd [#allocation12], %s547
          %s549 = sshll.u32 [#allocation11], 4
          %s550 = int_to_ptr.vmem [resolvable:$true] %s549
          %555 = dma.hbm_to_vmem [thread:$0]  %s9, 8192, %s550, [#allocation12], 256, 256, 16
        $region48: #{tpu_custom_call.1} parent=11 // pred_fallthru
          _
        // Predicated region
        $region49: #{tpu_custom_call.1} parent=11 // pred_check
          %p556 = pneg %p270
        $region50: #{tpu_custom_call.1} parent=11 // pred_check_branch
          %558 = sbr.rel (%p556) target = $region52
        $region51: #{tpu_custom_call.1} parent=11 // pred_region
          _
        $region52: #{tpu_custom_call.1} parent=11 // pred_fallthru
          _
        // Predicated region
        $region53: #{tpu_custom_call.1} parent=11 // pred_check
          %p559 = pneg %p291
        $region54: #{tpu_custom_call.1} parent=11 // pred_check_branch
          %561 = sbr.rel (%p559) target = $region56
        $region55: #{tpu_custom_call.1} parent=11 // pred_region
          %s563 = ssub.s32 8192, 8192
          %564 = vsyncadd [#allocation12], %s563
          %s565 = sshll.u32 [#allocation13], 4
          %s566 = int_to_ptr.vmem [resolvable:$true] %s565
          %571 = dma.hbm_to_vmem [thread:$0]  %s11, 8192, %s566, [#allocation12], 128, 128, 8
        $region56: #{tpu_custom_call.1} parent=11 // pred_fallthru
          _
        // Predicated region
        $region57: #{tpu_custom_call.1} parent=11 // pred_check
          %p572 = pneg %p312
        $region58: #{tpu_custom_call.1} parent=11 // pred_check_branch
          %574 = sbr.rel (%p572) target = $region60
        $region59: #{tpu_custom_call.1} parent=11 // pred_region
          _
        $region60: #{tpu_custom_call.1} parent=11 // pred_fallthru
          _
        // Predicated region
        $region61: #{tpu_custom_call.1} parent=11 // pred_check
          %p575 = pneg %p333
        $region62: #{tpu_custom_call.1} parent=11 // pred_check_branch
          %577 = sbr.rel (%p575) target = $region64
        $region63: #{tpu_custom_call.1} parent=11 // pred_region
          _
        $region64: #{tpu_custom_call.1} parent=11 // pred_fallthru
          _
        // Predicated region
        $region65: #{tpu_custom_call.1} parent=11 // pred_check
          %p578 = pneg %p354
        $region66: #{tpu_custom_call.1} parent=11 // pred_check_branch
          %580 = sbr.rel (%p578) target = $region68
        $region67: #{tpu_custom_call.1} parent=11 // pred_region
          _
        $region68: #{tpu_custom_call.1} parent=11 // pred_fallthru
          _
        // Predicated region
        $region69: #{tpu_custom_call.1} parent=11 // pred_check
          %p581 = pneg %p375
        $region70: #{tpu_custom_call.1} parent=11 // pred_check_branch
          %583 = sbr.rel (%p581) target = $region72
        $region71: #{tpu_custom_call.1} parent=11 // pred_region
          _
        $region72: #{tpu_custom_call.1} parent=11 // pred_fallthru
          _
        // Predicated region
        $region73: #{tpu_custom_call.1} parent=11 // pred_check
          %p584 = pneg %p396
        $region74: #{tpu_custom_call.1} parent=11 // pred_check_branch
          %586 = sbr.rel (%p584) target = $region76
        $region75: #{tpu_custom_call.1} parent=11 // pred_region
          _
        $region76: #{tpu_custom_call.1} parent=11 // pred_fallthru
          _
        // Predicated region
        $region77: #{tpu_custom_call.1} parent=11 // pred_check
          %p587 = pneg %p417
        $region78: #{tpu_custom_call.1} parent=11 // pred_check_branch
          %589 = sbr.rel (%p587) target = $region80
        $region79: #{tpu_custom_call.1} parent=11 // pred_region
          _
        $region80: #{tpu_custom_call.1} parent=11 // pred_fallthru
          _
        // Predicated region
        $region81: #{tpu_custom_call.1} parent=11 // pred_check
          %p590 = pneg %p438
        $region82: #{tpu_custom_call.1} parent=11 // pred_check_branch
          %592 = sbr.rel (%p590) target = $region84
        $region83: #{tpu_custom_call.1} parent=11 // pred_region
          _
        $region84: #{tpu_custom_call.1} parent=11 // pred_fallthru
          _
      $region12: #{tpu_custom_call.1} parent=5 // pred_fallthru
        _
      %p593 = scmp.lt.s32.totalorder %s34, 2
      // Predicated region
      $region85: #{tpu_custom_call.1} parent=5 // pred_check
        %p594 = pneg %p593
      $region86: #{tpu_custom_call.1} parent=5 // pred_check_branch
        %596 = sbr.rel (%p594) target = $region88
      $region87: #{tpu_custom_call.1} parent=5 // pred_region
        // Predicated region
        $region89: #{tpu_custom_call.1} parent=87 // pred_check
          %p597 = pneg %p54
        $region90: #{tpu_custom_call.1} parent=87 // pred_check_branch
          %599 = sbr.rel (%p597) target = $region92
        $region91: #{tpu_custom_call.1} parent=87 // pred_region
          %s600 = sand.u32 %s44, 1
          %s601 = scalar_lea.sflag [#allocation3], %s600
          %s602 = sand.u32 %s44, 1
          %s603 = smul.addr %s602, 8
          %s604 = scalar_lea.vmem [#allocation2], %s603
          %s606 = ssub.s32 128, 128
          %607 = vsyncadd %s601, %s606
          %s608 = smul.addr %s34, 128
          %s609 = scalar_lea.hbm %s0, %s608
          %s611 = sshll.u32 %s604, 4
          %s612 = int_to_ptr.vmem [resolvable:$true] %s611
          %614 = dma.hbm_to_vmem [thread:$0]  %s609, 128, %s612, %s601
        $region92: #{tpu_custom_call.1} parent=87 // pred_fallthru
          _
      $region88: #{tpu_custom_call.1} parent=5 // pred_fallthru
        _
      %p615 = scmp.le.s32.totalorder 1, %s34
      %p616 = scmp.lt.s32.totalorder %s34, 3
      %p617 = pnand %p615, %p616
      %p618 = pneg %p617
      // Predicated region
      $region93: #{tpu_custom_call.1} parent=5 // pred_check
        _
      $region94: #{tpu_custom_call.1} parent=5 // pred_check_branch
        %620 = sbr.rel (%p617) target = $region96
      $region95: #{tpu_custom_call.1} parent=5 // pred_region
        %s621 = ssub.s32 %s34, 1
        %s622 = sand.u32 %s47, 1
        %s623 = scalar_lea.sflag [#allocation3], %s622
        %s624 = sand.u32 %s47, 1
        %s625 = smul.addr %s624, 8
        %s626 = scalar_lea.vmem [#allocation2], %s625
        // Predicated region
        $region97: #{tpu_custom_call.1} parent=95 // pred_check
          %p627 = pneg %p60
        $region98: #{tpu_custom_call.1} parent=95 // pred_check_branch
          %629 = sbr.rel (%p627) target = $region100
        $region99: #{tpu_custom_call.1} parent=95 // pred_region
          %630 = dma.done %s623, 128
        $region100: #{tpu_custom_call.1} parent=95 // pred_fallthru
          _
        // Predicated region
        $region101: #{tpu_custom_call.1} parent=95 // pred_check
          %p631 = pneg %p81
        $region102: #{tpu_custom_call.1} parent=95 // pred_check_branch
          %633 = sbr.rel (%p631) target = $region104
        $region103: #{tpu_custom_call.1} parent=95 // pred_region
          %634 = dma.done [#allocation6], 4096
        $region104: #{tpu_custom_call.1} parent=95 // pred_fallthru
          _
        // Predicated region
        $region105: #{tpu_custom_call.1} parent=95 // pred_check
          %p635 = pneg %p102
        $region106: #{tpu_custom_call.1} parent=95 // pred_check_branch
          %637 = sbr.rel (%p635) target = $region108
        $region107: #{tpu_custom_call.1} parent=95 // pred_region
          %638 = dma.done [#allocation6], 4096
        $region108: #{tpu_custom_call.1} parent=95 // pred_fallthru
          _
        // Predicated region
        $region109: #{tpu_custom_call.1} parent=95 // pred_check
          %p639 = pneg %p123
        $region110: #{tpu_custom_call.1} parent=95 // pred_check_branch
          %641 = sbr.rel (%p639) target = $region112
        $region111: #{tpu_custom_call.1} parent=95 // pred_region
          %642 = dma.done [#allocation9], 4096
        $region112: #{tpu_custom_call.1} parent=95 // pred_fallthru
          _
        // Predicated region
        $region113: #{tpu_custom_call.1} parent=95 // pred_check
          %p643 = pneg %p144
        $region114: #{tpu_custom_call.1} parent=95 // pred_check_branch
          %645 = sbr.rel (%p643) target = $region116
        $region115: #{tpu_custom_call.1} parent=95 // pred_region
          %646 = dma.done [#allocation9], 4096
        $region116: #{tpu_custom_call.1} parent=95 // pred_fallthru
          _
        // Predicated region
        $region117: #{tpu_custom_call.1} parent=95 // pred_check
          %p647 = pneg %p249
        $region118: #{tpu_custom_call.1} parent=95 // pred_check_branch
          %649 = sbr.rel (%p647) target = $region120
        $region119: #{tpu_custom_call.1} parent=95 // pred_region
          %650 = dma.done [#allocation12], 8192
        $region120: #{tpu_custom_call.1} parent=95 // pred_fallthru
          _
        // Predicated region
        $region121: #{tpu_custom_call.1} parent=95 // pred_check
          %p651 = pneg %p291
        $region122: #{tpu_custom_call.1} parent=95 // pred_check_branch
          %653 = sbr.rel (%p651) target = $region124
        $region123: #{tpu_custom_call.1} parent=95 // pred_region
          %654 = dma.done [#allocation12], 8192
        $region124: #{tpu_custom_call.1} parent=95 // pred_fallthru
          _
        %s655 = sand.u32 %s47, 1
        %s656 = scalar_lea.sflag [#allocation3], %s655
        %s657 = sand.u32 %s47, 1
        %s658 = smul.addr %s657, 8
        %s659 = scalar_lea.vmem [#allocation2], %s658
        %p660 = pneg %p60
        %p661 = pneg %p57
        %p662 = pneg %p81
        %p663 = pneg %p78
        %p664 = pneg %p102
        %p665 = pneg %p99
        %p666 = pneg %p123
        %p667 = pneg %p120
        %p668 = pneg %p144
        %p669 = pneg %p141
        %p670 = pneg %p165
        %p671 = pneg %p162
        %p672 = pneg %p186
        %p673 = pneg %p183
        %p674 = pneg %p207
        %p675 = pneg %p204
        %p676 = pneg %p228
        %p677 = pneg %p225
        %p678 = pneg %p249
        %p679 = pneg %p246
        %p680 = pneg %p270
        %p681 = pneg %p267
        %p682 = pneg %p291
        %p683 = pneg %p288
        %p684 = pneg %p312
        %p685 = pneg %p309
        %p686 = pneg %p333
        %p687 = pneg %p330
        %p688 = pneg %p354
        %p689 = pneg %p351
        %p690 = pneg %p375
        %p691 = pneg %p372
        %p692 = pneg %p396
        %p693 = pneg %p393
        %p694 = pneg %p417
        %p695 = pneg %p414
        %p696 = pneg %p438
        %p697 = pneg %p435
        %p698 = pneg %p464
        %p699 = pneg %p461
        %s700 = sand.u32 %s451, 1
        %s701 = scalar_lea.sflag [#allocation4], %s700
        %s702 = sand.u32 %s451, 1
        %s703 = smul.addr %s702, 8
        %s704 = scalar_lea.vmem [#allocation14], %s703
        %v705 = vld [vmem:[%s626] sm:$0xff]
        %v706 = vld [vmem:[#allocation5] sm:$0xff]
        %v707 = vld [vmem:[#allocation5 + $0x8] sm:$0xff]
        %v708 = vld [vmem:[#allocation5 + $0x10] sm:$0xff]
        %v709 = vld [vmem:[#allocation5 + $0x18] sm:$0xff]
        %v710 = vld [vmem:[#allocation5 + $0x20] sm:$0xff]
        %v711 = vld [vmem:[#allocation5 + $0x28] sm:$0xff]
        %v712 = vld [vmem:[#allocation5 + $0x30] sm:$0xff]
        %v713 = vld [vmem:[#allocation5 + $0x38] sm:$0xff]
        %v714 = vld [vmem:[#allocation5 + $0x40] sm:$0xff]
        %v715 = vld [vmem:[#allocation5 + $0x48] sm:$0xff]
        %v716 = vld [vmem:[#allocation5 + $0x50] sm:$0xff]
        %v717 = vld [vmem:[#allocation5 + $0x58] sm:$0xff]
        %v718 = vld [vmem:[#allocation5 + $0x60] sm:$0xff]
        %v719 = vld [vmem:[#allocation5 + $0x68] sm:$0xff]
        %v720 = vld [vmem:[#allocation5 + $0x70] sm:$0xff]
        %v721 = vld [vmem:[#allocation5 + $0x78] sm:$0xff]
        %v722 = vld [vmem:[#allocation7] sm:$0xff]
        %v723 = vld [vmem:[#allocation7 + $0x8] sm:$0xff]
        %v724 = vld [vmem:[#allocation7 + $0x10] sm:$0xff]
        %v725 = vld [vmem:[#allocation7 + $0x18] sm:$0xff]
        %v726 = vld [vmem:[#allocation7 + $0x20] sm:$0xff]
        %v727 = vld [vmem:[#allocation7 + $0x28] sm:$0xff]
        %v728 = vld [vmem:[#allocation7 + $0x30] sm:$0xff]
        %v729 = vld [vmem:[#allocation7 + $0x38] sm:$0xff]
        %v730 = vld [vmem:[#allocation7 + $0x40] sm:$0xff]
        %v731 = vld [vmem:[#allocation7 + $0x48] sm:$0xff]
        %v732 = vld [vmem:[#allocation7 + $0x50] sm:$0xff]
        %v733 = vld [vmem:[#allocation7 + $0x58] sm:$0xff]
        %v734 = vld [vmem:[#allocation7 + $0x60] sm:$0xff]
        %v735 = vld [vmem:[#allocation7 + $0x68] sm:$0xff]
        %v736 = vld [vmem:[#allocation7 + $0x70] sm:$0xff]
        %v737 = vld [vmem:[#allocation7 + $0x78] sm:$0xff]
        %v738 = vld [vmem:[#allocation8] sm:$0xff]
        %v739 = vld [vmem:[#allocation8 + $0x8] sm:$0xff]
        %v740 = vld [vmem:[#allocation8 + $0x10] sm:$0xff]
        %v741 = vld [vmem:[#allocation8 + $0x18] sm:$0xff]
        %v742 = vld [vmem:[#allocation8 + $0x20] sm:$0xff]
        %v743 = vld [vmem:[#allocation8 + $0x28] sm:$0xff]
        %v744 = vld [vmem:[#allocation8 + $0x30] sm:$0xff]
        %v745 = vld [vmem:[#allocation8 + $0x38] sm:$0xff]
        %v746 = vld [vmem:[#allocation8 + $0x40] sm:$0xff]
        %v747 = vld [vmem:[#allocation8 + $0x48] sm:$0xff]
        %v748 = vld [vmem:[#allocation8 + $0x50] sm:$0xff]
        %v749 = vld [vmem:[#allocation8 + $0x58] sm:$0xff]
        %v750 = vld [vmem:[#allocation8 + $0x60] sm:$0xff]
        %v751 = vld [vmem:[#allocation8 + $0x68] sm:$0xff]
        %v752 = vld [vmem:[#allocation8 + $0x70] sm:$0xff]
        %v753 = vld [vmem:[#allocation8 + $0x78] sm:$0xff]
        %v754 = vld [vmem:[#allocation10] sm:$0xff]
        %v755 = vld [vmem:[#allocation10 + $0x8] sm:$0xff]
        %v756 = vld [vmem:[#allocation10 + $0x10] sm:$0xff]
        %v757 = vld [vmem:[#allocation10 + $0x18] sm:$0xff]
        %v758 = vld [vmem:[#allocation10 + $0x20] sm:$0xff]
        %v759 = vld [vmem:[#allocation10 + $0x28] sm:$0xff]
        %v760 = vld [vmem:[#allocation10 + $0x30] sm:$0xff]
        %v761 = vld [vmem:[#allocation10 + $0x38] sm:$0xff]
        %v762 = vld [vmem:[#allocation10 + $0x40] sm:$0xff]
        %v763 = vld [vmem:[#allocation10 + $0x48] sm:$0xff]
        %v764 = vld [vmem:[#allocation10 + $0x50] sm:$0xff]
        %v765 = vld [vmem:[#allocation10 + $0x58] sm:$0xff]
        %v766 = vld [vmem:[#allocation10 + $0x60] sm:$0xff]
        %v767 = vld [vmem:[#allocation10 + $0x68] sm:$0xff]
        %v768 = vld [vmem:[#allocation10 + $0x70] sm:$0xff]
        %v769 = vld [vmem:[#allocation10 + $0x78] sm:$0xff]
        %v770 = vld [vmem:[%s5] sm:$0x1]
        %v772 = vlaneseq
        %v773 = vshrl.u32 %v772, 7
        %v774 = vsub.s32 0, %v773
        %v775 = vrot.slane %v770, %v774
        %777 = vmatprep.subr.mxu0 0.0
        %778 = vmatpush1.msra.mxu0 %v706
        %779 = vmatprep.subr.mxu0 0.0
        %780 = vmatpush1.msra.mxu0 %v707
        %781 = vmatprep.subr.mxu0 0.0
        %782 = vmatpush1.msra.mxu0 %v708
        %783 = vmatprep.subr.mxu0 0.0
        %784 = vmatpush1.msra.mxu0 %v709
        %785 = vmatprep.subr.mxu0 0.0
        %786 = vmatpush1.msra.mxu0 %v710
        %787 = vmatprep.subr.mxu0 0.0
        %788 = vmatpush1.msra.mxu0 %v711
        %789 = vmatprep.subr.mxu0 0.0
        %790 = vmatpush1.msra.mxu0 %v712
        %791 = vmatprep.subr.mxu0 0.0
        %792 = vmatpush1.msra.mxu0 %v713
        %793 = vmatprep.subr.mxu0 0.0
        %794 = vmatpush1.msra.mxu0 %v714
        %795 = vmatprep.subr.mxu0 0.0
        %796 = vmatpush1.msra.mxu0 %v715
        %797 = vmatprep.subr.mxu0 0.0
        %798 = vmatpush1.msra.mxu0 %v716
        %799 = vmatprep.subr.mxu0 0.0
        %800 = vmatpush1.msra.mxu0 %v717
        %801 = vmatprep.subr.mxu0 0.0
        %802 = vmatpush1.msra.mxu0 %v718
        %803 = vmatprep.subr.mxu0 0.0
        %804 = vmatpush1.msra.mxu0 %v719
        %805 = vmatprep.subr.mxu0 0.0
        %806 = vmatpush1.msra.mxu0 %v720
        %807 = vmatprep.subr.mxu0 0.0
        %808 = vmatpush1.msra.mxu0 %v721
        %809 = vmatprep.subr.mxu0 0.0
        %810 = vmatpush1.msra.mxu0 0.0
        %811 = vmatprep.subr.mxu0 0.0
        %812 = vmatpush1.msra.mxu0 0.0
        %813 = vmatprep.subr.mxu0 0.0
        %814 = vmatpush1.msra.mxu0 0.0
        %815 = vmatprep.subr.mxu0 0.0
        %816 = vmatpush1.msra.mxu0 0.0
        %817 = vmatprep.subr.mxu0 0.0
        %818 = vmatpush1.msra.mxu0 0.0
        %819 = vmatprep.subr.mxu0 0.0
        %820 = vmatpush1.msra.mxu0 0.0
        %821 = vmatprep.subr.mxu0 0.0
        %822 = vmatpush1.msra.mxu0 0.0
        %823 = vmatprep.subr.mxu0 0.0
        %824 = vmatpush1.msra.mxu0 0.0
        %825 = vmatprep.subr.mxu0 0.0
        %826 = vmatpush1.msra.mxu0 0.0
        %827 = vmatprep.subr.mxu0 0.0
        %828 = vmatpush1.msra.mxu0 0.0
        %829 = vmatprep.subr.mxu0 0.0
        %830 = vmatpush1.msra.mxu0 0.0
        %831 = vmatprep.subr.mxu0 0.0
        %832 = vmatpush1.msra.mxu0 0.0
        %833 = vmatprep.subr.mxu0 0.0
        %834 = vmatpush1.msra.mxu0 0.0
        %835 = vmatprep.subr.mxu0 0.0
        %836 = vmatpush1.msra.mxu0 0.0
        %837 = vmatprep.subr.mxu0 0.0
        %838 = vmatpush1.msra.mxu0 0.0
        %839 = vmatprep.subr.mxu0 0.0
        %840 = vmatpush1.msra.mxu0 0.0
        %841 = vmatprep.mubr.f32.mxu0 0.0
        %842 = vmatmul.mubr.f32.gmra.mrb[0].mxu0 %v705
        %v843 = vpop.f32.mrb[0].mxu0
        %v844 = vadd.f32 %v775, %v843
        %v845 = vpop.f32.mrb[0].mxu0
        %846 = vdwg.mxu0
        %v847 = vld [vmem:[%s6] sm:$0x1]
        %v849 = vlaneseq
        %v850 = vshrl.u32 %v849, 7
        %v851 = vsub.s32 0, %v850
        %v852 = vrot.slane %v847, %v851
        %854 = vmatprep.subr.mxu0 0.0
        %855 = vmatpush1.msra.mxu0 %v722
        %856 = vmatprep.subr.mxu0 0.0
        %857 = vmatpush1.msra.mxu0 %v723
        %858 = vmatprep.subr.mxu0 0.0
        %859 = vmatpush1.msra.mxu0 %v724
        %860 = vmatprep.subr.mxu0 0.0
        %861 = vmatpush1.msra.mxu0 %v725
        %862 = vmatprep.subr.mxu0 0.0
        %863 = vmatpush1.msra.mxu0 %v726
        %864 = vmatprep.subr.mxu0 0.0
        %865 = vmatpush1.msra.mxu0 %v727
        %866 = vmatprep.subr.mxu0 0.0
        %867 = vmatpush1.msra.mxu0 %v728
        %868 = vmatprep.subr.mxu0 0.0
        %869 = vmatpush1.msra.mxu0 %v729
        %870 = vmatprep.subr.mxu0 0.0
        %871 = vmatpush1.msra.mxu0 %v730
        %872 = vmatprep.subr.mxu0 0.0
        %873 = vmatpush1.msra.mxu0 %v731
        %874 = vmatprep.subr.mxu0 0.0
        %875 = vmatpush1.msra.mxu0 %v732
        %876 = vmatprep.subr.mxu0 0.0
        %877 = vmatpush1.msra.mxu0 %v733
        %878 = vmatprep.subr.mxu0 0.0
        %879 = vmatpush1.msra.mxu0 %v734
        %880 = vmatprep.subr.mxu0 0.0
        %881 = vmatpush1.msra.mxu0 %v735
        %882 = vmatprep.subr.mxu0 0.0
        %883 = vmatpush1.msra.mxu0 %v736
        %884 = vmatprep.subr.mxu0 0.0
        %885 = vmatpush1.msra.mxu0 %v737
        %886 = vmatprep.subr.mxu0 0.0
        %887 = vmatpush1.msra.mxu0 0.0
        %888 = vmatprep.subr.mxu0 0.0
        %889 = vmatpush1.msra.mxu0 0.0
        %890 = vmatprep.subr.mxu0 0.0
        %891 = vmatpush1.msra.mxu0 0.0
        %892 = vmatprep.subr.mxu0 0.0
        %893 = vmatpush1.msra.mxu0 0.0
        %894 = vmatprep.subr.mxu0 0.0
        %895 = vmatpush1.msra.mxu0 0.0
        %896 = vmatprep.subr.mxu0 0.0
        %897 = vmatpush1.msra.mxu0 0.0
        %898 = vmatprep.subr.mxu0 0.0
        %899 = vmatpush1.msra.mxu0 0.0
        %900 = vmatprep.subr.mxu0 0.0
        %901 = vmatpush1.msra.mxu0 0.0
        %902 = vmatprep.subr.mxu0 0.0
        %903 = vmatpush1.msra.mxu0 0.0
        %904 = vmatprep.subr.mxu0 0.0
        %905 = vmatpush1.msra.mxu0 0.0
        %906 = vmatprep.subr.mxu0 0.0
        %907 = vmatpush1.msra.mxu0 0.0
        %908 = vmatprep.subr.mxu0 0.0
        %909 = vmatpush1.msra.mxu0 0.0
        %910 = vmatprep.subr.mxu0 0.0
        %911 = vmatpush1.msra.mxu0 0.0
        %912 = vmatprep.subr.mxu0 0.0
        %913 = vmatpush1.msra.mxu0 0.0
        %914 = vmatprep.subr.mxu0 0.0
        %915 = vmatpush1.msra.mxu0 0.0
        %916 = vmatprep.subr.mxu0 0.0
        %917 = vmatpush1.msra.mxu0 0.0
        %918 = vmatprep.mubr.f32.mxu0 0.0
        %919 = vmatmul.mubr.f32.gmra.mrb[0].mxu0 %v705
        %v920 = vpop.f32.mrb[0].mxu0
        %v921 = vadd.f32 %v852, %v920
        %v922 = vpop.f32.mrb[0].mxu0
        %923 = vdwg.mxu0
        %v924 = vld [vmem:[%s7] sm:$0x1]
        %v926 = vlaneseq
        %v927 = vshrl.u32 %v926, 7
        %v928 = vsub.s32 0, %v927
        %v929 = vrot.slane %v924, %v928
        %931 = vmatprep.subr.mxu0 0.0
        %932 = vmatpush1.msra.mxu0 %v738
        %933 = vmatprep.subr.mxu0 0.0
        %934 = vmatpush1.msra.mxu0 %v739
        %935 = vmatprep.subr.mxu0 0.0
        %936 = vmatpush1.msra.mxu0 %v740
        %937 = vmatprep.subr.mxu0 0.0
        %938 = vmatpush1.msra.mxu0 %v741
        %939 = vmatprep.subr.mxu0 0.0
        %940 = vmatpush1.msra.mxu0 %v742
        %941 = vmatprep.subr.mxu0 0.0
        %942 = vmatpush1.msra.mxu0 %v743
        %943 = vmatprep.subr.mxu0 0.0
        %944 = vmatpush1.msra.mxu0 %v744
        %945 = vmatprep.subr.mxu0 0.0
        %946 = vmatpush1.msra.mxu0 %v745
        %947 = vmatprep.subr.mxu0 0.0
        %948 = vmatpush1.msra.mxu0 %v746
        %949 = vmatprep.subr.mxu0 0.0
        %950 = vmatpush1.msra.mxu0 %v747
        %951 = vmatprep.subr.mxu0 0.0
        %952 = vmatpush1.msra.mxu0 %v748
        %953 = vmatprep.subr.mxu0 0.0
        %954 = vmatpush1.msra.mxu0 %v749
        %955 = vmatprep.subr.mxu0 0.0
        %956 = vmatpush1.msra.mxu0 %v750
        %957 = vmatprep.subr.mxu0 0.0
        %958 = vmatpush1.msra.mxu0 %v751
        %959 = vmatprep.subr.mxu0 0.0
        %960 = vmatpush1.msra.mxu0 %v752
        %961 = vmatprep.subr.mxu0 0.0
        %962 = vmatpush1.msra.mxu0 %v753
        %963 = vmatprep.subr.mxu0 0.0
        %964 = vmatpush1.msra.mxu0 0.0
        %965 = vmatprep.subr.mxu0 0.0
        %966 = vmatpush1.msra.mxu0 0.0
        %967 = vmatprep.subr.mxu0 0.0
        %968 = vmatpush1.msra.mxu0 0.0
        %969 = vmatprep.subr.mxu0 0.0
        %970 = vmatpush1.msra.mxu0 0.0
        %971 = vmatprep.subr.mxu0 0.0
        %972 = vmatpush1.msra.mxu0 0.0
        %973 = vmatprep.subr.mxu0 0.0
        %974 = vmatpush1.msra.mxu0 0.0
        %975 = vmatprep.subr.mxu0 0.0
        %976 = vmatpush1.msra.mxu0 0.0
        %977 = vmatprep.subr.mxu0 0.0
        %978 = vmatpush1.msra.mxu0 0.0
        %979 = vmatprep.subr.mxu0 0.0
        %980 = vmatpush1.msra.mxu0 0.0
        %981 = vmatprep.subr.mxu0 0.0
        %982 = vmatpush1.msra.mxu0 0.0
        %983 = vmatprep.subr.mxu0 0.0
        %984 = vmatpush1.msra.mxu0 0.0
        %985 = vmatprep.subr.mxu0 0.0
        %986 = vmatpush1.msra.mxu0 0.0
        %987 = vmatprep.subr.mxu0 0.0
        %988 = vmatpush1.msra.mxu0 0.0
        %989 = vmatprep.subr.mxu0 0.0
        %990 = vmatpush1.msra.mxu0 0.0
        %991 = vmatprep.subr.mxu0 0.0
        %992 = vmatpush1.msra.mxu0 0.0
        %993 = vmatprep.subr.mxu0 0.0
        %994 = vmatpush1.msra.mxu0 0.0
        %995 = vmatprep.mubr.f32.mxu0 0.0
        %996 = vmatmul.mubr.f32.gmra.mrb[0].mxu0 %v705
        %v997 = vpop.f32.mrb[0].mxu0
        %v998 = vadd.f32 %v929, %v997
        %v999 = vpop.f32.mrb[0].mxu0
        %1000 = vdwg.mxu0
        %vm1001 = vcmask 261120
        %v1003 = vsel %vm1001, %v844, 0
        %v1006 = vsel %vm1001, %v921, 0
        %1008 = vmatprep.subr.mxu0 0.0
        %1009 = vmatpush1.xpose.msra.mxu0 %v1006
        %1010 = vmatprep.subr.mxu0 0.0
        %1011 = vmatpush1.xpose.msra.mxu0 0.0
        %1012 = vmatprep.subr.mxu0 0.0
        %1013 = vmatpush1.xpose.msra.mxu0 0.0
        %1014 = vmatprep.subr.mxu0 0.0
        %1015 = vmatpush1.xpose.msra.mxu0 0.0
        %1016 = vmatprep.subr.mxu0 0.0
        %1017 = vmatpush1.xpose.msra.mxu0 0.0
        %1018 = vmatprep.subr.mxu0 0.0
        %1019 = vmatpush1.xpose.msra.mxu0 0.0
        %1020 = vmatprep.subr.mxu0 0.0
        %1021 = vmatpush1.xpose.msra.mxu0 0.0
        %1022 = vmatprep.subr.mxu0 0.0
        %1023 = vmatpush1.xpose.msra.mxu0 0.0
        %1024 = vmatprep.subr.mxu0 0.0
        %1025 = vmatpush1.xpose.msra.mxu0 0.0
        %1026 = vmatprep.subr.mxu0 0.0
        %1027 = vmatpush1.xpose.msra.mxu0 0.0
        %1028 = vmatprep.subr.mxu0 0.0
        %1029 = vmatpush1.xpose.msra.mxu0 0.0
        %1030 = vmatprep.subr.mxu0 0.0
        %1031 = vmatpush1.xpose.msra.mxu0 0.0
        %1032 = vmatprep.subr.mxu0 0.0
        %1033 = vmatpush1.xpose.msra.mxu0 0.0
        %1034 = vmatprep.subr.mxu0 0.0
        %1035 = vmatpush1.xpose.msra.mxu0 0.0
        %1036 = vmatprep.subr.mxu0 0.0
        %1037 = vmatpush1.xpose.msra.mxu0 0.0
        %1038 = vmatprep.subr.mxu0 0.0
        %1039 = vmatpush1.xpose.msra.mxu0 0.0
        %1040 = vmatprep.subr.mxu0 0.0
        %1041 = vmatpush1.xpose.msra.mxu0 0.0
        %1042 = vmatprep.subr.mxu0 0.0
        %1043 = vmatpush1.xpose.msra.mxu0 0.0
        %1044 = vmatprep.subr.mxu0 0.0
        %1045 = vmatpush1.xpose.msra.mxu0 0.0
        %1046 = vmatprep.subr.mxu0 0.0
        %1047 = vmatpush1.xpose.msra.mxu0 0.0
        %1048 = vmatprep.subr.mxu0 0.0
        %1049 = vmatpush1.xpose.msra.mxu0 0.0
        %1050 = vmatprep.subr.mxu0 0.0
        %1051 = vmatpush1.xpose.msra.mxu0 0.0
        %1052 = vmatprep.subr.mxu0 0.0
        %1053 = vmatpush1.xpose.msra.mxu0 0.0
        %1054 = vmatprep.subr.mxu0 0.0
        %1055 = vmatpush1.xpose.msra.mxu0 0.0
        %1056 = vmatprep.subr.mxu0 0.0
        %1057 = vmatpush1.xpose.msra.mxu0 0.0
        %1058 = vmatprep.subr.mxu0 0.0
        %1059 = vmatpush1.xpose.msra.mxu0 0.0
        %1060 = vmatprep.subr.mxu0 0.0
        %1061 = vmatpush1.xpose.msra.mxu0 0.0
        %1062 = vmatprep.subr.mxu0 0.0
        %1063 = vmatpush1.xpose.msra.mxu0 0.0
        %1064 = vmatprep.subr.mxu0 0.0
        %1065 = vmatpush1.xpose.msra.mxu0 0.0
        %1066 = vmatprep.subr.mxu0 0.0
        %1067 = vmatpush1.xpose.msra.mxu0 0.0
        %1068 = vmatprep.subr.mxu0 0.0
        %1069 = vmatpush1.xpose.msra.mxu0 0.0
        %1070 = vmatprep.subr.mxu0 0.0
        %1071 = vmatpush1.xpose.msra.mxu0 0.0
        %1072 = vmatprep.mubr.f32.mxu0 0.0
        %1073 = vmatmul.mubr.f32.gmra.mrb[0].mxu0 %v1003
        %v1074 = vpop.f32.mrb[0].mxu0
        %v1075 = vadd.f32 0.0, %v1074
        %v1076 = vpop.f32.mrb[0].mxu0
        %1077 = vdwg.mxu0
        %v1078 = vmul.f32 %v1075, 0.17677669
        %vm1079 = vcmask 64512
        %v1080 = vsel %vm1079, %v1078, -inf
        %1081 = vmax.xlane.f32.xlu0 %v1080
        %v1082 = vpop.xlane.xlu0 %1081
        %v1083 = vsub.f32 %v1078, %v1082
        %v1084 = vmul.f32 %v1083, 1.442695
        %v1085 = vpow.pop %v1084
        %v1086 = vsel %vm1079, %v1085, 0.0
        %1087 = vadd.xlane.f32.xlu0 %v1086
        %v1088 = vpop.xlane.xlu0 %1087
        %v1089 = vrcp.pop %v1088
        %v1090 = vmul.f32 %v1085, %v1089
        %v1092 = vsel %vm1079, %v1090, 0
        %1094 = vmatprep.subr.mxu0 0.0
        %1095 = vmatpush1.msra.mxu0 %v998
        %1096 = vmatprep.subr.mxu0 0.0
        %1097 = vmatpush1.msra.mxu0 0.0
        %1098 = vmatprep.subr.mxu0 0.0
        %1099 = vmatpush1.msra.mxu0 0.0
        %1100 = vmatprep.subr.mxu0 0.0
        %1101 = vmatpush1.msra.mxu0 0.0
        %1102 = vmatprep.subr.mxu0 0.0
        %1103 = vmatpush1.msra.mxu0 0.0
        %1104 = vmatprep.subr.mxu0 0.0
        %1105 = vmatpush1.msra.mxu0 0.0
        %1106 = vmatprep.subr.mxu0 0.0
        %1107 = vmatpush1.msra.mxu0 0.0
        %1108 = vmatprep.subr.mxu0 0.0
        %1109 = vmatpush1.msra.mxu0 0.0
        %1110 = vmatprep.subr.mxu0 0.0
        %1111 = vmatpush1.msra.mxu0 0.0
        %1112 = vmatprep.subr.mxu0 0.0
        %1113 = vmatpush1.msra.mxu0 0.0
        %1114 = vmatprep.subr.mxu0 0.0
        %1115 = vmatpush1.msra.mxu0 0.0
        %1116 = vmatprep.subr.mxu0 0.0
        %1117 = vmatpush1.msra.mxu0 0.0
        %1118 = vmatprep.subr.mxu0 0.0
        %1119 = vmatpush1.msra.mxu0 0.0
        %1120 = vmatprep.subr.mxu0 0.0
        %1121 = vmatpush1.msra.mxu0 0.0
        %1122 = vmatprep.subr.mxu0 0.0
        %1123 = vmatpush1.msra.mxu0 0.0
        %1124 = vmatprep.subr.mxu0 0.0
        %1125 = vmatpush1.msra.mxu0 0.0
        %1126 = vmatprep.subr.mxu0 0.0
        %1127 = vmatpush1.msra.mxu0 0.0
        %1128 = vmatprep.subr.mxu0 0.0
        %1129 = vmatpush1.msra.mxu0 0.0
        %1130 = vmatprep.subr.mxu0 0.0
        %1131 = vmatpush1.msra.mxu0 0.0
        %1132 = vmatprep.subr.mxu0 0.0
        %1133 = vmatpush1.msra.mxu0 0.0
        %1134 = vmatprep.subr.mxu0 0.0
        %1135 = vmatpush1.msra.mxu0 0.0
        %1136 = vmatprep.subr.mxu0 0.0
        %1137 = vmatpush1.msra.mxu0 0.0
        %1138 = vmatprep.subr.mxu0 0.0
        %1139 = vmatpush1.msra.mxu0 0.0
        %1140 = vmatprep.subr.mxu0 0.0
        %1141 = vmatpush1.msra.mxu0 0.0
        %1142 = vmatprep.subr.mxu0 0.0
        %1143 = vmatpush1.msra.mxu0 0.0
        %1144 = vmatprep.subr.mxu0 0.0
        %1145 = vmatpush1.msra.mxu0 0.0
        %1146 = vmatprep.subr.mxu0 0.0
        %1147 = vmatpush1.msra.mxu0 0.0
        %1148 = vmatprep.subr.mxu0 0.0
        %1149 = vmatpush1.msra.mxu0 0.0
        %1150 = vmatprep.subr.mxu0 0.0
        %1151 = vmatpush1.msra.mxu0 0.0
        %1152 = vmatprep.subr.mxu0 0.0
        %1153 = vmatpush1.msra.mxu0 0.0
        %1154 = vmatprep.subr.mxu0 0.0
        %1155 = vmatpush1.msra.mxu0 0.0
        %1156 = vmatprep.subr.mxu0 0.0
        %1157 = vmatpush1.msra.mxu0 0.0
        %1158 = vmatprep.mubr.f32.mxu0 0.0
        %1159 = vmatmul.mubr.f32.gmra.mrb[0].mxu0 %v1092
        %v1160 = vpop.f32.mrb[0].mxu0
        %v1161 = vadd.f32 0.0, %v1160
        %v1162 = vpop.f32.mrb[0].mxu0
        %1163 = vdwg.mxu0
        %1164 = vrot.lane.b32.xlu0 %v844, 96
        %v1165 = vpop.permute.xlu0 %1164
        %1166 = vrot.lane.b32.xlu0 %v921, 96
        %v1167 = vpop.permute.xlu0 %1166
        %v1168 = vsel %vm1001, %v1165, 0
        %v1170 = vsel %vm1001, %v1167, 0
        %1172 = vmatprep.subr.mxu0 0.0
        %1173 = vmatpush1.xpose.msra.mxu0 %v1170
        %1174 = vmatprep.subr.mxu0 0.0
        %1175 = vmatpush1.xpose.msra.mxu0 0.0
        %1176 = vmatprep.subr.mxu0 0.0
        %1177 = vmatpush1.xpose.msra.mxu0 0.0
        %1178 = vmatprep.subr.mxu0 0.0
        %1179 = vmatpush1.xpose.msra.mxu0 0.0
        %1180 = vmatprep.subr.mxu0 0.0
        %1181 = vmatpush1.xpose.msra.mxu0 0.0
        %1182 = vmatprep.subr.mxu0 0.0
        %1183 = vmatpush1.xpose.msra.mxu0 0.0
        %1184 = vmatprep.subr.mxu0 0.0
        %1185 = vmatpush1.xpose.msra.mxu0 0.0
        %1186 = vmatprep.subr.mxu0 0.0
        %1187 = vmatpush1.xpose.msra.mxu0 0.0
        %1188 = vmatprep.subr.mxu0 0.0
        %1189 = vmatpush1.xpose.msra.mxu0 0.0
        %1190 = vmatprep.subr.mxu0 0.0
        %1191 = vmatpush1.xpose.msra.mxu0 0.0
        %1192 = vmatprep.subr.mxu0 0.0
        %1193 = vmatpush1.xpose.msra.mxu0 0.0
        %1194 = vmatprep.subr.mxu0 0.0
        %1195 = vmatpush1.xpose.msra.mxu0 0.0
        %1196 = vmatprep.subr.mxu0 0.0
        %1197 = vmatpush1.xpose.msra.mxu0 0.0
        %1198 = vmatprep.subr.mxu0 0.0
        %1199 = vmatpush1.xpose.msra.mxu0 0.0
        %1200 = vmatprep.subr.mxu0 0.0
        %1201 = vmatpush1.xpose.msra.mxu0 0.0
        %1202 = vmatprep.subr.mxu0 0.0
        %1203 = vmatpush1.xpose.msra.mxu0 0.0
        %1204 = vmatprep.subr.mxu0 0.0
        %1205 = vmatpush1.xpose.msra.mxu0 0.0
        %1206 = vmatprep.subr.mxu0 0.0
        %1207 = vmatpush1.xpose.msra.mxu0 0.0
        %1208 = vmatprep.subr.mxu0 0.0
        %1209 = vmatpush1.xpose.msra.mxu0 0.0
        %1210 = vmatprep.subr.mxu0 0.0
        %1211 = vmatpush1.xpose.msra.mxu0 0.0
        %1212 = vmatprep.subr.mxu0 0.0
        %1213 = vmatpush1.xpose.msra.mxu0 0.0
        %1214 = vmatprep.subr.mxu0 0.0
        %1215 = vmatpush1.xpose.msra.mxu0 0.0
        %1216 = vmatprep.subr.mxu0 0.0
        %1217 = vmatpush1.xpose.msra.mxu0 0.0
        %1218 = vmatprep.subr.mxu0 0.0
        %1219 = vmatpush1.xpose.msra.mxu0 0.0
        %1220 = vmatprep.subr.mxu0 0.0
        %1221 = vmatpush1.xpose.msra.mxu0 0.0
        %1222 = vmatprep.subr.mxu0 0.0
        %1223 = vmatpush1.xpose.msra.mxu0 0.0
        %1224 = vmatprep.subr.mxu0 0.0
        %1225 = vmatpush1.xpose.msra.mxu0 0.0
        %1226 = vmatprep.subr.mxu0 0.0
        %1227 = vmatpush1.xpose.msra.mxu0 0.0
        %1228 = vmatprep.subr.mxu0 0.0
        %1229 = vmatpush1.xpose.msra.mxu0 0.0
        %1230 = vmatprep.subr.mxu0 0.0
        %1231 = vmatpush1.xpose.msra.mxu0 0.0
        %1232 = vmatprep.subr.mxu0 0.0
        %1233 = vmatpush1.xpose.msra.mxu0 0.0
        %1234 = vmatprep.subr.mxu0 0.0
        %1235 = vmatpush1.xpose.msra.mxu0 0.0
        %1236 = vmatprep.mubr.f32.mxu0 0.0
        %1237 = vmatmul.mubr.f32.gmra.mrb[0].mxu0 %v1168
        %v1238 = vpop.f32.mrb[0].mxu0
        %v1239 = vadd.f32 0.0, %v1238
        %v1240 = vpop.f32.mrb[0].mxu0
        %1241 = vdwg.mxu0
        %v1242 = vmul.f32 %v1239, 0.17677669
        %v1243 = vsel %vm1079, %v1242, -inf
        %1244 = vmax.xlane.f32.xlu0 %v1243
        %v1245 = vpop.xlane.xlu0 %1244
        %v1246 = vsub.f32 %v1242, %v1245
        %v1247 = vmul.f32 %v1246, 1.442695
        %v1248 = vpow.pop %v1247
        %v1249 = vsel %vm1079, %v1248, 0.0
        %1250 = vadd.xlane.f32.xlu0 %v1249
        %v1251 = vpop.xlane.xlu0 %1250
        %v1252 = vrcp.pop %v1251
        %v1253 = vmul.f32 %v1248, %v1252
        %1255 = vrot.lane.b32.xlu0 %v998, 96
        %v1256 = vpop.permute.xlu0 %1255
        %v1259 = vsel %vm1079, %v1253, 0
        %1261 = vmatprep.subr.mxu0 0.0
        %1262 = vmatpush1.msra.mxu0 %v1256
        %1263 = vmatprep.subr.mxu0 0.0
        %1264 = vmatpush1.msra.mxu0 0.0
        %1265 = vmatprep.subr.mxu0 0.0
        %1266 = vmatpush1.msra.mxu0 0.0
        %1267 = vmatprep.subr.mxu0 0.0
        %1268 = vmatpush1.msra.mxu0 0.0
        %1269 = vmatprep.subr.mxu0 0.0
        %1270 = vmatpush1.msra.mxu0 0.0
        %1271 = vmatprep.subr.mxu0 0.0
        %1272 = vmatpush1.msra.mxu0 0.0
        %1273 = vmatprep.subr.mxu0 0.0
        %1274 = vmatpush1.msra.mxu0 0.0
        %1275 = vmatprep.subr.mxu0 0.0
        %1276 = vmatpush1.msra.mxu0 0.0
        %1277 = vmatprep.subr.mxu0 0.0
        %1278 = vmatpush1.msra.mxu0 0.0
        %1279 = vmatprep.subr.mxu0 0.0
        %1280 = vmatpush1.msra.mxu0 0.0
        %1281 = vmatprep.subr.mxu0 0.0
        %1282 = vmatpush1.msra.mxu0 0.0
        %1283 = vmatprep.subr.mxu0 0.0
        %1284 = vmatpush1.msra.mxu0 0.0
        %1285 = vmatprep.subr.mxu0 0.0
        %1286 = vmatpush1.msra.mxu0 0.0
        %1287 = vmatprep.subr.mxu0 0.0
        %1288 = vmatpush1.msra.mxu0 0.0
        %1289 = vmatprep.subr.mxu0 0.0
        %1290 = vmatpush1.msra.mxu0 0.0
        %1291 = vmatprep.subr.mxu0 0.0
        %1292 = vmatpush1.msra.mxu0 0.0
        %1293 = vmatprep.subr.mxu0 0.0
        %1294 = vmatpush1.msra.mxu0 0.0
        %1295 = vmatprep.subr.mxu0 0.0
        %1296 = vmatpush1.msra.mxu0 0.0
        %1297 = vmatprep.subr.mxu0 0.0
        %1298 = vmatpush1.msra.mxu0 0.0
        %1299 = vmatprep.subr.mxu0 0.0
        %1300 = vmatpush1.msra.mxu0 0.0
        %1301 = vmatprep.subr.mxu0 0.0
        %1302 = vmatpush1.msra.mxu0 0.0
        %1303 = vmatprep.subr.mxu0 0.0
        %1304 = vmatpush1.msra.mxu0 0.0
        %1305 = vmatprep.subr.mxu0 0.0
        %1306 = vmatpush1.msra.mxu0 0.0
        %1307 = vmatprep.subr.mxu0 0.0
        %1308 = vmatpush1.msra.mxu0 0.0
        %1309 = vmatprep.subr.mxu0 0.0
        %1310 = vmatpush1.msra.mxu0 0.0
        %1311 = vmatprep.subr.mxu0 0.0
        %1312 = vmatpush1.msra.mxu0 0.0
        %1313 = vmatprep.subr.mxu0 0.0
        %1314 = vmatpush1.msra.mxu0 0.0
        %1315 = vmatprep.subr.mxu0 0.0
        %1316 = vmatpush1.msra.mxu0 0.0
        %1317 = vmatprep.subr.mxu0 0.0
        %1318 = vmatpush1.msra.mxu0 0.0
        %1319 = vmatprep.subr.mxu0 0.0
        %1320 = vmatpush1.msra.mxu0 0.0
        %1321 = vmatprep.subr.mxu0 0.0
        %1322 = vmatpush1.msra.mxu0 0.0
        %1323 = vmatprep.subr.mxu0 0.0
        %1324 = vmatpush1.msra.mxu0 0.0
        %1325 = vmatprep.mubr.f32.mxu0 0.0
        %1326 = vmatmul.mubr.f32.gmra.mrb[0].mxu0 %v1259
        %v1327 = vpop.f32.mrb[0].mxu0
        %v1328 = vadd.f32 0.0, %v1327
        %v1329 = vpop.f32.mrb[0].mxu0
        %1330 = vdwg.mxu0
        %v1332 = vsel %vm1001, %v1328, 0
        %1334 = vmatprep.subr.mxu0 0.0
        %1335 = vmatpush1.msra.mxu0 %v758
        %1336 = vmatprep.subr.mxu0 0.0
        %1337 = vmatpush1.msra.mxu0 %v759
        %1338 = vmatprep.subr.mxu0 0.0
        %1339 = vmatpush1.msra.mxu0 %v760
        %1340 = vmatprep.subr.mxu0 0.0
        %1341 = vmatpush1.msra.mxu0 %v761
        %1342 = vmatprep.subr.mxu0 0.0
        %1343 = vmatpush1.msra.mxu0 0.0
        %1344 = vmatprep.subr.mxu0 0.0
        %1345 = vmatpush1.msra.mxu0 0.0
        %1346 = vmatprep.subr.mxu0 0.0
        %1347 = vmatpush1.msra.mxu0 0.0
        %1348 = vmatprep.subr.mxu0 0.0
        %1349 = vmatpush1.msra.mxu0 0.0
        %1350 = vmatprep.subr.mxu0 0.0
        %1351 = vmatpush1.msra.mxu0 0.0
        %1352 = vmatprep.subr.mxu0 0.0
        %1353 = vmatpush1.msra.mxu0 0.0
        %1354 = vmatprep.subr.mxu0 0.0
        %1355 = vmatpush1.msra.mxu0 0.0
        %1356 = vmatprep.subr.mxu0 0.0
        %1357 = vmatpush1.msra.mxu0 0.0
        %1358 = vmatprep.subr.mxu0 0.0
        %1359 = vmatpush1.msra.mxu0 0.0
        %1360 = vmatprep.subr.mxu0 0.0
        %1361 = vmatpush1.msra.mxu0 0.0
        %1362 = vmatprep.subr.mxu0 0.0
        %1363 = vmatpush1.msra.mxu0 0.0
        %1364 = vmatprep.subr.mxu0 0.0
        %1365 = vmatpush1.msra.mxu0 0.0
        %1366 = vmatprep.subr.mxu0 0.0
        %1367 = vmatpush1.msra.mxu0 0.0
        %1368 = vmatprep.subr.mxu0 0.0
        %1369 = vmatpush1.msra.mxu0 0.0
        %1370 = vmatprep.subr.mxu0 0.0
        %1371 = vmatpush1.msra.mxu0 0.0
        %1372 = vmatprep.subr.mxu0 0.0
        %1373 = vmatpush1.msra.mxu0 0.0
        %1374 = vmatprep.subr.mxu0 0.0
        %1375 = vmatpush1.msra.mxu0 0.0
        %1376 = vmatprep.subr.mxu0 0.0
        %1377 = vmatpush1.msra.mxu0 0.0
        %1378 = vmatprep.subr.mxu0 0.0
        %1379 = vmatpush1.msra.mxu0 0.0
        %1380 = vmatprep.subr.mxu0 0.0
        %1381 = vmatpush1.msra.mxu0 0.0
        %1382 = vmatprep.subr.mxu0 0.0
        %1383 = vmatpush1.msra.mxu0 0.0
        %1384 = vmatprep.subr.mxu0 0.0
        %1385 = vmatpush1.msra.mxu0 0.0
        %1386 = vmatprep.subr.mxu0 0.0
        %1387 = vmatpush1.msra.mxu0 0.0
        %1388 = vmatprep.subr.mxu0 0.0
        %1389 = vmatpush1.msra.mxu0 0.0
        %1390 = vmatprep.subr.mxu0 0.0
        %1391 = vmatpush1.msra.mxu0 0.0
        %1392 = vmatprep.subr.mxu0 0.0
        %1393 = vmatpush1.msra.mxu0 0.0
        %1394 = vmatprep.subr.mxu0 0.0
        %1395 = vmatpush1.msra.mxu0 0.0
        %1396 = vmatprep.subr.mxu0 0.0
        %1397 = vmatpush1.msra.mxu0 0.0
        %1398 = vmatprep.mubr.f32.mxu0 0.0
        %1399 = vmatmul.mubr.f32.gmra.mrb[0].mxu0 %v1332
        %v1400 = vpop.f32.mrb[0].mxu0
        %v1401 = vadd.f32 0.0, %v1400
        %v1402 = vpop.f32.mrb[0].mxu0
        %1403 = vdwg.mxu0
        %v1405 = vsel %vm1001, %v1161, 0
        %1407 = vmatprep.subr.mxu0 0.0
        %1408 = vmatpush1.msra.mxu0 %v754
        %1409 = vmatprep.subr.mxu0 0.0
        %1410 = vmatpush1.msra.mxu0 %v755
        %1411 = vmatprep.subr.mxu0 0.0
        %1412 = vmatpush1.msra.mxu0 %v756
        %1413 = vmatprep.subr.mxu0 0.0
        %1414 = vmatpush1.msra.mxu0 %v757
        %1415 = vmatprep.subr.mxu0 0.0
        %1416 = vmatpush1.msra.mxu0 0.0
        %1417 = vmatprep.subr.mxu0 0.0
        %1418 = vmatpush1.msra.mxu0 0.0
        %1419 = vmatprep.subr.mxu0 0.0
        %1420 = vmatpush1.msra.mxu0 0.0
        %1421 = vmatprep.subr.mxu0 0.0
        %1422 = vmatpush1.msra.mxu0 0.0
        %1423 = vmatprep.subr.mxu0 0.0
        %1424 = vmatpush1.msra.mxu0 0.0
        %1425 = vmatprep.subr.mxu0 0.0
        %1426 = vmatpush1.msra.mxu0 0.0
        %1427 = vmatprep.subr.mxu0 0.0
        %1428 = vmatpush1.msra.mxu0 0.0
        %1429 = vmatprep.subr.mxu0 0.0
        %1430 = vmatpush1.msra.mxu0 0.0
        %1431 = vmatprep.subr.mxu0 0.0
        %1432 = vmatpush1.msra.mxu0 0.0
        %1433 = vmatprep.subr.mxu0 0.0
        %1434 = vmatpush1.msra.mxu0 0.0
        %1435 = vmatprep.subr.mxu0 0.0
        %1436 = vmatpush1.msra.mxu0 0.0
        %1437 = vmatprep.subr.mxu0 0.0
        %1438 = vmatpush1.msra.mxu0 0.0
        %1439 = vmatprep.subr.mxu0 0.0
        %1440 = vmatpush1.msra.mxu0 0.0
        %1441 = vmatprep.subr.mxu0 0.0
        %1442 = vmatpush1.msra.mxu0 0.0
        %1443 = vmatprep.subr.mxu0 0.0
        %1444 = vmatpush1.msra.mxu0 0.0
        %1445 = vmatprep.subr.mxu0 0.0
        %1446 = vmatpush1.msra.mxu0 0.0
        %1447 = vmatprep.subr.mxu0 0.0
        %1448 = vmatpush1.msra.mxu0 0.0
        %1449 = vmatprep.subr.mxu0 0.0
        %1450 = vmatpush1.msra.mxu0 0.0
        %1451 = vmatprep.subr.mxu0 0.0
        %1452 = vmatpush1.msra.mxu0 0.0
        %1453 = vmatprep.subr.mxu0 0.0
        %1454 = vmatpush1.msra.mxu0 0.0
        %1455 = vmatprep.subr.mxu0 0.0
        %1456 = vmatpush1.msra.mxu0 0.0
        %1457 = vmatprep.subr.mxu0 0.0
        %1458 = vmatpush1.msra.mxu0 0.0
        %1459 = vmatprep.subr.mxu0 0.0
        %1460 = vmatpush1.msra.mxu0 0.0
        %1461 = vmatprep.subr.mxu0 0.0
        %1462 = vmatpush1.msra.mxu0 0.0
        %1463 = vmatprep.subr.mxu0 0.0
        %1464 = vmatpush1.msra.mxu0 0.0
        %1465 = vmatprep.subr.mxu0 0.0
        %1466 = vmatpush1.msra.mxu0 0.0
        %1467 = vmatprep.subr.mxu0 0.0
        %1468 = vmatpush1.msra.mxu0 0.0
        %1469 = vmatprep.subr.mxu0 0.0
        %1470 = vmatpush1.msra.mxu0 0.0
        %1471 = vmatprep.mubr.f32.mxu0 0.0
        %1472 = vmatmul.mubr.f32.gmra.mrb[0].mxu0 %v1405
        %v1473 = vpop.f32.mrb[0].mxu0
        %v1474 = vadd.f32 %v1401, %v1473
        %v1475 = vpop.f32.mrb[0].mxu0
        %1476 = vdwg.mxu0
        %1477 = vrot.lane.b32.xlu0 %v844, 64
        %v1478 = vpop.permute.xlu0 %1477
        %1479 = vrot.lane.b32.xlu0 %v921, 64
        %v1480 = vpop.permute.xlu0 %1479
        %v1481 = vsel %vm1001, %v1478, 0
        %v1483 = vsel %vm1001, %v1480, 0
        %1485 = vmatprep.subr.mxu0 0.0
        %1486 = vmatpush1.xpose.msra.mxu0 %v1483
        %1487 = vmatprep.subr.mxu0 0.0
        %1488 = vmatpush1.xpose.msra.mxu0 0.0
        %1489 = vmatprep.subr.mxu0 0.0
        %1490 = vmatpush1.xpose.msra.mxu0 0.0
        %1491 = vmatprep.subr.mxu0 0.0
        %1492 = vmatpush1.xpose.msra.mxu0 0.0
        %1493 = vmatprep.subr.mxu0 0.0
        %1494 = vmatpush1.xpose.msra.mxu0 0.0
        %1495 = vmatprep.subr.mxu0 0.0
        %1496 = vmatpush1.xpose.msra.mxu0 0.0
        %1497 = vmatprep.subr.mxu0 0.0
        %1498 = vmatpush1.xpose.msra.mxu0 0.0
        %1499 = vmatprep.subr.mxu0 0.0
        %1500 = vmatpush1.xpose.msra.mxu0 0.0
        %1501 = vmatprep.subr.mxu0 0.0
        %1502 = vmatpush1.xpose.msra.mxu0 0.0
        %1503 = vmatprep.subr.mxu0 0.0
        %1504 = vmatpush1.xpose.msra.mxu0 0.0
        %1505 = vmatprep.subr.mxu0 0.0
        %1506 = vmatpush1.xpose.msra.mxu0 0.0
        %1507 = vmatprep.subr.mxu0 0.0
        %1508 = vmatpush1.xpose.msra.mxu0 0.0
        %1509 = vmatprep.subr.mxu0 0.0
        %1510 = vmatpush1.xpose.msra.mxu0 0.0
        %1511 = vmatprep.subr.mxu0 0.0
        %1512 = vmatpush1.xpose.msra.mxu0 0.0
        %1513 = vmatprep.subr.mxu0 0.0
        %1514 = vmatpush1.xpose.msra.mxu0 0.0
        %1515 = vmatprep.subr.mxu0 0.0
        %1516 = vmatpush1.xpose.msra.mxu0 0.0
        %1517 = vmatprep.subr.mxu0 0.0
        %1518 = vmatpush1.xpose.msra.mxu0 0.0
        %1519 = vmatprep.subr.mxu0 0.0
        %1520 = vmatpush1.xpose.msra.mxu0 0.0
        %1521 = vmatprep.subr.mxu0 0.0
        %1522 = vmatpush1.xpose.msra.mxu0 0.0
        %1523 = vmatprep.subr.mxu0 0.0
        %1524 = vmatpush1.xpose.msra.mxu0 0.0
        %1525 = vmatprep.subr.mxu0 0.0
        %1526 = vmatpush1.xpose.msra.mxu0 0.0
        %1527 = vmatprep.subr.mxu0 0.0
        %1528 = vmatpush1.xpose.msra.mxu0 0.0
        %1529 = vmatprep.subr.mxu0 0.0
        %1530 = vmatpush1.xpose.msra.mxu0 0.0
        %1531 = vmatprep.subr.mxu0 0.0
        %1532 = vmatpush1.xpose.msra.mxu0 0.0
        %1533 = vmatprep.subr.mxu0 0.0
        %1534 = vmatpush1.xpose.msra.mxu0 0.0
        %1535 = vmatprep.subr.mxu0 0.0
        %1536 = vmatpush1.xpose.msra.mxu0 0.0
        %1537 = vmatprep.subr.mxu0 0.0
        %1538 = vmatpush1.xpose.msra.mxu0 0.0
        %1539 = vmatprep.subr.mxu0 0.0
        %1540 = vmatpush1.xpose.msra.mxu0 0.0
        %1541 = vmatprep.subr.mxu0 0.0
        %1542 = vmatpush1.xpose.msra.mxu0 0.0
        %1543 = vmatprep.subr.mxu0 0.0
        %1544 = vmatpush1.xpose.msra.mxu0 0.0
        %1545 = vmatprep.subr.mxu0 0.0
        %1546 = vmatpush1.xpose.msra.mxu0 0.0
        %1547 = vmatprep.subr.mxu0 0.0
        %1548 = vmatpush1.xpose.msra.mxu0 0.0
        %1549 = vmatprep.mubr.f32.mxu0 0.0
        %1550 = vmatmul.mubr.f32.gmra.mrb[0].mxu0 %v1481
        %v1551 = vpop.f32.mrb[0].mxu0
        %v1552 = vadd.f32 0.0, %v1551
        %v1553 = vpop.f32.mrb[0].mxu0
        %1554 = vdwg.mxu0
        %v1555 = vmul.f32 %v1552, 0.17677669
        %v1556 = vsel %vm1079, %v1555, -inf
        %1557 = vmax.xlane.f32.xlu0 %v1556
        %v1558 = vpop.xlane.xlu0 %1557
        %v1559 = vsub.f32 %v1555, %v1558
        %v1560 = vmul.f32 %v1559, 1.442695
        %v1561 = vpow.pop %v1560
        %v1562 = vsel %vm1079, %v1561, 0.0
        %1563 = vadd.xlane.f32.xlu0 %v1562
        %v1564 = vpop.xlane.xlu0 %1563
        %v1565 = vrcp.pop %v1564
        %v1566 = vmul.f32 %v1561, %v1565
        %1567 = vrot.lane.b32.xlu0 %v998, 64
        %v1568 = vpop.permute.xlu0 %1567
        %v1571 = vsel %vm1079, %v1566, 0
        %1573 = vmatprep.subr.mxu0 0.0
        %1574 = vmatpush1.msra.mxu0 %v1568
        %1575 = vmatprep.subr.mxu0 0.0
        %1576 = vmatpush1.msra.mxu0 0.0
        %1577 = vmatprep.subr.mxu0 0.0
        %1578 = vmatpush1.msra.mxu0 0.0
        %1579 = vmatprep.subr.mxu0 0.0
        %1580 = vmatpush1.msra.mxu0 0.0
        %1581 = vmatprep.subr.mxu0 0.0
        %1582 = vmatpush1.msra.mxu0 0.0
        %1583 = vmatprep.subr.mxu0 0.0
        %1584 = vmatpush1.msra.mxu0 0.0
        %1585 = vmatprep.subr.mxu0 0.0
        %1586 = vmatpush1.msra.mxu0 0.0
        %1587 = vmatprep.subr.mxu0 0.0
        %1588 = vmatpush1.msra.mxu0 0.0
        %1589 = vmatprep.subr.mxu0 0.0
        %1590 = vmatpush1.msra.mxu0 0.0
        %1591 = vmatprep.subr.mxu0 0.0
        %1592 = vmatpush1.msra.mxu0 0.0
        %1593 = vmatprep.subr.mxu0 0.0
        %1594 = vmatpush1.msra.mxu0 0.0
        %1595 = vmatprep.subr.mxu0 0.0
        %1596 = vmatpush1.msra.mxu0 0.0
        %1597 = vmatprep.subr.mxu0 0.0
        %1598 = vmatpush1.msra.mxu0 0.0
        %1599 = vmatprep.subr.mxu0 0.0
        %1600 = vmatpush1.msra.mxu0 0.0
        %1601 = vmatprep.subr.mxu0 0.0
        %1602 = vmatpush1.msra.mxu0 0.0
        %1603 = vmatprep.subr.mxu0 0.0
        %1604 = vmatpush1.msra.mxu0 0.0
        %1605 = vmatprep.subr.mxu0 0.0
        %1606 = vmatpush1.msra.mxu0 0.0
        %1607 = vmatprep.subr.mxu0 0.0
        %1608 = vmatpush1.msra.mxu0 0.0
        %1609 = vmatprep.subr.mxu0 0.0
        %1610 = vmatpush1.msra.mxu0 0.0
        %1611 = vmatprep.subr.mxu0 0.0
        %1612 = vmatpush1.msra.mxu0 0.0
        %1613 = vmatprep.subr.mxu0 0.0
        %1614 = vmatpush1.msra.mxu0 0.0
        %1615 = vmatprep.subr.mxu0 0.0
        %1616 = vmatpush1.msra.mxu0 0.0
        %1617 = vmatprep.subr.mxu0 0.0
        %1618 = vmatpush1.msra.mxu0 0.0
        %1619 = vmatprep.subr.mxu0 0.0
        %1620 = vmatpush1.msra.mxu0 0.0
        %1621 = vmatprep.subr.mxu0 0.0
        %1622 = vmatpush1.msra.mxu0 0.0
        %1623 = vmatprep.subr.mxu0 0.0
        %1624 = vmatpush1.msra.mxu0 0.0
        %1625 = vmatprep.subr.mxu0 0.0
        %1626 = vmatpush1.msra.mxu0 0.0
        %1627 = vmatprep.subr.mxu0 0.0
        %1628 = vmatpush1.msra.mxu0 0.0
        %1629 = vmatprep.subr.mxu0 0.0
        %1630 = vmatpush1.msra.mxu0 0.0
        %1631 = vmatprep.subr.mxu0 0.0
        %1632 = vmatpush1.msra.mxu0 0.0
        %1633 = vmatprep.subr.mxu0 0.0
        %1634 = vmatpush1.msra.mxu0 0.0
        %1635 = vmatprep.subr.mxu0 0.0
        %1636 = vmatpush1.msra.mxu0 0.0
        %1637 = vmatprep.mubr.f32.mxu0 0.0
        %1638 = vmatmul.mubr.f32.gmra.mrb[0].mxu0 %v1571
        %v1639 = vpop.f32.mrb[0].mxu0
        %v1640 = vadd.f32 0.0, %v1639
        %v1641 = vpop.f32.mrb[0].mxu0
        %1642 = vdwg.mxu0
        %v1644 = vsel %vm1001, %v1640, 0
        %1646 = vmatprep.subr.mxu0 0.0
        %1647 = vmatpush1.msra.mxu0 %v762
        %1648 = vmatprep.subr.mxu0 0.0
        %1649 = vmatpush1.msra.mxu0 %v763
        %1650 = vmatprep.subr.mxu0 0.0
        %1651 = vmatpush1.msra.mxu0 %v764
        %1652 = vmatprep.subr.mxu0 0.0
        %1653 = vmatpush1.msra.mxu0 %v765
        %1654 = vmatprep.subr.mxu0 0.0
        %1655 = vmatpush1.msra.mxu0 0.0
        %1656 = vmatprep.subr.mxu0 0.0
        %1657 = vmatpush1.msra.mxu0 0.0
        %1658 = vmatprep.subr.mxu0 0.0
        %1659 = vmatpush1.msra.mxu0 0.0
        %1660 = vmatprep.subr.mxu0 0.0
        %1661 = vmatpush1.msra.mxu0 0.0
        %1662 = vmatprep.subr.mxu0 0.0
        %1663 = vmatpush1.msra.mxu0 0.0
        %1664 = vmatprep.subr.mxu0 0.0
        %1665 = vmatpush1.msra.mxu0 0.0
        %1666 = vmatprep.subr.mxu0 0.0
        %1667 = vmatpush1.msra.mxu0 0.0
        %1668 = vmatprep.subr.mxu0 0.0
        %1669 = vmatpush1.msra.mxu0 0.0
        %1670 = vmatprep.subr.mxu0 0.0
        %1671 = vmatpush1.msra.mxu0 0.0
        %1672 = vmatprep.subr.mxu0 0.0
        %1673 = vmatpush1.msra.mxu0 0.0
        %1674 = vmatprep.subr.mxu0 0.0
        %1675 = vmatpush1.msra.mxu0 0.0
        %1676 = vmatprep.subr.mxu0 0.0
        %1677 = vmatpush1.msra.mxu0 0.0
        %1678 = vmatprep.subr.mxu0 0.0
        %1679 = vmatpush1.msra.mxu0 0.0
        %1680 = vmatprep.subr.mxu0 0.0
        %1681 = vmatpush1.msra.mxu0 0.0
        %1682 = vmatprep.subr.mxu0 0.0
        %1683 = vmatpush1.msra.mxu0 0.0
        %1684 = vmatprep.subr.mxu0 0.0
        %1685 = vmatpush1.msra.mxu0 0.0
        %1686 = vmatprep.subr.mxu0 0.0
        %1687 = vmatpush1.msra.mxu0 0.0
        %1688 = vmatprep.subr.mxu0 0.0
        %1689 = vmatpush1.msra.mxu0 0.0
        %1690 = vmatprep.subr.mxu0 0.0
        %1691 = vmatpush1.msra.mxu0 0.0
        %1692 = vmatprep.subr.mxu0 0.0
        %1693 = vmatpush1.msra.mxu0 0.0
        %1694 = vmatprep.subr.mxu0 0.0
        %1695 = vmatpush1.msra.mxu0 0.0
        %1696 = vmatprep.subr.mxu0 0.0
        %1697 = vmatpush1.msra.mxu0 0.0
        %1698 = vmatprep.subr.mxu0 0.0
        %1699 = vmatpush1.msra.mxu0 0.0
        %1700 = vmatprep.subr.mxu0 0.0
        %1701 = vmatpush1.msra.mxu0 0.0
        %1702 = vmatprep.subr.mxu0 0.0
        %1703 = vmatpush1.msra.mxu0 0.0
        %1704 = vmatprep.subr.mxu0 0.0
        %1705 = vmatpush1.msra.mxu0 0.0
        %1706 = vmatprep.subr.mxu0 0.0
        %1707 = vmatpush1.msra.mxu0 0.0
        %1708 = vmatprep.subr.mxu0 0.0
        %1709 = vmatpush1.msra.mxu0 0.0
        %1710 = vmatprep.mubr.f32.mxu0 0.0
        %1711 = vmatmul.mubr.f32.gmra.mrb[0].mxu0 %v1644
        %v1712 = vpop.f32.mrb[0].mxu0
        %v1713 = vadd.f32 0.0, %v1712
        %v1714 = vpop.f32.mrb[0].mxu0
        %1715 = vdwg.mxu0
        %v1716 = vadd.f32 %v1474, %v1713
        %1717 = vrot.lane.b32.xlu0 %v844, 32
        %v1718 = vpop.permute.xlu0 %1717
        %1719 = vrot.lane.b32.xlu0 %v921, 32
        %v1720 = vpop.permute.xlu0 %1719
        %v1721 = vsel %vm1001, %v1718, 0
        %v1723 = vsel %vm1001, %v1720, 0
        %1725 = vmatprep.subr.mxu0 0.0
        %1726 = vmatpush1.xpose.msra.mxu0 %v1723
        %1727 = vmatprep.subr.mxu0 0.0
        %1728 = vmatpush1.xpose.msra.mxu0 0.0
        %1729 = vmatprep.subr.mxu0 0.0
        %1730 = vmatpush1.xpose.msra.mxu0 0.0
        %1731 = vmatprep.subr.mxu0 0.0
        %1732 = vmatpush1.xpose.msra.mxu0 0.0
        %1733 = vmatprep.subr.mxu0 0.0
        %1734 = vmatpush1.xpose.msra.mxu0 0.0
        %1735 = vmatprep.subr.mxu0 0.0
        %1736 = vmatpush1.xpose.msra.mxu0 0.0
        %1737 = vmatprep.subr.mxu0 0.0
        %1738 = vmatpush1.xpose.msra.mxu0 0.0
        %1739 = vmatprep.subr.mxu0 0.0
        %1740 = vmatpush1.xpose.msra.mxu0 0.0
        %1741 = vmatprep.subr.mxu0 0.0
        %1742 = vmatpush1.xpose.msra.mxu0 0.0
        %1743 = vmatprep.subr.mxu0 0.0
        %1744 = vmatpush1.xpose.msra.mxu0 0.0
        %1745 = vmatprep.subr.mxu0 0.0
        %1746 = vmatpush1.xpose.msra.mxu0 0.0
        %1747 = vmatprep.subr.mxu0 0.0
        %1748 = vmatpush1.xpose.msra.mxu0 0.0
        %1749 = vmatprep.subr.mxu0 0.0
        %1750 = vmatpush1.xpose.msra.mxu0 0.0
        %1751 = vmatprep.subr.mxu0 0.0
        %1752 = vmatpush1.xpose.msra.mxu0 0.0
        %1753 = vmatprep.subr.mxu0 0.0
        %1754 = vmatpush1.xpose.msra.mxu0 0.0
        %1755 = vmatprep.subr.mxu0 0.0
        %1756 = vmatpush1.xpose.msra.mxu0 0.0
        %1757 = vmatprep.subr.mxu0 0.0
        %1758 = vmatpush1.xpose.msra.mxu0 0.0
        %1759 = vmatprep.subr.mxu0 0.0
        %1760 = vmatpush1.xpose.msra.mxu0 0.0
        %1761 = vmatprep.subr.mxu0 0.0
        %1762 = vmatpush1.xpose.msra.mxu0 0.0
        %1763 = vmatprep.subr.mxu0 0.0
        %1764 = vmatpush1.xpose.msra.mxu0 0.0
        %1765 = vmatprep.subr.mxu0 0.0
        %1766 = vmatpush1.xpose.msra.mxu0 0.0
        %1767 = vmatprep.subr.mxu0 0.0
        %1768 = vmatpush1.xpose.msra.mxu0 0.0
        %1769 = vmatprep.subr.mxu0 0.0
        %1770 = vmatpush1.xpose.msra.mxu0 0.0
        %1771 = vmatprep.subr.mxu0 0.0
        %1772 = vmatpush1.xpose.msra.mxu0 0.0
        %1773 = vmatprep.subr.mxu0 0.0
        %1774 = vmatpush1.xpose.msra.mxu0 0.0
        %1775 = vmatprep.subr.mxu0 0.0
        %1776 = vmatpush1.xpose.msra.mxu0 0.0
        %1777 = vmatprep.subr.mxu0 0.0
        %1778 = vmatpush1.xpose.msra.mxu0 0.0
        %1779 = vmatprep.subr.mxu0 0.0
        %1780 = vmatpush1.xpose.msra.mxu0 0.0
        %1781 = vmatprep.subr.mxu0 0.0
        %1782 = vmatpush1.xpose.msra.mxu0 0.0
        %1783 = vmatprep.subr.mxu0 0.0
        %1784 = vmatpush1.xpose.msra.mxu0 0.0
        %1785 = vmatprep.subr.mxu0 0.0
        %1786 = vmatpush1.xpose.msra.mxu0 0.0
        %1787 = vmatprep.subr.mxu0 0.0
        %1788 = vmatpush1.xpose.msra.mxu0 0.0
        %1789 = vmatprep.mubr.f32.mxu0 0.0
        %1790 = vmatmul.mubr.f32.gmra.mrb[0].mxu0 %v1721
        %v1791 = vpop.f32.mrb[0].mxu0
        %v1792 = vadd.f32 0.0, %v1791
        %v1793 = vpop.f32.mrb[0].mxu0
        %1794 = vdwg.mxu0
        %v1795 = vmul.f32 %v1792, 0.17677669
        %v1796 = vsel %vm1079, %v1795, -inf
        %1797 = vmax.xlane.f32.xlu0 %v1796
        %v1798 = vpop.xlane.xlu0 %1797
        %v1799 = vsub.f32 %v1795, %v1798
        %v1800 = vmul.f32 %v1799, 1.442695
        %v1801 = vpow.pop %v1800
        %v1802 = vsel %vm1079, %v1801, 0.0
        %1803 = vadd.xlane.f32.xlu0 %v1802
        %v1804 = vpop.xlane.xlu0 %1803
        %v1805 = vrcp.pop %v1804
        %v1806 = vmul.f32 %v1801, %v1805
        %1807 = vrot.lane.b32.xlu0 %v998, 32
        %v1808 = vpop.permute.xlu0 %1807
        %v1811 = vsel %vm1079, %v1806, 0
        %1813 = vmatprep.subr.mxu0 0.0
        %1814 = vmatpush1.msra.mxu0 %v1808
        %1815 = vmatprep.subr.mxu0 0.0
        %1816 = vmatpush1.msra.mxu0 0.0
        %1817 = vmatprep.subr.mxu0 0.0
        %1818 = vmatpush1.msra.mxu0 0.0
        %1819 = vmatprep.subr.mxu0 0.0
        %1820 = vmatpush1.msra.mxu0 0.0
        %1821 = vmatprep.subr.mxu0 0.0
        %1822 = vmatpush1.msra.mxu0 0.0
        %1823 = vmatprep.subr.mxu0 0.0
        %1824 = vmatpush1.msra.mxu0 0.0
        %1825 = vmatprep.subr.mxu0 0.0
        %1826 = vmatpush1.msra.mxu0 0.0
        %1827 = vmatprep.subr.mxu0 0.0
        %1828 = vmatpush1.msra.mxu0 0.0
        %1829 = vmatprep.subr.mxu0 0.0
        %1830 = vmatpush1.msra.mxu0 0.0
        %1831 = vmatprep.subr.mxu0 0.0
        %1832 = vmatpush1.msra.mxu0 0.0
        %1833 = vmatprep.subr.mxu0 0.0
        %1834 = vmatpush1.msra.mxu0 0.0
        %1835 = vmatprep.subr.mxu0 0.0
        %1836 = vmatpush1.msra.mxu0 0.0
        %1837 = vmatprep.subr.mxu0 0.0
        %1838 = vmatpush1.msra.mxu0 0.0
        %1839 = vmatprep.subr.mxu0 0.0
        %1840 = vmatpush1.msra.mxu0 0.0
        %1841 = vmatprep.subr.mxu0 0.0
        %1842 = vmatpush1.msra.mxu0 0.0
        %1843 = vmatprep.subr.mxu0 0.0
        %1844 = vmatpush1.msra.mxu0 0.0
        %1845 = vmatprep.subr.mxu0 0.0
        %1846 = vmatpush1.msra.mxu0 0.0
        %1847 = vmatprep.subr.mxu0 0.0
        %1848 = vmatpush1.msra.mxu0 0.0
        %1849 = vmatprep.subr.mxu0 0.0
        %1850 = vmatpush1.msra.mxu0 0.0
        %1851 = vmatprep.subr.mxu0 0.0
        %1852 = vmatpush1.msra.mxu0 0.0
        %1853 = vmatprep.subr.mxu0 0.0
        %1854 = vmatpush1.msra.mxu0 0.0
        %1855 = vmatprep.subr.mxu0 0.0
        %1856 = vmatpush1.msra.mxu0 0.0
        %1857 = vmatprep.subr.mxu0 0.0
        %1858 = vmatpush1.msra.mxu0 0.0
        %1859 = vmatprep.subr.mxu0 0.0
        %1860 = vmatpush1.msra.mxu0 0.0
        %1861 = vmatprep.subr.mxu0 0.0
        %1862 = vmatpush1.msra.mxu0 0.0
        %1863 = vmatprep.subr.mxu0 0.0
        %1864 = vmatpush1.msra.mxu0 0.0
        %1865 = vmatprep.subr.mxu0 0.0
        %1866 = vmatpush1.msra.mxu0 0.0
        %1867 = vmatprep.subr.mxu0 0.0
        %1868 = vmatpush1.msra.mxu0 0.0
        %1869 = vmatprep.subr.mxu0 0.0
        %1870 = vmatpush1.msra.mxu0 0.0
        %1871 = vmatprep.subr.mxu0 0.0
        %1872 = vmatpush1.msra.mxu0 0.0
        %1873 = vmatprep.subr.mxu0 0.0
        %1874 = vmatpush1.msra.mxu0 0.0
        %1875 = vmatprep.subr.mxu0 0.0
        %1876 = vmatpush1.msra.mxu0 0.0
        %1877 = vmatprep.mubr.f32.mxu0 0.0
        %1878 = vmatmul.mubr.f32.gmra.mrb[0].mxu0 %v1811
        %v1879 = vpop.f32.mrb[0].mxu0
        %v1880 = vadd.f32 0.0, %v1879
        %v1881 = vpop.f32.mrb[0].mxu0
        %1882 = vdwg.mxu0
        %v1884 = vsel %vm1001, %v1880, 0
        %1886 = vmatprep.subr.mxu0 0.0
        %1887 = vmatpush1.msra.mxu0 %v766
        %1888 = vmatprep.subr.mxu0 0.0
        %1889 = vmatpush1.msra.mxu0 %v767
        %1890 = vmatprep.subr.mxu0 0.0
        %1891 = vmatpush1.msra.mxu0 %v768
        %1892 = vmatprep.subr.mxu0 0.0
        %1893 = vmatpush1.msra.mxu0 %v769
        %1894 = vmatprep.subr.mxu0 0.0
        %1895 = vmatpush1.msra.mxu0 0.0
        %1896 = vmatprep.subr.mxu0 0.0
        %1897 = vmatpush1.msra.mxu0 0.0
        %1898 = vmatprep.subr.mxu0 0.0
        %1899 = vmatpush1.msra.mxu0 0.0
        %1900 = vmatprep.subr.mxu0 0.0
        %1901 = vmatpush1.msra.mxu0 0.0
        %1902 = vmatprep.subr.mxu0 0.0
        %1903 = vmatpush1.msra.mxu0 0.0
        %1904 = vmatprep.subr.mxu0 0.0
        %1905 = vmatpush1.msra.mxu0 0.0
        %1906 = vmatprep.subr.mxu0 0.0
        %1907 = vmatpush1.msra.mxu0 0.0
        %1908 = vmatprep.subr.mxu0 0.0
        %1909 = vmatpush1.msra.mxu0 0.0
        %1910 = vmatprep.subr.mxu0 0.0
        %1911 = vmatpush1.msra.mxu0 0.0
        %1912 = vmatprep.subr.mxu0 0.0
        %1913 = vmatpush1.msra.mxu0 0.0
        %1914 = vmatprep.subr.mxu0 0.0
        %1915 = vmatpush1.msra.mxu0 0.0
        %1916 = vmatprep.subr.mxu0 0.0
        %1917 = vmatpush1.msra.mxu0 0.0
        %1918 = vmatprep.subr.mxu0 0.0
        %1919 = vmatpush1.msra.mxu0 0.0
        %1920 = vmatprep.subr.mxu0 0.0
        %1921 = vmatpush1.msra.mxu0 0.0
        %1922 = vmatprep.subr.mxu0 0.0
        %1923 = vmatpush1.msra.mxu0 0.0
        %1924 = vmatprep.subr.mxu0 0.0
        %1925 = vmatpush1.msra.mxu0 0.0
        %1926 = vmatprep.subr.mxu0 0.0
        %1927 = vmatpush1.msra.mxu0 0.0
        %1928 = vmatprep.subr.mxu0 0.0
        %1929 = vmatpush1.msra.mxu0 0.0
        %1930 = vmatprep.subr.mxu0 0.0
        %1931 = vmatpush1.msra.mxu0 0.0
        %1932 = vmatprep.subr.mxu0 0.0
        %1933 = vmatpush1.msra.mxu0 0.0
        %1934 = vmatprep.subr.mxu0 0.0
        %1935 = vmatpush1.msra.mxu0 0.0
        %1936 = vmatprep.subr.mxu0 0.0
        %1937 = vmatpush1.msra.mxu0 0.0
        %1938 = vmatprep.subr.mxu0 0.0
        %1939 = vmatpush1.msra.mxu0 0.0
        %1940 = vmatprep.subr.mxu0 0.0
        %1941 = vmatpush1.msra.mxu0 0.0
        %1942 = vmatprep.subr.mxu0 0.0
        %1943 = vmatpush1.msra.mxu0 0.0
        %1944 = vmatprep.subr.mxu0 0.0
        %1945 = vmatpush1.msra.mxu0 0.0
        %1946 = vmatprep.subr.mxu0 0.0
        %1947 = vmatpush1.msra.mxu0 0.0
        %1948 = vmatprep.subr.mxu0 0.0
        %1949 = vmatpush1.msra.mxu0 0.0
        %1950 = vmatprep.mubr.f32.mxu0 0.0
        %1951 = vmatmul.mubr.f32.gmra.mrb[0].mxu0 %v1884
        %v1952 = vpop.f32.mrb[0].mxu0
        %v1953 = vadd.f32 0.0, %v1952
        %v1954 = vpop.f32.mrb[0].mxu0
        %1955 = vdwg.mxu0
        %v1956 = vadd.f32 %v1716, %v1953
        %v1957 = vld [vmem:[%s8] sm:$0x1]
        %v1959 = vlaneseq
        %v1960 = vshrl.u32 %v1959, 7
        %v1961 = vsub.s32 0, %v1960
        %v1962 = vrot.slane %v1957, %v1961
        %v1964 = vadd.f32 %v1956, %v1962
        %v1965 = vadd.f32 %v705, %v1964
        %v1966 = vld [vmem:[%s13] sm:$0x1]
        %v1967 = vld [vmem:[%s14] sm:$0x1]
        %1968 = vadd.xlane.f32.xlu0 %v1965
        %v1969 = vpop.xlane.xlu0 %1968
        %v1970 = vrcp.pop 128.0
        %v1971 = vmul.f32 %v1969, %v1970
        %v1972 = vsub.f32 %v1965, %v1971
        %v1973 = vmul.f32 %v1972, %v1972
        %1974 = vadd.xlane.f32.xlu0 %v1973
        %v1975 = vpop.xlane.xlu0 %1974
        %v1976 = vmul.f32 %v1975, %v1970
        %v1977 = vadd.f32 %v1976, 1e-05
        %v1978 = vrsqrt.pop %v1977
        %v1979 = vmul.f32 %v1972, %v1978
        %v1981 = vlaneseq
        %v1982 = vshrl.u32 %v1981, 7
        %v1983 = vsub.s32 0, %v1982
        %v1984 = vrot.slane %v1966, %v1983
        %v1986 = vmul.f32 %v1979, %v1984
        %v1988 = vlaneseq
        %v1989 = vshrl.u32 %v1988, 7
        %v1990 = vsub.s32 0, %v1989
        %v1991 = vrot.slane %v1967, %v1990
        %v1993 = vadd.f32 %v1986, %v1991
        %v1994 = vld [vmem:[#allocation11] sm:$0xff]
        %v1995 = vld [vmem:[#allocation11 + $0x8] sm:$0xff]
        %v1996 = vld [vmem:[#allocation11 + $0x10] sm:$0xff]
        %v1997 = vld [vmem:[#allocation11 + $0x18] sm:$0xff]
        %v1998 = vld [vmem:[#allocation11 + $0x20] sm:$0xff]
        %v1999 = vld [vmem:[#allocation11 + $0x28] sm:$0xff]
        %v2000 = vld [vmem:[#allocation11 + $0x30] sm:$0xff]
        %v2001 = vld [vmem:[#allocation11 + $0x38] sm:$0xff]
        %v2002 = vld [vmem:[#allocation11 + $0x40] sm:$0xff]
        %v2003 = vld [vmem:[#allocation11 + $0x48] sm:$0xff]
        %v2004 = vld [vmem:[#allocation11 + $0x50] sm:$0xff]
        %v2005 = vld [vmem:[#allocation11 + $0x58] sm:$0xff]
        %v2006 = vld [vmem:[#allocation11 + $0x60] sm:$0xff]
        %v2007 = vld [vmem:[#allocation11 + $0x68] sm:$0xff]
        %v2008 = vld [vmem:[#allocation11 + $0x70] sm:$0xff]
        %v2009 = vld [vmem:[#allocation11 + $0x78] sm:$0xff]
        %v2010 = vld [vmem:[#allocation11 + $0x80] sm:$0xff]
        %v2011 = vld [vmem:[#allocation11 + $0x88] sm:$0xff]
        %v2012 = vld [vmem:[#allocation11 + $0x90] sm:$0xff]
        %v2013 = vld [vmem:[#allocation11 + $0x98] sm:$0xff]
        %v2014 = vld [vmem:[#allocation11 + $0xa0] sm:$0xff]
        %v2015 = vld [vmem:[#allocation11 + $0xa8] sm:$0xff]
        %v2016 = vld [vmem:[#allocation11 + $0xb0] sm:$0xff]
        %v2017 = vld [vmem:[#allocation11 + $0xb8] sm:$0xff]
        %v2018 = vld [vmem:[#allocation11 + $0xc0] sm:$0xff]
        %v2019 = vld [vmem:[#allocation11 + $0xc8] sm:$0xff]
        %v2020 = vld [vmem:[#allocation11 + $0xd0] sm:$0xff]
        %v2021 = vld [vmem:[#allocation11 + $0xd8] sm:$0xff]
        %v2022 = vld [vmem:[#allocation11 + $0xe0] sm:$0xff]
        %v2023 = vld [vmem:[#allocation11 + $0xe8] sm:$0xff]
        %v2024 = vld [vmem:[#allocation11 + $0xf0] sm:$0xff]
        %v2025 = vld [vmem:[#allocation11 + $0xf8] sm:$0xff]
        %v2026 = vld [vmem:[%s10] sm:$0x3]
        %v2028 = vlaneseq
        %v2029 = vshrl.u32 %v2028, 7
        %v2030 = vsub.s32 0, %v2029
        %v2031 = vrot.slane %v2026, %v2030
        %v2032 = vlaneseq
        %v2033 = vshrl.u32 %v2032, 7
        %v2034 = vsub.s32 1, %v2033
        %v2035 = vrot.slane %v2026, %v2034
        %2038 = vmatprep.subr.mxu0 %v1995
        %2039 = vmatpush1.msra.mxu0 %v1994
        %2040 = vmatprep.subr.mxu0 %v1997
        %2041 = vmatpush1.msra.mxu0 %v1996
        %2042 = vmatprep.subr.mxu0 %v1999
        %2043 = vmatpush1.msra.mxu0 %v1998
        %2044 = vmatprep.subr.mxu0 %v2001
        %2045 = vmatpush1.msra.mxu0 %v2000
        %2046 = vmatprep.subr.mxu0 %v2003
        %2047 = vmatpush1.msra.mxu0 %v2002
        %2048 = vmatprep.subr.mxu0 %v2005
        %2049 = vmatpush1.msra.mxu0 %v2004
        %2050 = vmatprep.subr.mxu0 %v2007
        %2051 = vmatpush1.msra.mxu0 %v2006
        %2052 = vmatprep.subr.mxu0 %v2009
        %2053 = vmatpush1.msra.mxu0 %v2008
        %2054 = vmatprep.subr.mxu0 %v2011
        %2055 = vmatpush1.msra.mxu0 %v2010
        %2056 = vmatprep.subr.mxu0 %v2013
        %2057 = vmatpush1.msra.mxu0 %v2012
        %2058 = vmatprep.subr.mxu0 %v2015
        %2059 = vmatpush1.msra.mxu0 %v2014
        %2060 = vmatprep.subr.mxu0 %v2017
        %2061 = vmatpush1.msra.mxu0 %v2016
        %2062 = vmatprep.subr.mxu0 %v2019
        %2063 = vmatpush1.msra.mxu0 %v2018
        %2064 = vmatprep.subr.mxu0 %v2021
        %2065 = vmatpush1.msra.mxu0 %v2020
        %2066 = vmatprep.subr.mxu0 %v2023
        %2067 = vmatpush1.msra.mxu0 %v2022
        %2068 = vmatprep.subr.mxu0 %v2025
        %2069 = vmatpush1.msra.mxu0 %v2024
        %2070 = vmatprep.subr.mxu0 0.0
        %2071 = vmatpush1.msra.mxu0 0.0
        %2072 = vmatprep.subr.mxu0 0.0
        %2073 = vmatpush1.msra.mxu0 0.0
        %2074 = vmatprep.subr.mxu0 0.0
        %2075 = vmatpush1.msra.mxu0 0.0
        %2076 = vmatprep.subr.mxu0 0.0
        %2077 = vmatpush1.msra.mxu0 0.0
        %2078 = vmatprep.subr.mxu0 0.0
        %2079 = vmatpush1.msra.mxu0 0.0
        %2080 = vmatprep.subr.mxu0 0.0
        %2081 = vmatpush1.msra.mxu0 0.0
        %2082 = vmatprep.subr.mxu0 0.0
        %2083 = vmatpush1.msra.mxu0 0.0
        %2084 = vmatprep.subr.mxu0 0.0
        %2085 = vmatpush1.msra.mxu0 0.0
        %2086 = vmatprep.subr.mxu0 0.0
        %2087 = vmatpush1.msra.mxu0 0.0
        %2088 = vmatprep.subr.mxu0 0.0
        %2089 = vmatpush1.msra.mxu0 0.0
        %2090 = vmatprep.subr.mxu0 0.0
        %2091 = vmatpush1.msra.mxu0 0.0
        %2092 = vmatprep.subr.mxu0 0.0
        %2093 = vmatpush1.msra.mxu0 0.0
        %2094 = vmatprep.subr.mxu0 0.0
        %2095 = vmatpush1.msra.mxu0 0.0
        %2096 = vmatprep.subr.mxu0 0.0
        %2097 = vmatpush1.msra.mxu0 0.0
        %2098 = vmatprep.subr.mxu0 0.0
        %2099 = vmatpush1.msra.mxu0 0.0
        %2100 = vmatprep.subr.mxu0 0.0
        %2101 = vmatpush1.msra.mxu0 0.0
        %2102 = vmatprep.mubr.f32.mxu0 0.0
        %2103 = vmatmul.mubr.f32.gmra.mrb[0].mxu0 %v1993
        %v2104 = vpop.f32.mrb[0].mxu0
        %v2105 = vadd.f32 %v2031, %v2104
        %v2106 = vpop.f32.mrb[0].mxu0
        %v2107 = vadd.f32 %v2035, %v2106
        %2108 = vdwg.mxu0
        %v2109 = vmax.f32 %v2105, 0.0
        %v2110 = vmax.f32 %v2107, 0.0
        %v2111 = vld [vmem:[#allocation13] sm:$0xff]
        %v2112 = vld [vmem:[#allocation13 + $0x8] sm:$0xff]
        %v2113 = vld [vmem:[#allocation13 + $0x10] sm:$0xff]
        %v2114 = vld [vmem:[#allocation13 + $0x18] sm:$0xff]
        %v2115 = vld [vmem:[#allocation13 + $0x20] sm:$0xff]
        %v2116 = vld [vmem:[#allocation13 + $0x28] sm:$0xff]
        %v2117 = vld [vmem:[#allocation13 + $0x30] sm:$0xff]
        %v2118 = vld [vmem:[#allocation13 + $0x38] sm:$0xff]
        %v2119 = vld [vmem:[#allocation13 + $0x40] sm:$0xff]
        %v2120 = vld [vmem:[#allocation13 + $0x48] sm:$0xff]
        %v2121 = vld [vmem:[#allocation13 + $0x50] sm:$0xff]
        %v2122 = vld [vmem:[#allocation13 + $0x58] sm:$0xff]
        %v2123 = vld [vmem:[#allocation13 + $0x60] sm:$0xff]
        %v2124 = vld [vmem:[#allocation13 + $0x68] sm:$0xff]
        %v2125 = vld [vmem:[#allocation13 + $0x70] sm:$0xff]
        %v2126 = vld [vmem:[#allocation13 + $0x78] sm:$0xff]
        %v2127 = vld [vmem:[#allocation13 + $0x80] sm:$0xff]
        %v2128 = vld [vmem:[#allocation13 + $0x88] sm:$0xff]
        %v2129 = vld [vmem:[#allocation13 + $0x90] sm:$0xff]
        %v2130 = vld [vmem:[#allocation13 + $0x98] sm:$0xff]
        %v2131 = vld [vmem:[#allocation13 + $0xa0] sm:$0xff]
        %v2132 = vld [vmem:[#allocation13 + $0xa8] sm:$0xff]
        %v2133 = vld [vmem:[#allocation13 + $0xb0] sm:$0xff]
        %v2134 = vld [vmem:[#allocation13 + $0xb8] sm:$0xff]
        %v2135 = vld [vmem:[#allocation13 + $0xc0] sm:$0xff]
        %v2136 = vld [vmem:[#allocation13 + $0xc8] sm:$0xff]
        %v2137 = vld [vmem:[#allocation13 + $0xd0] sm:$0xff]
        %v2138 = vld [vmem:[#allocation13 + $0xd8] sm:$0xff]
        %v2139 = vld [vmem:[#allocation13 + $0xe0] sm:$0xff]
        %v2140 = vld [vmem:[#allocation13 + $0xe8] sm:$0xff]
        %v2141 = vld [vmem:[#allocation13 + $0xf0] sm:$0xff]
        %v2142 = vld [vmem:[#allocation13 + $0xf8] sm:$0xff]
        %v2143 = vld [vmem:[%s12] sm:$0x1]
        %v2145 = vlaneseq
        %v2146 = vshrl.u32 %v2145, 7
        %v2147 = vsub.s32 0, %v2146
        %v2148 = vrot.slane %v2143, %v2147
        %2150 = vmatprep.subr.mxu0 0.0
        %2151 = vmatpush1.msra.mxu0 %v2111
        %2152 = vmatprep.subr.mxu0 0.0
        %2153 = vmatpush1.msra.mxu0 %v2112
        %2154 = vmatprep.subr.mxu0 0.0
        %2155 = vmatpush1.msra.mxu0 %v2113
        %2156 = vmatprep.subr.mxu0 0.0
        %2157 = vmatpush1.msra.mxu0 %v2114
        %2158 = vmatprep.subr.mxu0 0.0
        %2159 = vmatpush1.msra.mxu0 %v2115
        %2160 = vmatprep.subr.mxu0 0.0
        %2161 = vmatpush1.msra.mxu0 %v2116
        %2162 = vmatprep.subr.mxu0 0.0
        %2163 = vmatpush1.msra.mxu0 %v2117
        %2164 = vmatprep.subr.mxu0 0.0
        %2165 = vmatpush1.msra.mxu0 %v2118
        %2166 = vmatprep.subr.mxu0 0.0
        %2167 = vmatpush1.msra.mxu0 %v2119
        %2168 = vmatprep.subr.mxu0 0.0
        %2169 = vmatpush1.msra.mxu0 %v2120
        %2170 = vmatprep.subr.mxu0 0.0
        %2171 = vmatpush1.msra.mxu0 %v2121
        %2172 = vmatprep.subr.mxu0 0.0
        %2173 = vmatpush1.msra.mxu0 %v2122
        %2174 = vmatprep.subr.mxu0 0.0
        %2175 = vmatpush1.msra.mxu0 %v2123
        %2176 = vmatprep.subr.mxu0 0.0
        %2177 = vmatpush1.msra.mxu0 %v2124
        %2178 = vmatprep.subr.mxu0 0.0
        %2179 = vmatpush1.msra.mxu0 %v2125
        %2180 = vmatprep.subr.mxu0 0.0
        %2181 = vmatpush1.msra.mxu0 %v2126
        %2182 = vmatprep.subr.mxu0 0.0
        %2183 = vmatpush1.msra.mxu0 %v2127
        %2184 = vmatprep.subr.mxu0 0.0
        %2185 = vmatpush1.msra.mxu0 %v2128
        %2186 = vmatprep.subr.mxu0 0.0
        %2187 = vmatpush1.msra.mxu0 %v2129
        %2188 = vmatprep.subr.mxu0 0.0
        %2189 = vmatpush1.msra.mxu0 %v2130
        %2190 = vmatprep.subr.mxu0 0.0
        %2191 = vmatpush1.msra.mxu0 %v2131
        %2192 = vmatprep.subr.mxu0 0.0
        %2193 = vmatpush1.msra.mxu0 %v2132
        %2194 = vmatprep.subr.mxu0 0.0
        %2195 = vmatpush1.msra.mxu0 %v2133
        %2196 = vmatprep.subr.mxu0 0.0
        %2197 = vmatpush1.msra.mxu0 %v2134
        %2198 = vmatprep.subr.mxu0 0.0
        %2199 = vmatpush1.msra.mxu0 %v2135
        %2200 = vmatprep.subr.mxu0 0.0
        %2201 = vmatpush1.msra.mxu0 %v2136
        %2202 = vmatprep.subr.mxu0 0.0
        %2203 = vmatpush1.msra.mxu0 %v2137
        %2204 = vmatprep.subr.mxu0 0.0
        %2205 = vmatpush1.msra.mxu0 %v2138
        %2206 = vmatprep.subr.mxu0 0.0
        %2207 = vmatpush1.msra.mxu0 %v2139
        %2208 = vmatprep.subr.mxu0 0.0
        %2209 = vmatpush1.msra.mxu0 %v2140
        %2210 = vmatprep.subr.mxu0 0.0
        %2211 = vmatpush1.msra.mxu0 %v2141
        %2212 = vmatprep.subr.mxu0 0.0
        %2213 = vmatpush1.msra.mxu0 %v2142
        %2214 = vmatprep.mubr.f32.mxu0 %v2110
        %2215 = vmatmul.mubr.f32.gmra.mrb[0].mxu0 %v2109
        %v2216 = vpop.f32.mrb[0].mxu0
        %v2217 = vadd.f32 %v2148, %v2216
        %v2218 = vpop.f32.mrb[0].mxu0
        %2219 = vdwg.mxu0
        %v2220 = vadd.f32 %v1993, %v2217
        %v2221 = vld [vmem:[%s15] sm:$0x1]
        %v2222 = vld [vmem:[%s16] sm:$0x1]
        %2223 = vadd.xlane.f32.xlu0 %v2220
        %v2224 = vpop.xlane.xlu0 %2223
        %v2225 = vmul.f32 %v2224, %v1970
        %v2226 = vsub.f32 %v2220, %v2225
        %v2227 = vmul.f32 %v2226, %v2226
        %2228 = vadd.xlane.f32.xlu0 %v2227
        %v2229 = vpop.xlane.xlu0 %2228
        %v2230 = vmul.f32 %v2229, %v1970
        %v2231 = vadd.f32 %v2230, 1e-05
        %v2232 = vrsqrt.pop %v2231
        %v2233 = vmul.f32 %v2226, %v2232
        %v2235 = vlaneseq
        %v2236 = vshrl.u32 %v2235, 7
        %v2237 = vsub.s32 0, %v2236
        %v2238 = vrot.slane %v2221, %v2237
        %v2240 = vmul.f32 %v2233, %v2238
        %v2242 = vlaneseq
        %v2243 = vshrl.u32 %v2242, 7
        %v2244 = vsub.s32 0, %v2243
        %v2245 = vrot.slane %v2222, %v2244
        %v2247 = vadd.f32 %v2240, %v2245
        %s2248 = scalar_lea.vmem [#allocation5], 128
        %v2249 = vld [vmem:[%s2248] sm:$0xff]
        %v2250 = vld [vmem:[%s2248 + $0x8] sm:$0xff]
        %v2251 = vld [vmem:[%s2248 + $0x10] sm:$0xff]
        %v2252 = vld [vmem:[%s2248 + $0x18] sm:$0xff]
        %v2253 = vld [vmem:[%s2248 + $0x20] sm:$0xff]
        %v2254 = vld [vmem:[%s2248 + $0x28] sm:$0xff]
        %v2255 = vld [vmem:[%s2248 + $0x30] sm:$0xff]
        %v2256 = vld [vmem:[%s2248 + $0x38] sm:$0xff]
        %v2257 = vld [vmem:[%s2248 + $0x40] sm:$0xff]
        %v2258 = vld [vmem:[%s2248 + $0x48] sm:$0xff]
        %v2259 = vld [vmem:[%s2248 + $0x50] sm:$0xff]
        %v2260 = vld [vmem:[%s2248 + $0x58] sm:$0xff]
        %v2261 = vld [vmem:[%s2248 + $0x60] sm:$0xff]
        %v2262 = vld [vmem:[%s2248 + $0x68] sm:$0xff]
        %v2263 = vld [vmem:[%s2248 + $0x70] sm:$0xff]
        %v2264 = vld [vmem:[%s2248 + $0x78] sm:$0xff]
        %s2265 = scalar_lea.vmem [#allocation7], 128
        %v2266 = vld [vmem:[%s2265] sm:$0xff]
        %v2267 = vld [vmem:[%s2265 + $0x8] sm:$0xff]
        %v2268 = vld [vmem:[%s2265 + $0x10] sm:$0xff]
        %v2269 = vld [vmem:[%s2265 + $0x18] sm:$0xff]
        %v2270 = vld [vmem:[%s2265 + $0x20] sm:$0xff]
        %v2271 = vld [vmem:[%s2265 + $0x28] sm:$0xff]
        %v2272 = vld [vmem:[%s2265 + $0x30] sm:$0xff]
        %v2273 = vld [vmem:[%s2265 + $0x38] sm:$0xff]
        %v2274 = vld [vmem:[%s2265 + $0x40] sm:$0xff]
        %v2275 = vld [vmem:[%s2265 + $0x48] sm:$0xff]
        %v2276 = vld [vmem:[%s2265 + $0x50] sm:$0xff]
        %v2277 = vld [vmem:[%s2265 + $0x58] sm:$0xff]
        %v2278 = vld [vmem:[%s2265 + $0x60] sm:$0xff]
        %v2279 = vld [vmem:[%s2265 + $0x68] sm:$0xff]
        %v2280 = vld [vmem:[%s2265 + $0x70] sm:$0xff]
        %v2281 = vld [vmem:[%s2265 + $0x78] sm:$0xff]
        %s2282 = scalar_lea.vmem [#allocation8], 128
        %v2283 = vld [vmem:[%s2282] sm:$0xff]
        %v2284 = vld [vmem:[%s2282 + $0x8] sm:$0xff]
        %v2285 = vld [vmem:[%s2282 + $0x10] sm:$0xff]
        %v2286 = vld [vmem:[%s2282 + $0x18] sm:$0xff]
        %v2287 = vld [vmem:[%s2282 + $0x20] sm:$0xff]
        %v2288 = vld [vmem:[%s2282 + $0x28] sm:$0xff]
        %v2289 = vld [vmem:[%s2282 + $0x30] sm:$0xff]
        %v2290 = vld [vmem:[%s2282 + $0x38] sm:$0xff]
        %v2291 = vld [vmem:[%s2282 + $0x40] sm:$0xff]
        %v2292 = vld [vmem:[%s2282 + $0x48] sm:$0xff]
        %v2293 = vld [vmem:[%s2282 + $0x50] sm:$0xff]
        %v2294 = vld [vmem:[%s2282 + $0x58] sm:$0xff]
        %v2295 = vld [vmem:[%s2282 + $0x60] sm:$0xff]
        %v2296 = vld [vmem:[%s2282 + $0x68] sm:$0xff]
        %v2297 = vld [vmem:[%s2282 + $0x70] sm:$0xff]
        %v2298 = vld [vmem:[%s2282 + $0x78] sm:$0xff]
        %s2299 = scalar_lea.vmem [#allocation10], 128
        %v2300 = vld [vmem:[%s2299] sm:$0xff]
        %v2301 = vld [vmem:[%s2299 + $0x8] sm:$0xff]
        %v2302 = vld [vmem:[%s2299 + $0x10] sm:$0xff]
        %v2303 = vld [vmem:[%s2299 + $0x18] sm:$0xff]
        %v2304 = vld [vmem:[%s2299 + $0x20] sm:$0xff]
        %v2305 = vld [vmem:[%s2299 + $0x28] sm:$0xff]
        %v2306 = vld [vmem:[%s2299 + $0x30] sm:$0xff]
        %v2307 = vld [vmem:[%s2299 + $0x38] sm:$0xff]
        %v2308 = vld [vmem:[%s2299 + $0x40] sm:$0xff]
        %v2309 = vld [vmem:[%s2299 + $0x48] sm:$0xff]
        %v2310 = vld [vmem:[%s2299 + $0x50] sm:$0xff]
        %v2311 = vld [vmem:[%s2299 + $0x58] sm:$0xff]
        %v2312 = vld [vmem:[%s2299 + $0x60] sm:$0xff]
        %v2313 = vld [vmem:[%s2299 + $0x68] sm:$0xff]
        %v2314 = vld [vmem:[%s2299 + $0x70] sm:$0xff]
        %v2315 = vld [vmem:[%s2299 + $0x78] sm:$0xff]
        %s2316 = scalar_lea.vmem %s5, 1
        %v2317 = vld [vmem:[%s2316] sm:$0x1]
        %v2319 = vlaneseq
        %v2320 = vshrl.u32 %v2319, 7
        %v2321 = vsub.s32 0, %v2320
        %v2322 = vrot.slane %v2317, %v2321
        %2324 = vmatprep.subr.mxu0 0.0
        %2325 = vmatpush1.msra.mxu0 %v2249
        %2326 = vmatprep.subr.mxu0 0.0
        %2327 = vmatpush1.msra.mxu0 %v2250
        %2328 = vmatprep.subr.mxu0 0.0
        %2329 = vmatpush1.msra.mxu0 %v2251
        %2330 = vmatprep.subr.mxu0 0.0
        %2331 = vmatpush1.msra.mxu0 %v2252
        %2332 = vmatprep.subr.mxu0 0.0
        %2333 = vmatpush1.msra.mxu0 %v2253
        %2334 = vmatprep.subr.mxu0 0.0
        %2335 = vmatpush1.msra.mxu0 %v2254
        %2336 = vmatprep.subr.mxu0 0.0
        %2337 = vmatpush1.msra.mxu0 %v2255
        %2338 = vmatprep.subr.mxu0 0.0
        %2339 = vmatpush1.msra.mxu0 %v2256
        %2340 = vmatprep.subr.mxu0 0.0
        %2341 = vmatpush1.msra.mxu0 %v2257
        %2342 = vmatprep.subr.mxu0 0.0
        %2343 = vmatpush1.msra.mxu0 %v2258
        %2344 = vmatprep.subr.mxu0 0.0
        %2345 = vmatpush1.msra.mxu0 %v2259
        %2346 = vmatprep.subr.mxu0 0.0
        %2347 = vmatpush1.msra.mxu0 %v2260
        %2348 = vmatprep.subr.mxu0 0.0
        %2349 = vmatpush1.msra.mxu0 %v2261
        %2350 = vmatprep.subr.mxu0 0.0
        %2351 = vmatpush1.msra.mxu0 %v2262
        %2352 = vmatprep.subr.mxu0 0.0
        %2353 = vmatpush1.msra.mxu0 %v2263
        %2354 = vmatprep.subr.mxu0 0.0
        %2355 = vmatpush1.msra.mxu0 %v2264
        %2356 = vmatprep.subr.mxu0 0.0
        %2357 = vmatpush1.msra.mxu0 0.0
        %2358 = vmatprep.subr.mxu0 0.0
        %2359 = vmatpush1.msra.mxu0 0.0
        %2360 = vmatprep.subr.mxu0 0.0
        %2361 = vmatpush1.msra.mxu0 0.0
        %2362 = vmatprep.subr.mxu0 0.0
        %2363 = vmatpush1.msra.mxu0 0.0
        %2364 = vmatprep.subr.mxu0 0.0
        %2365 = vmatpush1.msra.mxu0 0.0
        %2366 = vmatprep.subr.mxu0 0.0
        %2367 = vmatpush1.msra.mxu0 0.0
        %2368 = vmatprep.subr.mxu0 0.0
        %2369 = vmatpush1.msra.mxu0 0.0
        %2370 = vmatprep.subr.mxu0 0.0
        %2371 = vmatpush1.msra.mxu0 0.0
        %2372 = vmatprep.subr.mxu0 0.0
        %2373 = vmatpush1.msra.mxu0 0.0
        %2374 = vmatprep.subr.mxu0 0.0
        %2375 = vmatpush1.msra.mxu0 0.0
        %2376 = vmatprep.subr.mxu0 0.0
        %2377 = vmatpush1.msra.mxu0 0.0
        %2378 = vmatprep.subr.mxu0 0.0
        %2379 = vmatpush1.msra.mxu0 0.0
        %2380 = vmatprep.subr.mxu0 0.0
        %2381 = vmatpush1.msra.mxu0 0.0
        %2382 = vmatprep.subr.mxu0 0.0
        %2383 = vmatpush1.msra.mxu0 0.0
        %2384 = vmatprep.subr.mxu0 0.0
        %2385 = vmatpush1.msra.mxu0 0.0
        %2386 = vmatprep.subr.mxu0 0.0
        %2387 = vmatpush1.msra.mxu0 0.0
        %2388 = vmatprep.mubr.f32.mxu0 0.0
        %2389 = vmatmul.mubr.f32.gmra.mrb[0].mxu0 %v2247
        %v2390 = vpop.f32.mrb[0].mxu0
        %v2391 = vadd.f32 %v2322, %v2390
        %v2392 = vpop.f32.mrb[0].mxu0
        %2393 = vdwg.mxu0
        %s2394 = scalar_lea.vmem %s6, 1
        %v2395 = vld [vmem:[%s2394] sm:$0x1]
        %v2397 = vlaneseq
        %v2398 = vshrl.u32 %v2397, 7
        %v2399 = vsub.s32 0, %v2398
        %v2400 = vrot.slane %v2395, %v2399
        %2402 = vmatprep.subr.mxu0 0.0
        %2403 = vmatpush1.msra.mxu0 %v2266
        %2404 = vmatprep.subr.mxu0 0.0
        %2405 = vmatpush1.msra.mxu0 %v2267
        %2406 = vmatprep.subr.mxu0 0.0
        %2407 = vmatpush1.msra.mxu0 %v2268
        %2408 = vmatprep.subr.mxu0 0.0
        %2409 = vmatpush1.msra.mxu0 %v2269
        %2410 = vmatprep.subr.mxu0 0.0
        %2411 = vmatpush1.msra.mxu0 %v2270
        %2412 = vmatprep.subr.mxu0 0.0
        %2413 = vmatpush1.msra.mxu0 %v2271
        %2414 = vmatprep.subr.mxu0 0.0
        %2415 = vmatpush1.msra.mxu0 %v2272
        %2416 = vmatprep.subr.mxu0 0.0
        %2417 = vmatpush1.msra.mxu0 %v2273
        %2418 = vmatprep.subr.mxu0 0.0
        %2419 = vmatpush1.msra.mxu0 %v2274
        %2420 = vmatprep.subr.mxu0 0.0
        %2421 = vmatpush1.msra.mxu0 %v2275
        %2422 = vmatprep.subr.mxu0 0.0
        %2423 = vmatpush1.msra.mxu0 %v2276
        %2424 = vmatprep.subr.mxu0 0.0
        %2425 = vmatpush1.msra.mxu0 %v2277
        %2426 = vmatprep.subr.mxu0 0.0
        %2427 = vmatpush1.msra.mxu0 %v2278
        %2428 = vmatprep.subr.mxu0 0.0
        %2429 = vmatpush1.msra.mxu0 %v2279
        %2430 = vmatprep.subr.mxu0 0.0
        %2431 = vmatpush1.msra.mxu0 %v2280
        %2432 = vmatprep.subr.mxu0 0.0
        %2433 = vmatpush1.msra.mxu0 %v2281
        %2434 = vmatprep.subr.mxu0 0.0
        %2435 = vmatpush1.msra.mxu0 0.0
        %2436 = vmatprep.subr.mxu0 0.0
        %2437 = vmatpush1.msra.mxu0 0.0
        %2438 = vmatprep.subr.mxu0 0.0
        %2439 = vmatpush1.msra.mxu0 0.0
        %2440 = vmatprep.subr.mxu0 0.0
        %2441 = vmatpush1.msra.mxu0 0.0
        %2442 = vmatprep.subr.mxu0 0.0
        %2443 = vmatpush1.msra.mxu0 0.0
        %2444 = vmatprep.subr.mxu0 0.0
        %2445 = vmatpush1.msra.mxu0 0.0
        %2446 = vmatprep.subr.mxu0 0.0
        %2447 = vmatpush1.msra.mxu0 0.0
        %2448 = vmatprep.subr.mxu0 0.0
        %2449 = vmatpush1.msra.mxu0 0.0
        %2450 = vmatprep.subr.mxu0 0.0
        %2451 = vmatpush1.msra.mxu0 0.0
        %2452 = vmatprep.subr.mxu0 0.0
        %2453 = vmatpush1.msra.mxu0 0.0
        %2454 = vmatprep.subr.mxu0 0.0
        %2455 = vmatpush1.msra.mxu0 0.0
        %2456 = vmatprep.subr.mxu0 0.0
        %2457 = vmatpush1.msra.mxu0 0.0
        %2458 = vmatprep.subr.mxu0 0.0
        %2459 = vmatpush1.msra.mxu0 0.0
        %2460 = vmatprep.subr.mxu0 0.0
        %2461 = vmatpush1.msra.mxu0 0.0
        %2462 = vmatprep.subr.mxu0 0.0
        %2463 = vmatpush1.msra.mxu0 0.0
        %2464 = vmatprep.subr.mxu0 0.0
        %2465 = vmatpush1.msra.mxu0 0.0
        %2466 = vmatprep.mubr.f32.mxu0 0.0
        %2467 = vmatmul.mubr.f32.gmra.mrb[0].mxu0 %v2247
        %v2468 = vpop.f32.mrb[0].mxu0
        %v2469 = vadd.f32 %v2400, %v2468
        %v2470 = vpop.f32.mrb[0].mxu0
        %2471 = vdwg.mxu0
        %s2472 = scalar_lea.vmem %s7, 1
        %v2473 = vld [vmem:[%s2472] sm:$0x1]
        %v2475 = vlaneseq
        %v2476 = vshrl.u32 %v2475, 7
        %v2477 = vsub.s32 0, %v2476
        %v2478 = vrot.slane %v2473, %v2477
        %2480 = vmatprep.subr.mxu0 0.0
        %2481 = vmatpush1.msra.mxu0 %v2283
        %2482 = vmatprep.subr.mxu0 0.0
        %2483 = vmatpush1.msra.mxu0 %v2284
        %2484 = vmatprep.subr.mxu0 0.0
        %2485 = vmatpush1.msra.mxu0 %v2285
        %2486 = vmatprep.subr.mxu0 0.0
        %2487 = vmatpush1.msra.mxu0 %v2286
        %2488 = vmatprep.subr.mxu0 0.0
        %2489 = vmatpush1.msra.mxu0 %v2287
        %2490 = vmatprep.subr.mxu0 0.0
        %2491 = vmatpush1.msra.mxu0 %v2288
        %2492 = vmatprep.subr.mxu0 0.0
        %2493 = vmatpush1.msra.mxu0 %v2289
        %2494 = vmatprep.subr.mxu0 0.0
        %2495 = vmatpush1.msra.mxu0 %v2290
        %2496 = vmatprep.subr.mxu0 0.0
        %2497 = vmatpush1.msra.mxu0 %v2291
        %2498 = vmatprep.subr.mxu0 0.0
        %2499 = vmatpush1.msra.mxu0 %v2292
        %2500 = vmatprep.subr.mxu0 0.0
        %2501 = vmatpush1.msra.mxu0 %v2293
        %2502 = vmatprep.subr.mxu0 0.0
        %2503 = vmatpush1.msra.mxu0 %v2294
        %2504 = vmatprep.subr.mxu0 0.0
        %2505 = vmatpush1.msra.mxu0 %v2295
        %2506 = vmatprep.subr.mxu0 0.0
        %2507 = vmatpush1.msra.mxu0 %v2296
        %2508 = vmatprep.subr.mxu0 0.0
        %2509 = vmatpush1.msra.mxu0 %v2297
        %2510 = vmatprep.subr.mxu0 0.0
        %2511 = vmatpush1.msra.mxu0 %v2298
        %2512 = vmatprep.subr.mxu0 0.0
        %2513 = vmatpush1.msra.mxu0 0.0
        %2514 = vmatprep.subr.mxu0 0.0
        %2515 = vmatpush1.msra.mxu0 0.0
        %2516 = vmatprep.subr.mxu0 0.0
        %2517 = vmatpush1.msra.mxu0 0.0
        %2518 = vmatprep.subr.mxu0 0.0
        %2519 = vmatpush1.msra.mxu0 0.0
        %2520 = vmatprep.subr.mxu0 0.0
        %2521 = vmatpush1.msra.mxu0 0.0
        %2522 = vmatprep.subr.mxu0 0.0
        %2523 = vmatpush1.msra.mxu0 0.0
        %2524 = vmatprep.subr.mxu0 0.0
        %2525 = vmatpush1.msra.mxu0 0.0
        %2526 = vmatprep.subr.mxu0 0.0
        %2527 = vmatpush1.msra.mxu0 0.0
        %2528 = vmatprep.subr.mxu0 0.0
        %2529 = vmatpush1.msra.mxu0 0.0
        %2530 = vmatprep.subr.mxu0 0.0
        %2531 = vmatpush1.msra.mxu0 0.0
        %2532 = vmatprep.subr.mxu0 0.0
        %2533 = vmatpush1.msra.mxu0 0.0
        %2534 = vmatprep.subr.mxu0 0.0
        %2535 = vmatpush1.msra.mxu0 0.0
        %2536 = vmatprep.subr.mxu0 0.0
        %2537 = vmatpush1.msra.mxu0 0.0
        %2538 = vmatprep.subr.mxu0 0.0
        %2539 = vmatpush1.msra.mxu0 0.0
        %2540 = vmatprep.subr.mxu0 0.0
        %2541 = vmatpush1.msra.mxu0 0.0
        %2542 = vmatprep.subr.mxu0 0.0
        %2543 = vmatpush1.msra.mxu0 0.0
        %2544 = vmatprep.mubr.f32.mxu0 0.0
        %2545 = vmatmul.mubr.f32.gmra.mrb[0].mxu0 %v2247
        %v2546 = vpop.f32.mrb[0].mxu0
        %v2547 = vadd.f32 %v2478, %v2546
        %v2548 = vpop.f32.mrb[0].mxu0
        %2549 = vdwg.mxu0
        %v2551 = vsel %vm1001, %v2391, 0
        %v2554 = vsel %vm1001, %v2469, 0
        %2556 = vmatprep.subr.mxu0 0.0
        %2557 = vmatpush1.xpose.msra.mxu0 %v2554
        %2558 = vmatprep.subr.mxu0 0.0
        %2559 = vmatpush1.xpose.msra.mxu0 0.0
        %2560 = vmatprep.subr.mxu0 0.0
        %2561 = vmatpush1.xpose.msra.mxu0 0.0
        %2562 = vmatprep.subr.mxu0 0.0
        %2563 = vmatpush1.xpose.msra.mxu0 0.0
        %2564 = vmatprep.subr.mxu0 0.0
        %2565 = vmatpush1.xpose.msra.mxu0 0.0
        %2566 = vmatprep.subr.mxu0 0.0
        %2567 = vmatpush1.xpose.msra.mxu0 0.0
        %2568 = vmatprep.subr.mxu0 0.0
        %2569 = vmatpush1.xpose.msra.mxu0 0.0
        %2570 = vmatprep.subr.mxu0 0.0
        %2571 = vmatpush1.xpose.msra.mxu0 0.0
        %2572 = vmatprep.subr.mxu0 0.0
        %2573 = vmatpush1.xpose.msra.mxu0 0.0
        %2574 = vmatprep.subr.mxu0 0.0
        %2575 = vmatpush1.xpose.msra.mxu0 0.0
        %2576 = vmatprep.subr.mxu0 0.0
        %2577 = vmatpush1.xpose.msra.mxu0 0.0
        %2578 = vmatprep.subr.mxu0 0.0
        %2579 = vmatpush1.xpose.msra.mxu0 0.0
        %2580 = vmatprep.subr.mxu0 0.0
        %2581 = vmatpush1.xpose.msra.mxu0 0.0
        %2582 = vmatprep.subr.mxu0 0.0
        %2583 = vmatpush1.xpose.msra.mxu0 0.0
        %2584 = vmatprep.subr.mxu0 0.0
        %2585 = vmatpush1.xpose.msra.mxu0 0.0
        %2586 = vmatprep.subr.mxu0 0.0
        %2587 = vmatpush1.xpose.msra.mxu0 0.0
        %2588 = vmatprep.subr.mxu0 0.0
        %2589 = vmatpush1.xpose.msra.mxu0 0.0
        %2590 = vmatprep.subr.mxu0 0.0
        %2591 = vmatpush1.xpose.msra.mxu0 0.0
        %2592 = vmatprep.subr.mxu0 0.0
        %2593 = vmatpush1.xpose.msra.mxu0 0.0
        %2594 = vmatprep.subr.mxu0 0.0
        %2595 = vmatpush1.xpose.msra.mxu0 0.0
        %2596 = vmatprep.subr.mxu0 0.0
        %2597 = vmatpush1.xpose.msra.mxu0 0.0
        %2598 = vmatprep.subr.mxu0 0.0
        %2599 = vmatpush1.xpose.msra.mxu0 0.0
        %2600 = vmatprep.subr.mxu0 0.0
        %2601 = vmatpush1.xpose.msra.mxu0 0.0
        %2602 = vmatprep.subr.mxu0 0.0
        %2603 = vmatpush1.xpose.msra.mxu0 0.0
        %2604 = vmatprep.subr.mxu0 0.0
        %2605 = vmatpush1.xpose.msra.mxu0 0.0
        %2606 = vmatprep.subr.mxu0 0.0
        %2607 = vmatpush1.xpose.msra.mxu0 0.0
        %2608 = vmatprep.subr.mxu0 0.0
        %2609 = vmatpush1.xpose.msra.mxu0 0.0
        %2610 = vmatprep.subr.mxu0 0.0
        %2611 = vmatpush1.xpose.msra.mxu0 0.0
        %2612 = vmatprep.subr.mxu0 0.0
        %2613 = vmatpush1.xpose.msra.mxu0 0.0
        %2614 = vmatprep.subr.mxu0 0.0
        %2615 = vmatpush1.xpose.msra.mxu0 0.0
        %2616 = vmatprep.subr.mxu0 0.0
        %2617 = vmatpush1.xpose.msra.mxu0 0.0
        %2618 = vmatprep.subr.mxu0 0.0
        %2619 = vmatpush1.xpose.msra.mxu0 0.0
        %2620 = vmatprep.mubr.f32.mxu0 0.0
        %2621 = vmatmul.mubr.f32.gmra.mrb[0].mxu0 %v2551
        %v2622 = vpop.f32.mrb[0].mxu0
        %v2623 = vadd.f32 0.0, %v2622
        %v2624 = vpop.f32.mrb[0].mxu0
        %2625 = vdwg.mxu0
        %v2626 = vmul.f32 %v2623, 0.17677669
        %v2627 = vsel %vm1079, %v2626, -inf
        %2628 = vmax.xlane.f32.xlu0 %v2627
        %v2629 = vpop.xlane.xlu0 %2628
        %v2630 = vsub.f32 %v2626, %v2629
        %v2631 = vmul.f32 %v2630, 1.442695
        %v2632 = vpow.pop %v2631
        %v2633 = vsel %vm1079, %v2632, 0.0
        %2634 = vadd.xlane.f32.xlu0 %v2633
        %v2635 = vpop.xlane.xlu0 %2634
        %v2636 = vrcp.pop %v2635
        %v2637 = vmul.f32 %v2632, %v2636
        %v2639 = vsel %vm1079, %v2637, 0
        %2641 = vmatprep.subr.mxu0 0.0
        %2642 = vmatpush1.msra.mxu0 %v2547
        %2643 = vmatprep.subr.mxu0 0.0
        %2644 = vmatpush1.msra.mxu0 0.0
        %2645 = vmatprep.subr.mxu0 0.0
        %2646 = vmatpush1.msra.mxu0 0.0
        %2647 = vmatprep.subr.mxu0 0.0
        %2648 = vmatpush1.msra.mxu0 0.0
        %2649 = vmatprep.subr.mxu0 0.0
        %2650 = vmatpush1.msra.mxu0 0.0
        %2651 = vmatprep.subr.mxu0 0.0
        %2652 = vmatpush1.msra.mxu0 0.0
        %2653 = vmatprep.subr.mxu0 0.0
        %2654 = vmatpush1.msra.mxu0 0.0
        %2655 = vmatprep.subr.mxu0 0.0
        %2656 = vmatpush1.msra.mxu0 0.0
        %2657 = vmatprep.subr.mxu0 0.0
        %2658 = vmatpush1.msra.mxu0 0.0
        %2659 = vmatprep.subr.mxu0 0.0
        %2660 = vmatpush1.msra.mxu0 0.0
        %2661 = vmatprep.subr.mxu0 0.0
        %2662 = vmatpush1.msra.mxu0 0.0
        %2663 = vmatprep.subr.mxu0 0.0
        %2664 = vmatpush1.msra.mxu0 0.0
        %2665 = vmatprep.subr.mxu0 0.0
        %2666 = vmatpush1.msra.mxu0 0.0
        %2667 = vmatprep.subr.mxu0 0.0
        %2668 = vmatpush1.msra.mxu0 0.0
        %2669 = vmatprep.subr.mxu0 0.0
        %2670 = vmatpush1.msra.mxu0 0.0
        %2671 = vmatprep.subr.mxu0 0.0
        %2672 = vmatpush1.msra.mxu0 0.0
        %2673 = vmatprep.subr.mxu0 0.0
        %2674 = vmatpush1.msra.mxu0 0.0
        %2675 = vmatprep.subr.mxu0 0.0
        %2676 = vmatpush1.msra.mxu0 0.0
        %2677 = vmatprep.subr.mxu0 0.0
        %2678 = vmatpush1.msra.mxu0 0.0
        %2679 = vmatprep.subr.mxu0 0.0
        %2680 = vmatpush1.msra.mxu0 0.0
        %2681 = vmatprep.subr.mxu0 0.0
        %2682 = vmatpush1.msra.mxu0 0.0
        %2683 = vmatprep.subr.mxu0 0.0
        %2684 = vmatpush1.msra.mxu0 0.0
        %2685 = vmatprep.subr.mxu0 0.0
        %2686 = vmatpush1.msra.mxu0 0.0
        %2687 = vmatprep.subr.mxu0 0.0
        %2688 = vmatpush1.msra.mxu0 0.0
        %2689 = vmatprep.subr.mxu0 0.0
        %2690 = vmatpush1.msra.mxu0 0.0
        %2691 = vmatprep.subr.mxu0 0.0
        %2692 = vmatpush1.msra.mxu0 0.0
        %2693 = vmatprep.subr.mxu0 0.0
        %2694 = vmatpush1.msra.mxu0 0.0
        %2695 = vmatprep.subr.mxu0 0.0
        %2696 = vmatpush1.msra.mxu0 0.0
        %2697 = vmatprep.subr.mxu0 0.0
        %2698 = vmatpush1.msra.mxu0 0.0
        %2699 = vmatprep.subr.mxu0 0.0
        %2700 = vmatpush1.msra.mxu0 0.0
        %2701 = vmatprep.subr.mxu0 0.0
        %2702 = vmatpush1.msra.mxu0 0.0
        %2703 = vmatprep.subr.mxu0 0.0
        %2704 = vmatpush1.msra.mxu0 0.0
        %2705 = vmatprep.mubr.f32.mxu0 0.0
        %2706 = vmatmul.mubr.f32.gmra.mrb[0].mxu0 %v2639
        %v2707 = vpop.f32.mrb[0].mxu0
        %v2708 = vadd.f32 0.0, %v2707
        %v2709 = vpop.f32.mrb[0].mxu0
        %2710 = vdwg.mxu0
        %2711 = vrot.lane.b32.xlu0 %v2391, 96
        %v2712 = vpop.permute.xlu0 %2711
        %2713 = vrot.lane.b32.xlu0 %v2469, 96
        %v2714 = vpop.permute.xlu0 %2713
        %v2715 = vsel %vm1001, %v2712, 0
        %v2717 = vsel %vm1001, %v2714, 0
        %2719 = vmatprep.subr.mxu0 0.0
        %2720 = vmatpush1.xpose.msra.mxu0 %v2717
        %2721 = vmatprep.subr.mxu0 0.0
        %2722 = vmatpush1.xpose.msra.mxu0 0.0
        %2723 = vmatprep.subr.mxu0 0.0
        %2724 = vmatpush1.xpose.msra.mxu0 0.0
        %2725 = vmatprep.subr.mxu0 0.0
        %2726 = vmatpush1.xpose.msra.mxu0 0.0
        %2727 = vmatprep.subr.mxu0 0.0
        %2728 = vmatpush1.xpose.msra.mxu0 0.0
        %2729 = vmatprep.subr.mxu0 0.0
        %2730 = vmatpush1.xpose.msra.mxu0 0.0
        %2731 = vmatprep.subr.mxu0 0.0
        %2732 = vmatpush1.xpose.msra.mxu0 0.0
        %2733 = vmatprep.subr.mxu0 0.0
        %2734 = vmatpush1.xpose.msra.mxu0 0.0
        %2735 = vmatprep.subr.mxu0 0.0
        %2736 = vmatpush1.xpose.msra.mxu0 0.0
        %2737 = vmatprep.subr.mxu0 0.0
        %2738 = vmatpush1.xpose.msra.mxu0 0.0
        %2739 = vmatprep.subr.mxu0 0.0
        %2740 = vmatpush1.xpose.msra.mxu0 0.0
        %2741 = vmatprep.subr.mxu0 0.0
        %2742 = vmatpush1.xpose.msra.mxu0 0.0
        %2743 = vmatprep.subr.mxu0 0.0
        %2744 = vmatpush1.xpose.msra.mxu0 0.0
        %2745 = vmatprep.subr.mxu0 0.0
        %2746 = vmatpush1.xpose.msra.mxu0 0.0
        %2747 = vmatprep.subr.mxu0 0.0
        %2748 = vmatpush1.xpose.msra.mxu0 0.0
        %2749 = vmatprep.subr.mxu0 0.0
        %2750 = vmatpush1.xpose.msra.mxu0 0.0
        %2751 = vmatprep.subr.mxu0 0.0
        %2752 = vmatpush1.xpose.msra.mxu0 0.0
        %2753 = vmatprep.subr.mxu0 0.0
        %2754 = vmatpush1.xpose.msra.mxu0 0.0
        %2755 = vmatprep.subr.mxu0 0.0
        %2756 = vmatpush1.xpose.msra.mxu0 0.0
        %2757 = vmatprep.subr.mxu0 0.0
        %2758 = vmatpush1.xpose.msra.mxu0 0.0
        %2759 = vmatprep.subr.mxu0 0.0
        %2760 = vmatpush1.xpose.msra.mxu0 0.0
        %2761 = vmatprep.subr.mxu0 0.0
        %2762 = vmatpush1.xpose.msra.mxu0 0.0
        %2763 = vmatprep.subr.mxu0 0.0
        %2764 = vmatpush1.xpose.msra.mxu0 0.0
        %2765 = vmatprep.subr.mxu0 0.0
        %2766 = vmatpush1.xpose.msra.mxu0 0.0
        %2767 = vmatprep.subr.mxu0 0.0
        %2768 = vmatpush1.xpose.msra.mxu0 0.0
        %2769 = vmatprep.subr.mxu0 0.0
        %2770 = vmatpush1.xpose.msra.mxu0 0.0
        %2771 = vmatprep.subr.mxu0 0.0
        %2772 = vmatpush1.xpose.msra.mxu0 0.0
        %2773 = vmatprep.subr.mxu0 0.0
        %2774 = vmatpush1.xpose.msra.mxu0 0.0
        %2775 = vmatprep.subr.mxu0 0.0
        %2776 = vmatpush1.xpose.msra.mxu0 0.0
        %2777 = vmatprep.subr.mxu0 0.0
        %2778 = vmatpush1.xpose.msra.mxu0 0.0
        %2779 = vmatprep.subr.mxu0 0.0
        %2780 = vmatpush1.xpose.msra.mxu0 0.0
        %2781 = vmatprep.subr.mxu0 0.0
        %2782 = vmatpush1.xpose.msra.mxu0 0.0
        %2783 = vmatprep.mubr.f32.mxu0 0.0
        %2784 = vmatmul.mubr.f32.gmra.mrb[0].mxu0 %v2715
        %v2785 = vpop.f32.mrb[0].mxu0
        %v2786 = vadd.f32 0.0, %v2785
        %v2787 = vpop.f32.mrb[0].mxu0
        %2788 = vdwg.mxu0
        %v2789 = vmul.f32 %v2786, 0.17677669
        %v2790 = vsel %vm1079, %v2789, -inf
        %2791 = vmax.xlane.f32.xlu0 %v2790
        %v2792 = vpop.xlane.xlu0 %2791
        %v2793 = vsub.f32 %v2789, %v2792
        %v2794 = vmul.f32 %v2793, 1.442695
        %v2795 = vpow.pop %v2794
        %v2796 = vsel %vm1079, %v2795, 0.0
        %2797 = vadd.xlane.f32.xlu0 %v2796
        %v2798 = vpop.xlane.xlu0 %2797
        %v2799 = vrcp.pop %v2798
        %v2800 = vmul.f32 %v2795, %v2799
        %2802 = vrot.lane.b32.xlu0 %v2547, 96
        %v2803 = vpop.permute.xlu0 %2802
        %v2806 = vsel %vm1079, %v2800, 0
        %2808 = vmatprep.subr.mxu0 0.0
        %2809 = vmatpush1.msra.mxu0 %v2803
        %2810 = vmatprep.subr.mxu0 0.0
        %2811 = vmatpush1.msra.mxu0 0.0
        %2812 = vmatprep.subr.mxu0 0.0
        %2813 = vmatpush1.msra.mxu0 0.0
        %2814 = vmatprep.subr.mxu0 0.0
        %2815 = vmatpush1.msra.mxu0 0.0
        %2816 = vmatprep.subr.mxu0 0.0
        %2817 = vmatpush1.msra.mxu0 0.0
        %2818 = vmatprep.subr.mxu0 0.0
        %2819 = vmatpush1.msra.mxu0 0.0
        %2820 = vmatprep.subr.mxu0 0.0
        %2821 = vmatpush1.msra.mxu0 0.0
        %2822 = vmatprep.subr.mxu0 0.0
        %2823 = vmatpush1.msra.mxu0 0.0
        %2824 = vmatprep.subr.mxu0 0.0
        %2825 = vmatpush1.msra.mxu0 0.0
        %2826 = vmatprep.subr.mxu0 0.0
        %2827 = vmatpush1.msra.mxu0 0.0
        %2828 = vmatprep.subr.mxu0 0.0
        %2829 = vmatpush1.msra.mxu0 0.0
        %2830 = vmatprep.subr.mxu0 0.0
        %2831 = vmatpush1.msra.mxu0 0.0
        %2832 = vmatprep.subr.mxu0 0.0
        %2833 = vmatpush1.msra.mxu0 0.0
        %2834 = vmatprep.subr.mxu0 0.0
        %2835 = vmatpush1.msra.mxu0 0.0
        %2836 = vmatprep.subr.mxu0 0.0
        %2837 = vmatpush1.msra.mxu0 0.0
        %2838 = vmatprep.subr.mxu0 0.0
        %2839 = vmatpush1.msra.mxu0 0.0
        %2840 = vmatprep.subr.mxu0 0.0
        %2841 = vmatpush1.msra.mxu0 0.0
        %2842 = vmatprep.subr.mxu0 0.0
        %2843 = vmatpush1.msra.mxu0 0.0
        %2844 = vmatprep.subr.mxu0 0.0
        %2845 = vmatpush1.msra.mxu0 0.0
        %2846 = vmatprep.subr.mxu0 0.0
        %2847 = vmatpush1.msra.mxu0 0.0
        %2848 = vmatprep.subr.mxu0 0.0
        %2849 = vmatpush1.msra.mxu0 0.0
        %2850 = vmatprep.subr.mxu0 0.0
        %2851 = vmatpush1.msra.mxu0 0.0
        %2852 = vmatprep.subr.mxu0 0.0
        %2853 = vmatpush1.msra.mxu0 0.0
        %2854 = vmatprep.subr.mxu0 0.0
        %2855 = vmatpush1.msra.mxu0 0.0
        %2856 = vmatprep.subr.mxu0 0.0
        %2857 = vmatpush1.msra.mxu0 0.0
        %2858 = vmatprep.subr.mxu0 0.0
        %2859 = vmatpush1.msra.mxu0 0.0
        %2860 = vmatprep.subr.mxu0 0.0
        %2861 = vmatpush1.msra.mxu0 0.0
        %2862 = vmatprep.subr.mxu0 0.0
        %2863 = vmatpush1.msra.mxu0 0.0
        %2864 = vmatprep.subr.mxu0 0.0
        %2865 = vmatpush1.msra.mxu0 0.0
        %2866 = vmatprep.subr.mxu0 0.0
        %2867 = vmatpush1.msra.mxu0 0.0
        %2868 = vmatprep.subr.mxu0 0.0
        %2869 = vmatpush1.msra.mxu0 0.0
        %2870 = vmatprep.subr.mxu0 0.0
        %2871 = vmatpush1.msra.mxu0 0.0
        %2872 = vmatprep.mubr.f32.mxu0 0.0
        %2873 = vmatmul.mubr.f32.gmra.mrb[0].mxu0 %v2806
        %v2874 = vpop.f32.mrb[0].mxu0
        %v2875 = vadd.f32 0.0, %v2874
        %v2876 = vpop.f32.mrb[0].mxu0
        %2877 = vdwg.mxu0
        %v2879 = vsel %vm1001, %v2875, 0
        %2881 = vmatprep.subr.mxu0 0.0
        %2882 = vmatpush1.msra.mxu0 %v2304
        %2883 = vmatprep.subr.mxu0 0.0
        %2884 = vmatpush1.msra.mxu0 %v2305
        %2885 = vmatprep.subr.mxu0 0.0
        %2886 = vmatpush1.msra.mxu0 %v2306
        %2887 = vmatprep.subr.mxu0 0.0
        %2888 = vmatpush1.msra.mxu0 %v2307
        %2889 = vmatprep.subr.mxu0 0.0
        %2890 = vmatpush1.msra.mxu0 0.0
        %2891 = vmatprep.subr.mxu0 0.0
        %2892 = vmatpush1.msra.mxu0 0.0
        %2893 = vmatprep.subr.mxu0 0.0
        %2894 = vmatpush1.msra.mxu0 0.0
        %2895 = vmatprep.subr.mxu0 0.0
        %2896 = vmatpush1.msra.mxu0 0.0
        %2897 = vmatprep.subr.mxu0 0.0
        %2898 = vmatpush1.msra.mxu0 0.0
        %2899 = vmatprep.subr.mxu0 0.0
        %2900 = vmatpush1.msra.mxu0 0.0
        %2901 = vmatprep.subr.mxu0 0.0
        %2902 = vmatpush1.msra.mxu0 0.0
        %2903 = vmatprep.subr.mxu0 0.0
        %2904 = vmatpush1.msra.mxu0 0.0
        %2905 = vmatprep.subr.mxu0 0.0
        %2906 = vmatpush1.msra.mxu0 0.0
        %2907 = vmatprep.subr.mxu0 0.0
        %2908 = vmatpush1.msra.mxu0 0.0
        %2909 = vmatprep.subr.mxu0 0.0
        %2910 = vmatpush1.msra.mxu0 0.0
        %2911 = vmatprep.subr.mxu0 0.0
        %2912 = vmatpush1.msra.mxu0 0.0
        %2913 = vmatprep.subr.mxu0 0.0
        %2914 = vmatpush1.msra.mxu0 0.0
        %2915 = vmatprep.subr.mxu0 0.0
        %2916 = vmatpush1.msra.mxu0 0.0
        %2917 = vmatprep.subr.mxu0 0.0
        %2918 = vmatpush1.msra.mxu0 0.0
        %2919 = vmatprep.subr.mxu0 0.0
        %2920 = vmatpush1.msra.mxu0 0.0
        %2921 = vmatprep.subr.mxu0 0.0
        %2922 = vmatpush1.msra.mxu0 0.0
        %2923 = vmatprep.subr.mxu0 0.0
        %2924 = vmatpush1.msra.mxu0 0.0
        %2925 = vmatprep.subr.mxu0 0.0
        %2926 = vmatpush1.msra.mxu0 0.0
        %2927 = vmatprep.subr.mxu0 0.0
        %2928 = vmatpush1.msra.mxu0 0.0
        %2929 = vmatprep.subr.mxu0 0.0
        %2930 = vmatpush1.msra.mxu0 0.0
        %2931 = vmatprep.subr.mxu0 0.0
        %2932 = vmatpush1.msra.mxu0 0.0
        %2933 = vmatprep.subr.mxu0 0.0
        %2934 = vmatpush1.msra.mxu0 0.0
        %2935 = vmatprep.subr.mxu0 0.0
        %2936 = vmatpush1.msra.mxu0 0.0
        %2937 = vmatprep.subr.mxu0 0.0
        %2938 = vmatpush1.msra.mxu0 0.0
        %2939 = vmatprep.subr.mxu0 0.0
        %2940 = vmatpush1.msra.mxu0 0.0
        %2941 = vmatprep.subr.mxu0 0.0
        %2942 = vmatpush1.msra.mxu0 0.0
        %2943 = vmatprep.subr.mxu0 0.0
        %2944 = vmatpush1.msra.mxu0 0.0
        %2945 = vmatprep.mubr.f32.mxu0 0.0
        %2946 = vmatmul.mubr.f32.gmra.mrb[0].mxu0 %v2879
        %v2947 = vpop.f32.mrb[0].mxu0
        %v2948 = vadd.f32 0.0, %v2947
        %v2949 = vpop.f32.mrb[0].mxu0
        %2950 = vdwg.mxu0
        %v2952 = vsel %vm1001, %v2708, 0
        %2954 = vmatprep.subr.mxu0 0.0
        %2955 = vmatpush1.msra.mxu0 %v2300
        %2956 = vmatprep.subr.mxu0 0.0
        %2957 = vmatpush1.msra.mxu0 %v2301
        %2958 = vmatprep.subr.mxu0 0.0
        %2959 = vmatpush1.msra.mxu0 %v2302
        %2960 = vmatprep.subr.mxu0 0.0
        %2961 = vmatpush1.msra.mxu0 %v2303
        %2962 = vmatprep.subr.mxu0 0.0
        %2963 = vmatpush1.msra.mxu0 0.0
        %2964 = vmatprep.subr.mxu0 0.0
        %2965 = vmatpush1.msra.mxu0 0.0
        %2966 = vmatprep.subr.mxu0 0.0
        %2967 = vmatpush1.msra.mxu0 0.0
        %2968 = vmatprep.subr.mxu0 0.0
        %2969 = vmatpush1.msra.mxu0 0.0
        %2970 = vmatprep.subr.mxu0 0.0
        %2971 = vmatpush1.msra.mxu0 0.0
        %2972 = vmatprep.subr.mxu0 0.0
        %2973 = vmatpush1.msra.mxu0 0.0
        %2974 = vmatprep.subr.mxu0 0.0
        %2975 = vmatpush1.msra.mxu0 0.0
        %2976 = vmatprep.subr.mxu0 0.0
        %2977 = vmatpush1.msra.mxu0 0.0
        %2978 = vmatprep.subr.mxu0 0.0
        %2979 = vmatpush1.msra.mxu0 0.0
        %2980 = vmatprep.subr.mxu0 0.0
        %2981 = vmatpush1.msra.mxu0 0.0
        %2982 = vmatprep.subr.mxu0 0.0
        %2983 = vmatpush1.msra.mxu0 0.0
        %2984 = vmatprep.subr.mxu0 0.0
        %2985 = vmatpush1.msra.mxu0 0.0
        %2986 = vmatprep.subr.mxu0 0.0
        %2987 = vmatpush1.msra.mxu0 0.0
        %2988 = vmatprep.subr.mxu0 0.0
        %2989 = vmatpush1.msra.mxu0 0.0
        %2990 = vmatprep.subr.mxu0 0.0
        %2991 = vmatpush1.msra.mxu0 0.0
        %2992 = vmatprep.subr.mxu0 0.0
        %2993 = vmatpush1.msra.mxu0 0.0
        %2994 = vmatprep.subr.mxu0 0.0
        %2995 = vmatpush1.msra.mxu0 0.0
        %2996 = vmatprep.subr.mxu0 0.0
        %2997 = vmatpush1.msra.mxu0 0.0
        %2998 = vmatprep.subr.mxu0 0.0
        %2999 = vmatpush1.msra.mxu0 0.0
        %3000 = vmatprep.subr.mxu0 0.0
        %3001 = vmatpush1.msra.mxu0 0.0
        %3002 = vmatprep.subr.mxu0 0.0
        %3003 = vmatpush1.msra.mxu0 0.0
        %3004 = vmatprep.subr.mxu0 0.0
        %3005 = vmatpush1.msra.mxu0 0.0
        %3006 = vmatprep.subr.mxu0 0.0
        %3007 = vmatpush1.msra.mxu0 0.0
        %3008 = vmatprep.subr.mxu0 0.0
        %3009 = vmatpush1.msra.mxu0 0.0
        %3010 = vmatprep.subr.mxu0 0.0
        %3011 = vmatpush1.msra.mxu0 0.0
        %3012 = vmatprep.subr.mxu0 0.0
        %3013 = vmatpush1.msra.mxu0 0.0
        %3014 = vmatprep.subr.mxu0 0.0
        %3015 = vmatpush1.msra.mxu0 0.0
        %3016 = vmatprep.subr.mxu0 0.0
        %3017 = vmatpush1.msra.mxu0 0.0
        %3018 = vmatprep.mubr.f32.mxu0 0.0
        %3019 = vmatmul.mubr.f32.gmra.mrb[0].mxu0 %v2952
        %v3020 = vpop.f32.mrb[0].mxu0
        %v3021 = vadd.f32 %v2948, %v3020
        %v3022 = vpop.f32.mrb[0].mxu0
        %3023 = vdwg.mxu0
        %3024 = vrot.lane.b32.xlu0 %v2391, 64
        %v3025 = vpop.permute.xlu0 %3024
        %3026 = vrot.lane.b32.xlu0 %v2469, 64
        %v3027 = vpop.permute.xlu0 %3026
        %v3028 = vsel %vm1001, %v3025, 0
        %v3030 = vsel %vm1001, %v3027, 0
        %3032 = vmatprep.subr.mxu0 0.0
        %3033 = vmatpush1.xpose.msra.mxu0 %v3030
        %3034 = vmatprep.subr.mxu0 0.0
        %3035 = vmatpush1.xpose.msra.mxu0 0.0
        %3036 = vmatprep.subr.mxu0 0.0
        %3037 = vmatpush1.xpose.msra.mxu0 0.0
        %3038 = vmatprep.subr.mxu0 0.0
        %3039 = vmatpush1.xpose.msra.mxu0 0.0
        %3040 = vmatprep.subr.mxu0 0.0
        %3041 = vmatpush1.xpose.msra.mxu0 0.0
        %3042 = vmatprep.subr.mxu0 0.0
        %3043 = vmatpush1.xpose.msra.mxu0 0.0
        %3044 = vmatprep.subr.mxu0 0.0
        %3045 = vmatpush1.xpose.msra.mxu0 0.0
        %3046 = vmatprep.subr.mxu0 0.0
        %3047 = vmatpush1.xpose.msra.mxu0 0.0
        %3048 = vmatprep.subr.mxu0 0.0
        %3049 = vmatpush1.xpose.msra.mxu0 0.0
        %3050 = vmatprep.subr.mxu0 0.0
        %3051 = vmatpush1.xpose.msra.mxu0 0.0
        %3052 = vmatprep.subr.mxu0 0.0
        %3053 = vmatpush1.xpose.msra.mxu0 0.0
        %3054 = vmatprep.subr.mxu0 0.0
        %3055 = vmatpush1.xpose.msra.mxu0 0.0
        %3056 = vmatprep.subr.mxu0 0.0
        %3057 = vmatpush1.xpose.msra.mxu0 0.0
        %3058 = vmatprep.subr.mxu0 0.0
        %3059 = vmatpush1.xpose.msra.mxu0 0.0
        %3060 = vmatprep.subr.mxu0 0.0
        %3061 = vmatpush1.xpose.msra.mxu0 0.0
        %3062 = vmatprep.subr.mxu0 0.0
        %3063 = vmatpush1.xpose.msra.mxu0 0.0
        %3064 = vmatprep.subr.mxu0 0.0
        %3065 = vmatpush1.xpose.msra.mxu0 0.0
        %3066 = vmatprep.subr.mxu0 0.0
        %3067 = vmatpush1.xpose.msra.mxu0 0.0
        %3068 = vmatprep.subr.mxu0 0.0
        %3069 = vmatpush1.xpose.msra.mxu0 0.0
        %3070 = vmatprep.subr.mxu0 0.0
        %3071 = vmatpush1.xpose.msra.mxu0 0.0
        %3072 = vmatprep.subr.mxu0 0.0
        %3073 = vmatpush1.xpose.msra.mxu0 0.0
        %3074 = vmatprep.subr.mxu0 0.0
        %3075 = vmatpush1.xpose.msra.mxu0 0.0
        %3076 = vmatprep.subr.mxu0 0.0
        %3077 = vmatpush1.xpose.msra.mxu0 0.0
        %3078 = vmatprep.subr.mxu0 0.0
        %3079 = vmatpush1.xpose.msra.mxu0 0.0
        %3080 = vmatprep.subr.mxu0 0.0
        %3081 = vmatpush1.xpose.msra.mxu0 0.0
        %3082 = vmatprep.subr.mxu0 0.0
        %3083 = vmatpush1.xpose.msra.mxu0 0.0
        %3084 = vmatprep.subr.mxu0 0.0
        %3085 = vmatpush1.xpose.msra.mxu0 0.0
        %3086 = vmatprep.subr.mxu0 0.0
        %3087 = vmatpush1.xpose.msra.mxu0 0.0
        %3088 = vmatprep.subr.mxu0 0.0
        %3089 = vmatpush1.xpose.msra.mxu0 0.0
        %3090 = vmatprep.subr.mxu0 0.0
        %3091 = vmatpush1.xpose.msra.mxu0 0.0
        %3092 = vmatprep.subr.mxu0 0.0
        %3093 = vmatpush1.xpose.msra.mxu0 0.0
        %3094 = vmatprep.subr.mxu0 0.0
        %3095 = vmatpush1.xpose.msra.mxu0 0.0
        %3096 = vmatprep.mubr.f32.mxu0 0.0
        %3097 = vmatmul.mubr.f32.gmra.mrb[0].mxu0 %v3028
        %v3098 = vpop.f32.mrb[0].mxu0
        %v3099 = vadd.f32 0.0, %v3098
        %v3100 = vpop.f32.mrb[0].mxu0
        %3101 = vdwg.mxu0
        %v3102 = vmul.f32 %v3099, 0.17677669
        %v3103 = vsel %vm1079, %v3102, -inf
        %3104 = vmax.xlane.f32.xlu0 %v3103
        %v3105 = vpop.xlane.xlu0 %3104
        %v3106 = vsub.f32 %v3102, %v3105
        %v3107 = vmul.f32 %v3106, 1.442695
        %v3108 = vpow.pop %v3107
        %v3109 = vsel %vm1079, %v3108, 0.0
        %3110 = vadd.xlane.f32.xlu0 %v3109
        %v3111 = vpop.xlane.xlu0 %3110
        %v3112 = vrcp.pop %v3111
        %v3113 = vmul.f32 %v3108, %v3112
        %3114 = vrot.lane.b32.xlu0 %v2547, 64
        %v3115 = vpop.permute.xlu0 %3114
        %v3118 = vsel %vm1079, %v3113, 0
        %3120 = vmatprep.subr.mxu0 0.0
        %3121 = vmatpush1.msra.mxu0 %v3115
        %3122 = vmatprep.subr.mxu0 0.0
        %3123 = vmatpush1.msra.mxu0 0.0
        %3124 = vmatprep.subr.mxu0 0.0
        %3125 = vmatpush1.msra.mxu0 0.0
        %3126 = vmatprep.subr.mxu0 0.0
        %3127 = vmatpush1.msra.mxu0 0.0
        %3128 = vmatprep.subr.mxu0 0.0
        %3129 = vmatpush1.msra.mxu0 0.0
        %3130 = vmatprep.subr.mxu0 0.0
        %3131 = vmatpush1.msra.mxu0 0.0
        %3132 = vmatprep.subr.mxu0 0.0
        %3133 = vmatpush1.msra.mxu0 0.0
        %3134 = vmatprep.subr.mxu0 0.0
        %3135 = vmatpush1.msra.mxu0 0.0
        %3136 = vmatprep.subr.mxu0 0.0
        %3137 = vmatpush1.msra.mxu0 0.0
        %3138 = vmatprep.subr.mxu0 0.0
        %3139 = vmatpush1.msra.mxu0 0.0
        %3140 = vmatprep.subr.mxu0 0.0
        %3141 = vmatpush1.msra.mxu0 0.0
        %3142 = vmatprep.subr.mxu0 0.0
        %3143 = vmatpush1.msra.mxu0 0.0
        %3144 = vmatprep.subr.mxu0 0.0
        %3145 = vmatpush1.msra.mxu0 0.0
        %3146 = vmatprep.subr.mxu0 0.0
        %3147 = vmatpush1.msra.mxu0 0.0
        %3148 = vmatprep.subr.mxu0 0.0
        %3149 = vmatpush1.msra.mxu0 0.0
        %3150 = vmatprep.subr.mxu0 0.0
        %3151 = vmatpush1.msra.mxu0 0.0
        %3152 = vmatprep.subr.mxu0 0.0
        %3153 = vmatpush1.msra.mxu0 0.0
        %3154 = vmatprep.subr.mxu0 0.0
        %3155 = vmatpush1.msra.mxu0 0.0
        %3156 = vmatprep.subr.mxu0 0.0
        %3157 = vmatpush1.msra.mxu0 0.0
        %3158 = vmatprep.subr.mxu0 0.0
        %3159 = vmatpush1.msra.mxu0 0.0
        %3160 = vmatprep.subr.mxu0 0.0
        %3161 = vmatpush1.msra.mxu0 0.0
        %3162 = vmatprep.subr.mxu0 0.0
        %3163 = vmatpush1.msra.mxu0 0.0
        %3164 = vmatprep.subr.mxu0 0.0
        %3165 = vmatpush1.msra.mxu0 0.0
        %3166 = vmatprep.subr.mxu0 0.0
        %3167 = vmatpush1.msra.mxu0 0.0
        %3168 = vmatprep.subr.mxu0 0.0
        %3169 = vmatpush1.msra.mxu0 0.0
        %3170 = vmatprep.subr.mxu0 0.0
        %3171 = vmatpush1.msra.mxu0 0.0
        %3172 = vmatprep.subr.mxu0 0.0
        %3173 = vmatpush1.msra.mxu0 0.0
        %3174 = vmatprep.subr.mxu0 0.0
        %3175 = vmatpush1.msra.mxu0 0.0
        %3176 = vmatprep.subr.mxu0 0.0
        %3177 = vmatpush1.msra.mxu0 0.0
        %3178 = vmatprep.subr.mxu0 0.0
        %3179 = vmatpush1.msra.mxu0 0.0
        %3180 = vmatprep.subr.mxu0 0.0
        %3181 = vmatpush1.msra.mxu0 0.0
        %3182 = vmatprep.subr.mxu0 0.0
        %3183 = vmatpush1.msra.mxu0 0.0
        %3184 = vmatprep.mubr.f32.mxu0 0.0
        %3185 = vmatmul.mubr.f32.gmra.mrb[0].mxu0 %v3118
        %v3186 = vpop.f32.mrb[0].mxu0
        %v3187 = vadd.f32 0.0, %v3186
        %v3188 = vpop.f32.mrb[0].mxu0
        %3189 = vdwg.mxu0
        %v3191 = vsel %vm1001, %v3187, 0
        %3193 = vmatprep.subr.mxu0 0.0
        %3194 = vmatpush1.msra.mxu0 %v2308
        %3195 = vmatprep.subr.mxu0 0.0
        %3196 = vmatpush1.msra.mxu0 %v2309
        %3197 = vmatprep.subr.mxu0 0.0
        %3198 = vmatpush1.msra.mxu0 %v2310
        %3199 = vmatprep.subr.mxu0 0.0
        %3200 = vmatpush1.msra.mxu0 %v2311
        %3201 = vmatprep.subr.mxu0 0.0
        %3202 = vmatpush1.msra.mxu0 0.0
        %3203 = vmatprep.subr.mxu0 0.0
        %3204 = vmatpush1.msra.mxu0 0.0
        %3205 = vmatprep.subr.mxu0 0.0
        %3206 = vmatpush1.msra.mxu0 0.0
        %3207 = vmatprep.subr.mxu0 0.0
        %3208 = vmatpush1.msra.mxu0 0.0
        %3209 = vmatprep.subr.mxu0 0.0
        %3210 = vmatpush1.msra.mxu0 0.0
        %3211 = vmatprep.subr.mxu0 0.0
        %3212 = vmatpush1.msra.mxu0 0.0
        %3213 = vmatprep.subr.mxu0 0.0
        %3214 = vmatpush1.msra.mxu0 0.0
        %3215 = vmatprep.subr.mxu0 0.0
        %3216 = vmatpush1.msra.mxu0 0.0
        %3217 = vmatprep.subr.mxu0 0.0
        %3218 = vmatpush1.msra.mxu0 0.0
        %3219 = vmatprep.subr.mxu0 0.0
        %3220 = vmatpush1.msra.mxu0 0.0
        %3221 = vmatprep.subr.mxu0 0.0
        %3222 = vmatpush1.msra.mxu0 0.0
        %3223 = vmatprep.subr.mxu0 0.0
        %3224 = vmatpush1.msra.mxu0 0.0
        %3225 = vmatprep.subr.mxu0 0.0
        %3226 = vmatpush1.msra.mxu0 0.0
        %3227 = vmatprep.subr.mxu0 0.0
        %3228 = vmatpush1.msra.mxu0 0.0
        %3229 = vmatprep.subr.mxu0 0.0
        %3230 = vmatpush1.msra.mxu0 0.0
        %3231 = vmatprep.subr.mxu0 0.0
        %3232 = vmatpush1.msra.mxu0 0.0
        %3233 = vmatprep.subr.mxu0 0.0
        %3234 = vmatpush1.msra.mxu0 0.0
        %3235 = vmatprep.subr.mxu0 0.0
        %3236 = vmatpush1.msra.mxu0 0.0
        %3237 = vmatprep.subr.mxu0 0.0
        %3238 = vmatpush1.msra.mxu0 0.0
        %3239 = vmatprep.subr.mxu0 0.0
        %3240 = vmatpush1.msra.mxu0 0.0
        %3241 = vmatprep.subr.mxu0 0.0
        %3242 = vmatpush1.msra.mxu0 0.0
        %3243 = vmatprep.subr.mxu0 0.0
        %3244 = vmatpush1.msra.mxu0 0.0
        %3245 = vmatprep.subr.mxu0 0.0
        %3246 = vmatpush1.msra.mxu0 0.0
        %3247 = vmatprep.subr.mxu0 0.0
        %3248 = vmatpush1.msra.mxu0 0.0
        %3249 = vmatprep.subr.mxu0 0.0
        %3250 = vmatpush1.msra.mxu0 0.0
        %3251 = vmatprep.subr.mxu0 0.0
        %3252 = vmatpush1.msra.mxu0 0.0
        %3253 = vmatprep.subr.mxu0 0.0
        %3254 = vmatpush1.msra.mxu0 0.0
        %3255 = vmatprep.subr.mxu0 0.0
        %3256 = vmatpush1.msra.mxu0 0.0
        %3257 = vmatprep.mubr.f32.mxu0 0.0
        %3258 = vmatmul.mubr.f32.gmra.mrb[0].mxu0 %v3191
        %v3259 = vpop.f32.mrb[0].mxu0
        %v3260 = vadd.f32 0.0, %v3259
        %v3261 = vpop.f32.mrb[0].mxu0
        %3262 = vdwg.mxu0
        %v3263 = vadd.f32 %v3021, %v3260
        %3264 = vrot.lane.b32.xlu0 %v2391, 32
        %v3265 = vpop.permute.xlu0 %3264
        %3266 = vrot.lane.b32.xlu0 %v2469, 32
        %v3267 = vpop.permute.xlu0 %3266
        %v3268 = vsel %vm1001, %v3265, 0
        %v3270 = vsel %vm1001, %v3267, 0
        %3272 = vmatprep.subr.mxu0 0.0
        %3273 = vmatpush1.xpose.msra.mxu0 %v3270
        %3274 = vmatprep.subr.mxu0 0.0
        %3275 = vmatpush1.xpose.msra.mxu0 0.0
        %3276 = vmatprep.subr.mxu0 0.0
        %3277 = vmatpush1.xpose.msra.mxu0 0.0
        %3278 = vmatprep.subr.mxu0 0.0
        %3279 = vmatpush1.xpose.msra.mxu0 0.0
        %3280 = vmatprep.subr.mxu0 0.0
        %3281 = vmatpush1.xpose.msra.mxu0 0.0
        %3282 = vmatprep.subr.mxu0 0.0
        %3283 = vmatpush1.xpose.msra.mxu0 0.0
        %3284 = vmatprep.subr.mxu0 0.0
        %3285 = vmatpush1.xpose.msra.mxu0 0.0
        %3286 = vmatprep.subr.mxu0 0.0
        %3287 = vmatpush1.xpose.msra.mxu0 0.0
        %3288 = vmatprep.subr.mxu0 0.0
        %3289 = vmatpush1.xpose.msra.mxu0 0.0
        %3290 = vmatprep.subr.mxu0 0.0
        %3291 = vmatpush1.xpose.msra.mxu0 0.0
        %3292 = vmatprep.subr.mxu0 0.0
        %3293 = vmatpush1.xpose.msra.mxu0 0.0
        %3294 = vmatprep.subr.mxu0 0.0
        %3295 = vmatpush1.xpose.msra.mxu0 0.0
        %3296 = vmatprep.subr.mxu0 0.0
        %3297 = vmatpush1.xpose.msra.mxu0 0.0
        %3298 = vmatprep.subr.mxu0 0.0
        %3299 = vmatpush1.xpose.msra.mxu0 0.0
        %3300 = vmatprep.subr.mxu0 0.0
        %3301 = vmatpush1.xpose.msra.mxu0 0.0
        %3302 = vmatprep.subr.mxu0 0.0
        %3303 = vmatpush1.xpose.msra.mxu0 0.0
        %3304 = vmatprep.subr.mxu0 0.0
        %3305 = vmatpush1.xpose.msra.mxu0 0.0
        %3306 = vmatprep.subr.mxu0 0.0
        %3307 = vmatpush1.xpose.msra.mxu0 0.0
        %3308 = vmatprep.subr.mxu0 0.0
        %3309 = vmatpush1.xpose.msra.mxu0 0.0
        %3310 = vmatprep.subr.mxu0 0.0
        %3311 = vmatpush1.xpose.msra.mxu0 0.0
        %3312 = vmatprep.subr.mxu0 0.0
        %3313 = vmatpush1.xpose.msra.mxu0 0.0
        %3314 = vmatprep.subr.mxu0 0.0
        %3315 = vmatpush1.xpose.msra.mxu0 0.0
        %3316 = vmatprep.subr.mxu0 0.0
        %3317 = vmatpush1.xpose.msra.mxu0 0.0
        %3318 = vmatprep.subr.mxu0 0.0
        %3319 = vmatpush1.xpose.msra.mxu0 0.0
        %3320 = vmatprep.subr.mxu0 0.0
        %3321 = vmatpush1.xpose.msra.mxu0 0.0
        %3322 = vmatprep.subr.mxu0 0.0
        %3323 = vmatpush1.xpose.msra.mxu0 0.0
        %3324 = vmatprep.subr.mxu0 0.0
        %3325 = vmatpush1.xpose.msra.mxu0 0.0
        %3326 = vmatprep.subr.mxu0 0.0
        %3327 = vmatpush1.xpose.msra.mxu0 0.0
        %3328 = vmatprep.subr.mxu0 0.0
        %3329 = vmatpush1.xpose.msra.mxu0 0.0
        %3330 = vmatprep.subr.mxu0 0.0
        %3331 = vmatpush1.xpose.msra.mxu0 0.0
        %3332 = vmatprep.subr.mxu0 0.0
        %3333 = vmatpush1.xpose.msra.mxu0 0.0
        %3334 = vmatprep.subr.mxu0 0.0
        %3335 = vmatpush1.xpose.msra.mxu0 0.0
        %3336 = vmatprep.mubr.f32.mxu0 0.0
        %3337 = vmatmul.mubr.f32.gmra.mrb[0].mxu0 %v3268
        %v3338 = vpop.f32.mrb[0].mxu0
        %v3339 = vadd.f32 0.0, %v3338
        %v3340 = vpop.f32.mrb[0].mxu0
        %3341 = vdwg.mxu0
        %v3342 = vmul.f32 %v3339, 0.17677669
        %v3343 = vsel %vm1079, %v3342, -inf
        %3344 = vmax.xlane.f32.xlu0 %v3343
        %v3345 = vpop.xlane.xlu0 %3344
        %v3346 = vsub.f32 %v3342, %v3345
        %v3347 = vmul.f32 %v3346, 1.442695
        %v3348 = vpow.pop %v3347
        %v3349 = vsel %vm1079, %v3348, 0.0
        %3350 = vadd.xlane.f32.xlu0 %v3349
        %v3351 = vpop.xlane.xlu0 %3350
        %v3352 = vrcp.pop %v3351
        %v3353 = vmul.f32 %v3348, %v3352
        %3354 = vrot.lane.b32.xlu0 %v2547, 32
        %v3355 = vpop.permute.xlu0 %3354
        %v3358 = vsel %vm1079, %v3353, 0
        %3360 = vmatprep.subr.mxu0 0.0
        %3361 = vmatpush1.msra.mxu0 %v3355
        %3362 = vmatprep.subr.mxu0 0.0
        %3363 = vmatpush1.msra.mxu0 0.0
        %3364 = vmatprep.subr.mxu0 0.0
        %3365 = vmatpush1.msra.mxu0 0.0
        %3366 = vmatprep.subr.mxu0 0.0
        %3367 = vmatpush1.msra.mxu0 0.0
        %3368 = vmatprep.subr.mxu0 0.0
        %3369 = vmatpush1.msra.mxu0 0.0
        %3370 = vmatprep.subr.mxu0 0.0
        %3371 = vmatpush1.msra.mxu0 0.0
        %3372 = vmatprep.subr.mxu0 0.0
        %3373 = vmatpush1.msra.mxu0 0.0
        %3374 = vmatprep.subr.mxu0 0.0
        %3375 = vmatpush1.msra.mxu0 0.0
        %3376 = vmatprep.subr.mxu0 0.0
        %3377 = vmatpush1.msra.mxu0 0.0
        %3378 = vmatprep.subr.mxu0 0.0
        %3379 = vmatpush1.msra.mxu0 0.0
        %3380 = vmatprep.subr.mxu0 0.0
        %3381 = vmatpush1.msra.mxu0 0.0
        %3382 = vmatprep.subr.mxu0 0.0
        %3383 = vmatpush1.msra.mxu0 0.0
        %3384 = vmatprep.subr.mxu0 0.0
        %3385 = vmatpush1.msra.mxu0 0.0
        %3386 = vmatprep.subr.mxu0 0.0
        %3387 = vmatpush1.msra.mxu0 0.0
        %3388 = vmatprep.subr.mxu0 0.0
        %3389 = vmatpush1.msra.mxu0 0.0
        %3390 = vmatprep.subr.mxu0 0.0
        %3391 = vmatpush1.msra.mxu0 0.0
        %3392 = vmatprep.subr.mxu0 0.0
        %3393 = vmatpush1.msra.mxu0 0.0
        %3394 = vmatprep.subr.mxu0 0.0
        %3395 = vmatpush1.msra.mxu0 0.0
        %3396 = vmatprep.subr.mxu0 0.0
        %3397 = vmatpush1.msra.mxu0 0.0
        %3398 = vmatprep.subr.mxu0 0.0
        %3399 = vmatpush1.msra.mxu0 0.0
        %3400 = vmatprep.subr.mxu0 0.0
        %3401 = vmatpush1.msra.mxu0 0.0
        %3402 = vmatprep.subr.mxu0 0.0
        %3403 = vmatpush1.msra.mxu0 0.0
        %3404 = vmatprep.subr.mxu0 0.0
        %3405 = vmatpush1.msra.mxu0 0.0
        %3406 = vmatprep.subr.mxu0 0.0
        %3407 = vmatpush1.msra.mxu0 0.0
        %3408 = vmatprep.subr.mxu0 0.0
        %3409 = vmatpush1.msra.mxu0 0.0
        %3410 = vmatprep.subr.mxu0 0.0
        %3411 = vmatpush1.msra.mxu0 0.0
        %3412 = vmatprep.subr.mxu0 0.0
        %3413 = vmatpush1.msra.mxu0 0.0
        %3414 = vmatprep.subr.mxu0 0.0
        %3415 = vmatpush1.msra.mxu0 0.0
        %3416 = vmatprep.subr.mxu0 0.0
        %3417 = vmatpush1.msra.mxu0 0.0
        %3418 = vmatprep.subr.mxu0 0.0
        %3419 = vmatpush1.msra.mxu0 0.0
        %3420 = vmatprep.subr.mxu0 0.0
        %3421 = vmatpush1.msra.mxu0 0.0
        %3422 = vmatprep.subr.mxu0 0.0
        %3423 = vmatpush1.msra.mxu0 0.0
        %3424 = vmatprep.mubr.f32.mxu0 0.0
        %3425 = vmatmul.mubr.f32.gmra.mrb[0].mxu0 %v3358
        %v3426 = vpop.f32.mrb[0].mxu0
        %v3427 = vadd.f32 0.0, %v3426
        %v3428 = vpop.f32.mrb[0].mxu0
        %3429 = vdwg.mxu0
        %v3431 = vsel %vm1001, %v3427, 0
        %3433 = vmatprep.subr.mxu0 0.0
        %3434 = vmatpush1.msra.mxu0 %v2312
        %3435 = vmatprep.subr.mxu0 0.0
        %3436 = vmatpush1.msra.mxu0 %v2313
        %3437 = vmatprep.subr.mxu0 0.0
        %3438 = vmatpush1.msra.mxu0 %v2314
        %3439 = vmatprep.subr.mxu0 0.0
        %3440 = vmatpush1.msra.mxu0 %v2315
        %3441 = vmatprep.subr.mxu0 0.0
        %3442 = vmatpush1.msra.mxu0 0.0
        %3443 = vmatprep.subr.mxu0 0.0
        %3444 = vmatpush1.msra.mxu0 0.0
        %3445 = vmatprep.subr.mxu0 0.0
        %3446 = vmatpush1.msra.mxu0 0.0
        %3447 = vmatprep.subr.mxu0 0.0
        %3448 = vmatpush1.msra.mxu0 0.0
        %3449 = vmatprep.subr.mxu0 0.0
        %3450 = vmatpush1.msra.mxu0 0.0
        %3451 = vmatprep.subr.mxu0 0.0
        %3452 = vmatpush1.msra.mxu0 0.0
        %3453 = vmatprep.subr.mxu0 0.0
        %3454 = vmatpush1.msra.mxu0 0.0
        %3455 = vmatprep.subr.mxu0 0.0
        %3456 = vmatpush1.msra.mxu0 0.0
        %3457 = vmatprep.subr.mxu0 0.0
        %3458 = vmatpush1.msra.mxu0 0.0
        %3459 = vmatprep.subr.mxu0 0.0
        %3460 = vmatpush1.msra.mxu0 0.0
        %3461 = vmatprep.subr.mxu0 0.0
        %3462 = vmatpush1.msra.mxu0 0.0
        %3463 = vmatprep.subr.mxu0 0.0
        %3464 = vmatpush1.msra.mxu0 0.0
        %3465 = vmatprep.subr.mxu0 0.0
        %3466 = vmatpush1.msra.mxu0 0.0
        %3467 = vmatprep.subr.mxu0 0.0
        %3468 = vmatpush1.msra.mxu0 0.0
        %3469 = vmatprep.subr.mxu0 0.0
        %3470 = vmatpush1.msra.mxu0 0.0
        %3471 = vmatprep.subr.mxu0 0.0
        %3472 = vmatpush1.msra.mxu0 0.0
        %3473 = vmatprep.subr.mxu0 0.0
        %3474 = vmatpush1.msra.mxu0 0.0
        %3475 = vmatprep.subr.mxu0 0.0
        %3476 = vmatpush1.msra.mxu0 0.0
        %3477 = vmatprep.subr.mxu0 0.0
        %3478 = vmatpush1.msra.mxu0 0.0
        %3479 = vmatprep.subr.mxu0 0.0
        %3480 = vmatpush1.msra.mxu0 0.0
        %3481 = vmatprep.subr.mxu0 0.0
        %3482 = vmatpush1.msra.mxu0 0.0
        %3483 = vmatprep.subr.mxu0 0.0
        %3484 = vmatpush1.msra.mxu0 0.0
        %3485 = vmatprep.subr.mxu0 0.0
        %3486 = vmatpush1.msra.mxu0 0.0
        %3487 = vmatprep.subr.mxu0 0.0
        %3488 = vmatpush1.msra.mxu0 0.0
        %3489 = vmatprep.subr.mxu0 0.0
        %3490 = vmatpush1.msra.mxu0 0.0
        %3491 = vmatprep.subr.mxu0 0.0
        %3492 = vmatpush1.msra.mxu0 0.0
        %3493 = vmatprep.subr.mxu0 0.0
        %3494 = vmatpush1.msra.mxu0 0.0
        %3495 = vmatprep.subr.mxu0 0.0
        %3496 = vmatpush1.msra.mxu0 0.0
        %3497 = vmatprep.mubr.f32.mxu0 0.0
        %3498 = vmatmul.mubr.f32.gmra.mrb[0].mxu0 %v3431
        %v3499 = vpop.f32.mrb[0].mxu0
        %v3500 = vadd.f32 0.0, %v3499
        %v3501 = vpop.f32.mrb[0].mxu0
        %3502 = vdwg.mxu0
        %v3503 = vadd.f32 %v3263, %v3500
        %s3504 = scalar_lea.vmem %s8, 1
        %v3505 = vld [vmem:[%s3504] sm:$0x1]
        %v3507 = vlaneseq
        %v3508 = vshrl.u32 %v3507, 7
        %v3509 = vsub.s32 0, %v3508
        %v3510 = vrot.slane %v3505, %v3509
        %v3512 = vadd.f32 %v3503, %v3510
        %v3513 = vadd.f32 %v2247, %v3512
        %s3514 = scalar_lea.vmem %s13, 1
        %v3515 = vld [vmem:[%s3514] sm:$0x1]
        %s3516 = scalar_lea.vmem %s14, 1
        %v3517 = vld [vmem:[%s3516] sm:$0x1]
        %3518 = vadd.xlane.f32.xlu0 %v3513
        %v3519 = vpop.xlane.xlu0 %3518
        %v3520 = vmul.f32 %v3519, %v1970
        %v3521 = vsub.f32 %v3513, %v3520
        %v3522 = vmul.f32 %v3521, %v3521
        %3523 = vadd.xlane.f32.xlu0 %v3522
        %v3524 = vpop.xlane.xlu0 %3523
        %v3525 = vmul.f32 %v3524, %v1970
        %v3526 = vadd.f32 %v3525, 1e-05
        %v3527 = vrsqrt.pop %v3526
        %v3528 = vmul.f32 %v3521, %v3527
        %v3530 = vlaneseq
        %v3531 = vshrl.u32 %v3530, 7
        %v3532 = vsub.s32 0, %v3531
        %v3533 = vrot.slane %v3515, %v3532
        %v3535 = vmul.f32 %v3528, %v3533
        %v3537 = vlaneseq
        %v3538 = vshrl.u32 %v3537, 7
        %v3539 = vsub.s32 0, %v3538
        %v3540 = vrot.slane %v3517, %v3539
        %v3542 = vadd.f32 %v3535, %v3540
        %s3543 = scalar_lea.vmem [#allocation11], 256
        %v3544 = vld [vmem:[%s3543] sm:$0xff]
        %v3545 = vld [vmem:[%s3543 + $0x8] sm:$0xff]
        %v3546 = vld [vmem:[%s3543 + $0x10] sm:$0xff]
        %v3547 = vld [vmem:[%s3543 + $0x18] sm:$0xff]
        %v3548 = vld [vmem:[%s3543 + $0x20] sm:$0xff]
        %v3549 = vld [vmem:[%s3543 + $0x28] sm:$0xff]
        %v3550 = vld [vmem:[%s3543 + $0x30] sm:$0xff]
        %v3551 = vld [vmem:[%s3543 + $0x38] sm:$0xff]
        %v3552 = vld [vmem:[%s3543 + $0x40] sm:$0xff]
        %v3553 = vld [vmem:[%s3543 + $0x48] sm:$0xff]
        %v3554 = vld [vmem:[%s3543 + $0x50] sm:$0xff]
        %v3555 = vld [vmem:[%s3543 + $0x58] sm:$0xff]
        %v3556 = vld [vmem:[%s3543 + $0x60] sm:$0xff]
        %v3557 = vld [vmem:[%s3543 + $0x68] sm:$0xff]
        %v3558 = vld [vmem:[%s3543 + $0x70] sm:$0xff]
        %v3559 = vld [vmem:[%s3543 + $0x78] sm:$0xff]
        %v3560 = vld [vmem:[%s3543 + $0x80] sm:$0xff]
        %v3561 = vld [vmem:[%s3543 + $0x88] sm:$0xff]
        %v3562 = vld [vmem:[%s3543 + $0x90] sm:$0xff]
        %v3563 = vld [vmem:[%s3543 + $0x98] sm:$0xff]
        %v3564 = vld [vmem:[%s3543 + $0xa0] sm:$0xff]
        %v3565 = vld [vmem:[%s3543 + $0xa8] sm:$0xff]
        %v3566 = vld [vmem:[%s3543 + $0xb0] sm:$0xff]
        %v3567 = vld [vmem:[%s3543 + $0xb8] sm:$0xff]
        %v3568 = vld [vmem:[%s3543 + $0xc0] sm:$0xff]
        %v3569 = vld [vmem:[%s3543 + $0xc8] sm:$0xff]
        %v3570 = vld [vmem:[%s3543 + $0xd0] sm:$0xff]
        %v3571 = vld [vmem:[%s3543 + $0xd8] sm:$0xff]
        %v3572 = vld [vmem:[%s3543 + $0xe0] sm:$0xff]
        %v3573 = vld [vmem:[%s3543 + $0xe8] sm:$0xff]
        %v3574 = vld [vmem:[%s3543 + $0xf0] sm:$0xff]
        %v3575 = vld [vmem:[%s3543 + $0xf8] sm:$0xff]
        %s3576 = scalar_lea.vmem %s10, 2
        %v3577 = vld [vmem:[%s3576] sm:$0x3]
        %v3579 = vlaneseq
        %v3580 = vshrl.u32 %v3579, 7
        %v3581 = vsub.s32 0, %v3580
        %v3582 = vrot.slane %v3577, %v3581
        %v3583 = vlaneseq
        %v3584 = vshrl.u32 %v3583, 7
        %v3585 = vsub.s32 1, %v3584
        %v3586 = vrot.slane %v3577, %v3585
        %3589 = vmatprep.subr.mxu0 %v3545
        %3590 = vmatpush1.msra.mxu0 %v3544
        %3591 = vmatprep.subr.mxu0 %v3547
        %3592 = vmatpush1.msra.mxu0 %v3546
        %3593 = vmatprep.subr.mxu0 %v3549
        %3594 = vmatpush1.msra.mxu0 %v3548
        %3595 = vmatprep.subr.mxu0 %v3551
        %3596 = vmatpush1.msra.mxu0 %v3550
        %3597 = vmatprep.subr.mxu0 %v3553
        %3598 = vmatpush1.msra.mxu0 %v3552
        %3599 = vmatprep.subr.mxu0 %v3555
        %3600 = vmatpush1.msra.mxu0 %v3554
        %3601 = vmatprep.subr.mxu0 %v3557
        %3602 = vmatpush1.msra.mxu0 %v3556
        %3603 = vmatprep.subr.mxu0 %v3559
        %3604 = vmatpush1.msra.mxu0 %v3558
        %3605 = vmatprep.subr.mxu0 %v3561
        %3606 = vmatpush1.msra.mxu0 %v3560
        %3607 = vmatprep.subr.mxu0 %v3563
        %3608 = vmatpush1.msra.mxu0 %v3562
        %3609 = vmatprep.subr.mxu0 %v3565
        %3610 = vmatpush1.msra.mxu0 %v3564
        %3611 = vmatprep.subr.mxu0 %v3567
        %3612 = vmatpush1.msra.mxu0 %v3566
        %3613 = vmatprep.subr.mxu0 %v3569
        %3614 = vmatpush1.msra.mxu0 %v3568
        %3615 = vmatprep.subr.mxu0 %v3571
        %3616 = vmatpush1.msra.mxu0 %v3570
        %3617 = vmatprep.subr.mxu0 %v3573
        %3618 = vmatpush1.msra.mxu0 %v3572
        %3619 = vmatprep.subr.mxu0 %v3575
        %3620 = vmatpush1.msra.mxu0 %v3574
        %3621 = vmatprep.subr.mxu0 0.0
        %3622 = vmatpush1.msra.mxu0 0.0
        %3623 = vmatprep.subr.mxu0 0.0
        %3624 = vmatpush1.msra.mxu0 0.0
        %3625 = vmatprep.subr.mxu0 0.0
        %3626 = vmatpush1.msra.mxu0 0.0
        %3627 = vmatprep.subr.mxu0 0.0
        %3628 = vmatpush1.msra.mxu0 0.0
        %3629 = vmatprep.subr.mxu0 0.0
        %3630 = vmatpush1.msra.mxu0 0.0
        %3631 = vmatprep.subr.mxu0 0.0
        %3632 = vmatpush1.msra.mxu0 0.0
        %3633 = vmatprep.subr.mxu0 0.0
        %3634 = vmatpush1.msra.mxu0 0.0
        %3635 = vmatprep.subr.mxu0 0.0
        %3636 = vmatpush1.msra.mxu0 0.0
        %3637 = vmatprep.subr.mxu0 0.0
        %3638 = vmatpush1.msra.mxu0 0.0
        %3639 = vmatprep.subr.mxu0 0.0
        %3640 = vmatpush1.msra.mxu0 0.0
        %3641 = vmatprep.subr.mxu0 0.0
        %3642 = vmatpush1.msra.mxu0 0.0
        %3643 = vmatprep.subr.mxu0 0.0
        %3644 = vmatpush1.msra.mxu0 0.0
        %3645 = vmatprep.subr.mxu0 0.0
        %3646 = vmatpush1.msra.mxu0 0.0
        %3647 = vmatprep.subr.mxu0 0.0
        %3648 = vmatpush1.msra.mxu0 0.0
        %3649 = vmatprep.subr.mxu0 0.0
        %3650 = vmatpush1.msra.mxu0 0.0
        %3651 = vmatprep.subr.mxu0 0.0
        %3652 = vmatpush1.msra.mxu0 0.0
        %3653 = vmatprep.mubr.f32.mxu0 0.0
        %3654 = vmatmul.mubr.f32.gmra.mrb[0].mxu0 %v3542
        %v3655 = vpop.f32.mrb[0].mxu0
        %v3656 = vadd.f32 %v3582, %v3655
        %v3657 = vpop.f32.mrb[0].mxu0
        %v3658 = vadd.f32 %v3586, %v3657
        %3659 = vdwg.mxu0
        %v3660 = vmax.f32 %v3656, 0.0
        %v3661 = vmax.f32 %v3658, 0.0
        %s3662 = scalar_lea.vmem [#allocation13], 256
        %v3663 = vld [vmem:[%s3662] sm:$0xff]
        %v3664 = vld [vmem:[%s3662 + $0x8] sm:$0xff]
        %v3665 = vld [vmem:[%s3662 + $0x10] sm:$0xff]
        %v3666 = vld [vmem:[%s3662 + $0x18] sm:$0xff]
        %v3667 = vld [vmem:[%s3662 + $0x20] sm:$0xff]
        %v3668 = vld [vmem:[%s3662 + $0x28] sm:$0xff]
        %v3669 = vld [vmem:[%s3662 + $0x30] sm:$0xff]
        %v3670 = vld [vmem:[%s3662 + $0x38] sm:$0xff]
        %v3671 = vld [vmem:[%s3662 + $0x40] sm:$0xff]
        %v3672 = vld [vmem:[%s3662 + $0x48] sm:$0xff]
        %v3673 = vld [vmem:[%s3662 + $0x50] sm:$0xff]
        %v3674 = vld [vmem:[%s3662 + $0x58] sm:$0xff]
        %v3675 = vld [vmem:[%s3662 + $0x60] sm:$0xff]
        %v3676 = vld [vmem:[%s3662 + $0x68] sm:$0xff]
        %v3677 = vld [vmem:[%s3662 + $0x70] sm:$0xff]
        %v3678 = vld [vmem:[%s3662 + $0x78] sm:$0xff]
        %v3679 = vld [vmem:[%s3662 + $0x80] sm:$0xff]
        %v3680 = vld [vmem:[%s3662 + $0x88] sm:$0xff]
        %v3681 = vld [vmem:[%s3662 + $0x90] sm:$0xff]
        %v3682 = vld [vmem:[%s3662 + $0x98] sm:$0xff]
        %v3683 = vld [vmem:[%s3662 + $0xa0] sm:$0xff]
        %v3684 = vld [vmem:[%s3662 + $0xa8] sm:$0xff]
        %v3685 = vld [vmem:[%s3662 + $0xb0] sm:$0xff]
        %v3686 = vld [vmem:[%s3662 + $0xb8] sm:$0xff]
        %v3687 = vld [vmem:[%s3662 + $0xc0] sm:$0xff]
        %v3688 = vld [vmem:[%s3662 + $0xc8] sm:$0xff]
        %v3689 = vld [vmem:[%s3662 + $0xd0] sm:$0xff]
        %v3690 = vld [vmem:[%s3662 + $0xd8] sm:$0xff]
        %v3691 = vld [vmem:[%s3662 + $0xe0] sm:$0xff]
        %v3692 = vld [vmem:[%s3662 + $0xe8] sm:$0xff]
        %v3693 = vld [vmem:[%s3662 + $0xf0] sm:$0xff]
        %v3694 = vld [vmem:[%s3662 + $0xf8] sm:$0xff]
        %s3695 = scalar_lea.vmem %s12, 1
        %v3696 = vld [vmem:[%s3695] sm:$0x1]
        %v3698 = vlaneseq
        %v3699 = vshrl.u32 %v3698, 7
        %v3700 = vsub.s32 0, %v3699
        %v3701 = vrot.slane %v3696, %v3700
        %3703 = vmatprep.subr.mxu0 0.0
        %3704 = vmatpush1.msra.mxu0 %v3663
        %3705 = vmatprep.subr.mxu0 0.0
        %3706 = vmatpush1.msra.mxu0 %v3664
        %3707 = vmatprep.subr.mxu0 0.0
        %3708 = vmatpush1.msra.mxu0 %v3665
        %3709 = vmatprep.subr.mxu0 0.0
        %3710 = vmatpush1.msra.mxu0 %v3666
        %3711 = vmatprep.subr.mxu0 0.0
        %3712 = vmatpush1.msra.mxu0 %v3667
        %3713 = vmatprep.subr.mxu0 0.0
        %3714 = vmatpush1.msra.mxu0 %v3668
        %3715 = vmatprep.subr.mxu0 0.0
        %3716 = vmatpush1.msra.mxu0 %v3669
        %3717 = vmatprep.subr.mxu0 0.0
        %3718 = vmatpush1.msra.mxu0 %v3670
        %3719 = vmatprep.subr.mxu0 0.0
        %3720 = vmatpush1.msra.mxu0 %v3671
        %3721 = vmatprep.subr.mxu0 0.0
        %3722 = vmatpush1.msra.mxu0 %v3672
        %3723 = vmatprep.subr.mxu0 0.0
        %3724 = vmatpush1.msra.mxu0 %v3673
        %3725 = vmatprep.subr.mxu0 0.0
        %3726 = vmatpush1.msra.mxu0 %v3674
        %3727 = vmatprep.subr.mxu0 0.0
        %3728 = vmatpush1.msra.mxu0 %v3675
        %3729 = vmatprep.subr.mxu0 0.0
        %3730 = vmatpush1.msra.mxu0 %v3676
        %3731 = vmatprep.subr.mxu0 0.0
        %3732 = vmatpush1.msra.mxu0 %v3677
        %3733 = vmatprep.subr.mxu0 0.0
        %3734 = vmatpush1.msra.mxu0 %v3678
        %3735 = vmatprep.subr.mxu0 0.0
        %3736 = vmatpush1.msra.mxu0 %v3679
        %3737 = vmatprep.subr.mxu0 0.0
        %3738 = vmatpush1.msra.mxu0 %v3680
        %3739 = vmatprep.subr.mxu0 0.0
        %3740 = vmatpush1.msra.mxu0 %v3681
        %3741 = vmatprep.subr.mxu0 0.0
        %3742 = vmatpush1.msra.mxu0 %v3682
        %3743 = vmatprep.subr.mxu0 0.0
        %3744 = vmatpush1.msra.mxu0 %v3683
        %3745 = vmatprep.subr.mxu0 0.0
        %3746 = vmatpush1.msra.mxu0 %v3684
        %3747 = vmatprep.subr.mxu0 0.0
        %3748 = vmatpush1.msra.mxu0 %v3685
        %3749 = vmatprep.subr.mxu0 0.0
        %3750 = vmatpush1.msra.mxu0 %v3686
        %3751 = vmatprep.subr.mxu0 0.0
        %3752 = vmatpush1.msra.mxu0 %v3687
        %3753 = vmatprep.subr.mxu0 0.0
        %3754 = vmatpush1.msra.mxu0 %v3688
        %3755 = vmatprep.subr.mxu0 0.0
        %3756 = vmatpush1.msra.mxu0 %v3689
        %3757 = vmatprep.subr.mxu0 0.0
        %3758 = vmatpush1.msra.mxu0 %v3690
        %3759 = vmatprep.subr.mxu0 0.0
        %3760 = vmatpush1.msra.mxu0 %v3691
        %3761 = vmatprep.subr.mxu0 0.0
        %3762 = vmatpush1.msra.mxu0 %v3692
        %3763 = vmatprep.subr.mxu0 0.0
        %3764 = vmatpush1.msra.mxu0 %v3693
        %3765 = vmatprep.subr.mxu0 0.0
        %3766 = vmatpush1.msra.mxu0 %v3694
        %3767 = vmatprep.mubr.f32.mxu0 %v3661
        %3768 = vmatmul.mubr.f32.gmra.mrb[0].mxu0 %v3660
        %v3769 = vpop.f32.mrb[0].mxu0
        %v3770 = vadd.f32 %v3701, %v3769
        %v3771 = vpop.f32.mrb[0].mxu0
        %3772 = vdwg.mxu0
        %v3773 = vadd.f32 %v3542, %v3770
        %s3774 = scalar_lea.vmem %s15, 1
        %v3775 = vld [vmem:[%s3774] sm:$0x1]
        %s3776 = scalar_lea.vmem %s16, 1
        %v3777 = vld [vmem:[%s3776] sm:$0x1]
        %3778 = vadd.xlane.f32.xlu0 %v3773
        %v3779 = vpop.xlane.xlu0 %3778
        %v3780 = vmul.f32 %v3779, %v1970
        %v3781 = vsub.f32 %v3773, %v3780
        %v3782 = vmul.f32 %v3781, %v3781
        %3783 = vadd.xlane.f32.xlu0 %v3782
        %v3784 = vpop.xlane.xlu0 %3783
        %v3785 = vmul.f32 %v3784, %v1970
        %v3786 = vadd.f32 %v3785, 1e-05
        %v3787 = vrsqrt.pop %v3786
        %v3788 = vmul.f32 %v3781, %v3787
        %v3790 = vlaneseq
        %v3791 = vshrl.u32 %v3790, 7
        %v3792 = vsub.s32 0, %v3791
        %v3793 = vrot.slane %v3775, %v3792
        %v3795 = vmul.f32 %v3788, %v3793
        %v3797 = vlaneseq
        %v3798 = vshrl.u32 %v3797, 7
        %v3799 = vsub.s32 0, %v3798
        %v3800 = vrot.slane %v3777, %v3799
        %v3802 = vadd.f32 %v3795, %v3800
        %v3803 = vld [vmem:[%s17] sm:$0x1]
        %v3804 = vld [vmem:[%s18] sm:$0x1]
        %3805 = vadd.xlane.f32.xlu0 %v3802
        %v3806 = vpop.xlane.xlu0 %3805
        %v3807 = vmul.f32 %v3806, %v1970
        %v3808 = vsub.f32 %v3802, %v3807
        %v3809 = vmul.f32 %v3808, %v3808
        %3810 = vadd.xlane.f32.xlu0 %v3809
        %v3811 = vpop.xlane.xlu0 %3810
        %v3812 = vmul.f32 %v3811, %v1970
        %v3813 = vadd.f32 %v3812, 1e-05
        %v3814 = vrsqrt.pop %v3813
        %v3815 = vmul.f32 %v3808, %v3814
        %v3817 = vlaneseq
        %v3818 = vshrl.u32 %v3817, 7
        %v3819 = vsub.s32 0, %v3818
        %v3820 = vrot.slane %v3803, %v3819
        %v3822 = vmul.f32 %v3815, %v3820
        %v3824 = vlaneseq
        %v3825 = vshrl.u32 %v3824, 7
        %v3826 = vsub.s32 0, %v3825
        %v3827 = vrot.slane %v3804, %v3826
        %v3829 = vadd.f32 %v3822, %v3827
        %3830 = vst [vmem:[%s704] sm:$0xff] %v3829
        %s3831 = sand.u32 %s451, 1
        %s3832 = scalar_lea.sflag [#allocation4], %s3831
        %s3833 = sand.u32 %s451, 1
        %s3834 = smul.addr %s3833, 8
        %s3835 = scalar_lea.vmem [#allocation14], %s3834
        // Predicated region
        $region125: #{tpu_custom_call.1} parent=95 // pred_check
          %p3836 = pneg %p461
        $region126: #{tpu_custom_call.1} parent=95 // pred_check_branch
          %3838 = sbr.rel (%p3836) target = $region128
        $region127: #{tpu_custom_call.1} parent=95 // pred_region
          %s3840 = ssub.s32 128, 128
          %3841 = vsyncadd %s3832, %s3840
          %s3842 = smul.addr %s39, 128
          %s3843 = scalar_lea.hbm %s19, %s3842
          %s3845 = sshll.u32 %s3835, 4
          %s3846 = int_to_ptr.vmem [resolvable:$true] %s3845
          %3848 = dma.vmem_to_hbm [thread:$0]  %s3846, 128, %s3843, %s3832
        $region128: #{tpu_custom_call.1} parent=95 // pred_fallthru
          _
      $region96: #{tpu_custom_call.1} parent=5 // pred_fallthru
        _
      %p3849 = scmp.le.s32.totalorder 2, %s34
      // Predicated region
      $region129: #{tpu_custom_call.1} parent=5 // pred_check
        %p3850 = pneg %p3849
      $region130: #{tpu_custom_call.1} parent=5 // pred_check_branch
        %3852 = sbr.rel (%p3850) target = $region132
      $region131: #{tpu_custom_call.1} parent=5 // pred_region
        %s3853 = ssub.s32 %s34, 2
        // Predicated region
        $region133: #{tpu_custom_call.1} parent=131 // pred_check
          %p3854 = pneg %p467
        $region134: #{tpu_custom_call.1} parent=131 // pred_check_branch
          %3856 = sbr.rel (%p3854) target = $region136
        $region135: #{tpu_custom_call.1} parent=131 // pred_region
          %s3857 = sand.u32 %s452, 1
          %s3858 = scalar_lea.sflag [#allocation4], %s3857
          %s3859 = sand.u32 %s452, 1
          %s3860 = smul.addr %s3859, 8
          %s3861 = scalar_lea.vmem [#allocation14], %s3860
          %3862 = dma.done %s3858, 128
        $region136: #{tpu_custom_call.1} parent=131 // pred_fallthru
          _
      $region132: #{tpu_custom_call.1} parent=5 // pred_fallthru
        _
    $region6: #{tpu_custom_call.1} parent=1 // loop_footer
      %s38 = sadd.s32 1, %s34
    $region7: #{tpu_custom_call.1} parent=1 // loop_footer_branch
      %33 = sbr.rel target = $region3
    $region8: #{tpu_custom_call.1} parent=1 // loop_exit
      _
    %3863 = vsyncpa [#allocation3], 1
    %s3864 = scalar_lea.sflag [#allocation3], 1
    %3865 = vsyncpa %s3864, 1
    %3866 = vsyncpa [#allocation6], 1
    %3867 = vsyncpa [#allocation9], 1
    %3868 = vsyncpa [#allocation12], 1
    %3869 = vsyncpa [#allocation4], 1
    %s3870 = scalar_lea.sflag [#allocation4], 1
    %3871 = vsyncpa %s3870, 1

</llo_original>
